<compile_context>
chip_gen: v7x
topology: tpu7x:2x2x1
jax: 0.10.0
libtpu: 0.0.40
codegen_flags: <defaults>
</compile_context>

<pallas_src>
import functools

import numpy as np
import jax
import jax.numpy as jnp
from jax.experimental import pallas as pl
from jax.experimental.pallas import tpu as pltpu  # noqa: F401

F32 = jnp.float32
_BN_EPS = 1e-5


# --------------------------------------------------------------------------
# In-kernel elementwise helpers.
# --------------------------------------------------------------------------
def _gelu(v):
    # tanh-approximate GELU (EUP tanh instead of an erf polynomial).
    c0 = 0.7978845608028654  # sqrt(2/pi)
    return 0.5 * v * (1.0 + jnp.tanh(c0 * (v + 0.044715 * v * v * v)))


def _sigmoid(v):
    return 1.0 / (1.0 + jnp.exp(-v))


def _softplus(v):
    return jnp.maximum(v, 0.0) + jnp.log(1.0 + jnp.exp(-jnp.abs(v)))


# --------------------------------------------------------------------------
# The single fused forward kernel.
#
# Input refs (in order):
#   g (B*(L+2), 8), x (B, F),
#   w1 (3,8,128), sb1 (2,128),
#   w2a (3,128,128), sb2a, w2b, sb2b, w2c, sb2c,
#   p1 (B*(L+2),   B*(L+2)-2)      c1  select  -> c2a padded slab
#   p2 (B*(L/2+2), B*(L+2)-2)      c2a pool    -> c2b padded slab
#   p3 (B*(L/4+2), B*(L/2+2)-2)    c2b pool    -> c2c padded slab
#   p4 (T*B,       B*(L/4+2)-2)    c2c pool    -> GRU input (time-major)
#   per GRU layer: A (Cin,6H), C (Cin,6H), bih (1,6H), whh_blk (2H,6H),
#                  bhn (1,2H)
#   ws (2H,12), wd1 (F,96), wd2 (96,64), wd3 (64,128),
#   whg (12,1), whd (128,1), bhd (1,1)
# Output ref: o (B, 1)
# --------------------------------------------------------------------------
def _fused_forward_kernel(*refs, B, T, H, num_layers):
    n_in = 14 + 5 * num_layers + 7
    (g_ref, x_ref,
     w1_ref, sb1_ref, w2a_ref, sb2a_ref, w2b_ref, sb2b_ref,
     w2c_ref, sb2c_ref, p1_ref, p2_ref, p3_ref, p4_ref) = refs[:14]
    gru_refs = refs[14:14 + 5 * num_layers]
    (ws_ref, wd1_ref, wd2_ref, wd3_ref,
     whg_ref, whd_ref, bhd_ref) = refs[14 + 5 * num_layers:n_in]
    o_ref = refs[n_in]

    # ---- conv stack: 3 batch-flat shift-matmuls + folded BN + GELU,
    # ---- then pool/select/re-pad in one selection matmul ------------------
    def conv_stage(x_val, w_ref, sb_ref, p_ref):
        m = x_val.shape[0] - 2
        acc = jnp.dot(x_val[0:m, :], w_ref[0], preferred_element_type=F32)
        acc = acc + jnp.dot(x_val[1:m + 1, :], w_ref[1],
                            preferred_element_type=F32)
        acc = acc + jnp.dot(x_val[2:m + 2, :], w_ref[2],
                            preferred_element_type=F32)
        y = _gelu(acc * sb_ref[0:1, :] + sb_ref[1:2, :])
        return jnp.dot(p_ref[...], y, preferred_element_type=F32)

    a = conv_stage(g_ref[...], w1_ref, sb1_ref, p1_ref)     # (B*(L+2),   128)
    a = conv_stage(a, w2a_ref, sb2a_ref, p2_ref)             # (B*(L/2+2), 128)
    a = conv_stage(a, w2b_ref, sb2b_ref, p3_ref)             # (B*(L/4+2), 128)
    seq = conv_stage(a, w2c_ref, sb2c_ref, p4_ref)           # (T*B, 128)

    # ---- bidirectional GRU stack: fwd and bwd stepped together ------------
    # Step s: forward processes time s, backward processes time T-1-s.
    # Combined state h = [h_f(s) | h_b(T-1-s)]  (B, 2H).
    # Gate lanes are interleaved [r_f r_b | z_f z_b | n_f n_b] (6H).
    x_in = seq                               # step-major rows (s*B + b)
    hs_first = None
    hs_last = None
    for layer in range(num_layers):
        (a_ref, c_ref, bih_ref, whh_ref,
         bhn_ref) = gru_refs[5 * layer:5 * layer + 5]

        # Batched input projections (outside the serial loop).
        ga = jnp.dot(x_in, a_ref[...], preferred_element_type=F32) + bih_ref[...]
        gc = jnp.dot(x_in, c_ref[...], preferred_element_type=F32)
        whh = whh_ref[...]                                       # (2H, 6H)
        bhn = jnp.broadcast_to(bhn_ref[...], (B, 2 * H))         # hoisted

        h = jnp.zeros((B, 2 * H), F32)
        hs_list = []
        for s in range(T):
            gi = (ga[s * B:(s + 1) * B, :]
                  + gc[(T - 1 - s) * B:(T - s) * B, :])          # (B, 6H)
            gh = jnp.dot(h, whh, preferred_element_type=F32)     # (B, 6H)
            rz = _sigmoid(gi[:, 0:4 * H] + gh[:, 0:4 * H])       # one wide EUP op
            r = rz[:, 0:2 * H]
            z = rz[:, 2 * H:4 * H]
            n = jnp.tanh(gi[:, 4 * H:6 * H] + r * (gh[:, 4 * H:6 * H] + bhn))
            h = n + z * (h - n)
            hs_list.append(h)
        hs_first, hs_last = hs_list[0], hs_list[T - 1]
        if layer + 1 < num_layers:
            # Next layer input, step-major; the A/C spread weights account for
            # the fwd/bwd time reversal, so no lane shuffles are needed here.
            x_in = jnp.concatenate(hs_list, axis=0)              # (T*B, 2H)

    # ---- s: Linear(2H -> 12, bias=False) on the last timestep -------------
    hf_last = hs_last[:, 0:H]            # forward hidden at time T-1
    hb_last = hs_first[:, H:2 * H]       # backward hidden at time T-1
    ws = ws_ref[...]
    g_s = (jnp.dot(hf_last, ws[0:H, :], preferred_element_type=F32)
           + jnp.dot(hb_last, ws[H:2 * H, :], preferred_element_type=F32))

    # ---- d: 24 -> 96 -> 64 -> 128 MLP (bias=False; Dropout = identity) ----
    d1 = jnp.maximum(
        jnp.dot(x_ref[...], wd1_ref[...], preferred_element_type=F32), 0.0)
    d2 = jnp.maximum(
        jnp.dot(d1, wd2_ref[...], preferred_element_type=F32), 0.0)
    d3 = jnp.dot(d2, wd3_ref[...], preferred_element_type=F32)

    # ---- head: BN folded into the linear; 140x1 matmul split 12/128 -------
    y = (jnp.dot(g_s, whg_ref[...], preferred_element_type=F32)
         + jnp.dot(d3, whd_ref[...], preferred_element_type=F32)
         + bhd_ref[...])
    o_ref[...] = _softplus(y)


# --------------------------------------------------------------------------
# One-time parameter preparation (host side).
# --------------------------------------------------------------------------
def _fold_bn(gamma, beta, mean, var):
    s = gamma / jnp.sqrt(var + _BN_EPS)
    return s, beta - mean * s


def _select_matrix(B, lin):
    # c1 (no pool): conv rows b*(lin+2)+i  ->  next padded slab rows
    rows, cols = B * (lin + 2), B * (lin + 2) - 2
    m = np.zeros((rows, cols), np.float32)
    for b in range(B):
        for i in range(lin):
            m[b * (lin + 2) + 1 + i, b * (lin + 2) + i] = 1.0
    return jnp.asarray(m)


def _pool_pad_matrix(B, lin):
    # AvgPool1d(2,2) of valid conv rows + re-pad next slab (pad rows = 0).
    lout = lin // 2
    rows, cols = B * (lout + 2), B * (lin + 2) - 2
    m = np.zeros((rows, cols), np.float32)
    for b in range(B):
        for p in range(lout):
            m[b * (lout + 2) + 1 + p, b * (lin + 2) + 2 * p] = 0.5
            m[b * (lout + 2) + 1 + p, b * (lin + 2) + 2 * p + 1] = 0.5
    return jnp.asarray(m)


def _pool_seq_matrix(B, lin):
    # Final pool, producing the GRU input sequence time-major (row = s*B + b).
    lout = lin // 2
    rows, cols = lout * B, B * (lin + 2) - 2
    m = np.zeros((rows, cols), np.float32)
    for b in range(B):
        for s in range(lout):
            m[s * B + b, b * (lin + 2) + 2 * s] = 0.5
            m[s * B + b, b * (lin + 2) + 2 * s + 1] = 0.5
    return jnp.asarray(m)


def prepare_params(params, L, B):
    H = params["hidden_size"]
    ops = []

    # c1: Conv2d(4->128, k=(2,3), pad=(0,1)) + BN, as per-kw (8,128) slices.
    w1 = jnp.transpose(params["c1_w"], (3, 1, 2, 0)).reshape(3, 8, 128)
    s, t = _fold_bn(*params["bn1"])
    ops += [w1.astype(F32),
            jnp.stack([s, params["c1_b"] * s + t], axis=0).astype(F32)]

    # c2a/b/c: Conv1d + BN, channels zero-padded to 128 for lane density.
    for name in ("c2a", "c2b", "c2c"):
        wc, bc, bn = params[name]
        cout, cin, _ = wc.shape
        w = jnp.transpose(wc, (2, 1, 0))                       # (3, Cin, Cout)
        w = jnp.pad(w, ((0, 0), (0, 128 - cin), (0, 128 - cout)))
        s, t = _fold_bn(*bn)
        scale = jnp.pad(s, (0, 128 - cout))
        shift = jnp.pad(bc * s + t, (0, 128 - cout))
        ops += [w.astype(F32), jnp.stack([scale, shift], axis=0).astype(F32)]

    # Pool / selection matrices (fuse pool + batch de-interleave + re-pad).
    ops += [_select_matrix(B, L), _pool_pad_matrix(B, L),
            _pool_pad_matrix(B, L // 2), _pool_seq_matrix(B, L // 4)]

    # GRU layers: spread weights so both directions run in one combined step.
    def spread(Wt, fwd):
        # Wt: (Cin, 3H) transposed weights with columns [r|z|n]; place each
        # gate block at its interleaved position among the 6H columns.
        out = jnp.zeros((Wt.shape[0], 6 * H), F32)
        off = 0 if fwd else H
        out = out.at[:, off:off + H].set(Wt[:, 0:H])
        out = out.at[:, 2 * H + off:3 * H + off].set(Wt[:, H:2 * H])
        out = out.at[:, 4 * H + off:5 * H + off].set(Wt[:, 2 * H:3 * H])
        return out

    for layer, ((wih_f, whh_f, bih_f, bhh_f),
                (wih_b, whh_b, bih_b, bhh_b)) in enumerate(params["gru"]):
        WF = spread(wih_f.T.astype(F32), True)                  # (Cin, 6H)
        WB = spread(wih_b.T.astype(F32), False)
        if layer == 0:
            A, C = WF, WB
        else:
            # Inputs come from the combined state hs(s)=[h_f(s)|h_b(T-1-s)].
            A = jnp.concatenate([WF[0:H, :], WB[H:2 * H, :]], axis=0)
            C = jnp.concatenate([WB[0:H, :], WF[H:2 * H, :]], axis=0)

        def il(vf, vb):      # (3H,),(3H,) -> (6H,) gate-interleaved
            return jnp.concatenate([vf[0:H], vb[0:H], vf[H:2 * H],
                                    vb[H:2 * H], vf[2 * H:], vb[2 * H:]])

        # Fold b_hr, b_hz into the input bias; keep b_hn separate (r-gated).
        bih_c = (il(bih_f, bih_b)
                 + jnp.concatenate([bhh_f[0:H], bhh_b[0:H],
                                    bhh_f[H:2 * H], bhh_b[H:2 * H],
                                    jnp.zeros((2 * H,), F32)]))
        bhn = jnp.concatenate([bhh_f[2 * H:], bhh_b[2 * H:]]).reshape(1, 2 * H)

        WhhF, WhhB = whh_f.T.astype(F32), whh_b.T.astype(F32)   # (H, 3H)
        whh_blk = jnp.zeros((2 * H, 6 * H), F32)
        whh_blk = whh_blk.at[0:H, 0:H].set(WhhF[:, 0:H])
        whh_blk = whh_blk.at[0:H, 2 * H:3 * H].set(WhhF[:, H:2 * H])
        whh_blk = whh_blk.at[0:H, 4 * H:5 * H].set(WhhF[:, 2 * H:3 * H])
        whh_blk = whh_blk.at[H:2 * H, H:2 * H].set(WhhB[:, 0:H])
        whh_blk = whh_blk.at[H:2 * H, 3 * H:4 * H].set(WhhB[:, H:2 * H])
        whh_blk = whh_blk.at[H:2 * H, 5 * H:6 * H].set(WhhB[:, 2 * H:3 * H])

        ops += [A.astype(F32), C.astype(F32),
                bih_c.reshape(1, 6 * H).astype(F32),
                whh_blk.astype(F32), bhn.astype(F32)]

    # s-linear and d-MLP weights (transposed once).
    ops.append(params["s_w"].T.astype(F32))                     # (2H, 12)
    ops += [w.T.astype(F32) for w in params["d_w"]]             # 24x96,96x64,64x128

    # Head: fold BatchNorm1d(140) into the 140->1 linear, split rows 12/128.
    s, t = _fold_bn(*params["head_bn"])
    wh = params["head_w"].T * s[:, None]                        # (140, 1)
    bh = (t @ params["head_w"].T + params["head_b"]).reshape(1, 1)
    ops += [wh[0:12, :].astype(F32), wh[12:140, :].astype(F32), bh.astype(F32)]

    return tuple(ops)


# --------------------------------------------------------------------------
# Forward wrapper: tiny XLA glue (input transpose + pad) + one pallas_call.
# --------------------------------------------------------------------------
def make_forward(hidden_size, num_layers):
    H, NL = hidden_size, num_layers

    @jax.jit
    def fwd(ops, g, x):
        B = g.shape[0]
        L = g.shape[3]
        assert L % 8 == 0 and L >= 8, "sequence length must survive 3 pools"
        T = L // 8

        # channels-last, zero pad along length, flatten batch into rows.
        g_cl = jnp.transpose(g, (0, 3, 1, 2)).reshape(B, L, 8)
        g_pad = jnp.pad(g_cl, ((0, 0), (1, 1), (0, 0))).reshape(B * (L + 2), 8)

        kernel = functools.partial(_fused_forward_kernel,
                                   B=B, T=T, H=H, num_layers=NL)
        return pl.pallas_call(
            kernel,
            out_shape=jax.ShapeDtypeStruct((B, 1), F32),
        )(g_pad, x, *ops)

    return fwd


# --------------------------------------------------------------------------
# Deterministic parameter init (PyTorch-native shapes).
# --------------------------------------------------------------------------
def init_params(key, hidden_size=32, num_layers=2, num_features=24):
    keys = iter(jax.random.split(key, 128))

    def nrm(shape, sc=0.1):
        return (sc * jax.random.normal(next(keys), shape)).astype(F32)

    def bn(c):
        gamma = (1.0 + 0.1 * jax.random.normal(next(keys), (c,))).astype(F32)
        beta = (0.1 * jax.random.normal(next(keys), (c,))).astype(F32)
        mean = (0.1 * jax.random.normal(next(keys), (c,))).astype(F32)
        var = (1.0 + 0.5 * jax.random.uniform(next(keys), (c,))).astype(F32)
        return (gamma, beta, mean, var)

    H = hidden_size
    params = {
        "hidden_size": H,
        "c1_w": nrm((128, 4, 2, 3)), "c1_b": nrm((128,)), "bn1": bn(128),
        "c2a": (nrm((108, 128, 3)), nrm((108,)), bn(108)),
        "c2b": (nrm((108, 108, 3)), nrm((108,)), bn(108)),
        "c2c": (nrm((128, 108, 3)), nrm((128,)), bn(128)),
        "s_w": nrm((12, 2 * H)),
        "d_w": (nrm((96, num_features)), nrm((64, 96)), nrm((128, 64))),
        "head_bn": bn(140),
        "head_w": nrm((1, 140)), "head_b": nrm((1,)),
    }
    layers = []
    for layer in range(num_layers):
        cin = 128 if layer == 0 else 2 * H
        per_dir = []
        for _ in range(2):  # forward, backward (PyTorch weight shapes)
            per_dir.append((nrm((3 * H, cin)), nrm((3 * H, H)),
                            nrm((3 * H,)), nrm((3 * H,))))
        layers.append(tuple(per_dir))
    params["gru"] = tuple(layers)
    return params


# --------------------------------------------------------------------------
if __name__ == "__main__":
    key = jax.random.PRNGKey(0)
    kp, kg, kx = jax.random.split(key, 3)

    B, L = 2, 32                      # L must be divisible by 8 (3 pools)
    hidden_size, num_layers, num_features = 32, 2, 24

    params = init_params(kp, hidden_size, num_layers, num_features)
    ops = prepare_params(params, L, B)              # one-time prep
    forward = make_forward(hidden_size, num_layers)

    g = jax.random.normal(kg, (B, 4, 2, L), dtype=F32)   # NCHW like PyTorch
    x = jax.random.normal(kx, (B, num_features), dtype=F32)

    out = forward(ops, g, x)
    out = jax.block_until_ready(out)

    assert out.shape == (B, 1), out.shape
    assert bool(jnp.all(jnp.isfinite(out))) and bool(jnp.all(out >= 0.0))
    print("KERNEL_OK")
</pallas_src>

<mosaic_0001>
module attributes {stable_mosaic.version = 11 : i64} {
  func.func @_fused_forward_kernel(%arg0: memref<68x8xf32, #tpu.memory_space<vmem>>, %arg1: memref<2x24xf32, #tpu.memory_space<vmem>>, %arg2: memref<3x8x128xf32, #tpu.memory_space<vmem>>, %arg3: memref<2x128xf32, #tpu.memory_space<vmem>>, %arg4: memref<3x128x128xf32, #tpu.memory_space<vmem>>, %arg5: memref<2x128xf32, #tpu.memory_space<vmem>>, %arg6: memref<3x128x128xf32, #tpu.memory_space<vmem>>, %arg7: memref<2x128xf32, #tpu.memory_space<vmem>>, %arg8: memref<3x128x128xf32, #tpu.memory_space<vmem>>, %arg9: memref<2x128xf32, #tpu.memory_space<vmem>>, %arg10: memref<68x66xf32, #tpu.memory_space<vmem>>, %arg11: memref<36x66xf32, #tpu.memory_space<vmem>>, %arg12: memref<20x34xf32, #tpu.memory_space<vmem>>, %arg13: memref<8x18xf32, #tpu.memory_space<vmem>>, %arg14: memref<128x192xf32, #tpu.memory_space<vmem>>, %arg15: memref<128x192xf32, #tpu.memory_space<vmem>>, %arg16: memref<1x192xf32, #tpu.memory_space<vmem>>, %arg17: memref<64x192xf32, #tpu.memory_space<vmem>>, %arg18: memref<1x64xf32, #tpu.memory_space<vmem>>, %arg19: memref<64x192xf32, #tpu.memory_space<vmem>>, %arg20: memref<64x192xf32, #tpu.memory_space<vmem>>, %arg21: memref<1x192xf32, #tpu.memory_space<vmem>>, %arg22: memref<64x192xf32, #tpu.memory_space<vmem>>, %arg23: memref<1x64xf32, #tpu.memory_space<vmem>>, %arg24: memref<64x12xf32, #tpu.memory_space<vmem>>, %arg25: memref<24x96xf32, #tpu.memory_space<vmem>>, %arg26: memref<96x64xf32, #tpu.memory_space<vmem>>, %arg27: memref<64x128xf32, #tpu.memory_space<vmem>>, %arg28: memref<12x1xf32, #tpu.memory_space<vmem>>, %arg29: memref<128x1xf32, #tpu.memory_space<vmem>>, %arg30: memref<1x1xf32, #tpu.memory_space<vmem>>, %arg31: memref<2x1xf32, #tpu.memory_space<vmem>>) attributes {dimension_semantics = [], scalar_prefetch = 0 : i64, scratch_operands = 0 : i64, tpu.core_type = #tpu.core_type<tc>} {
    %c0 = arith.constant 0 : index
    %c0_0 = arith.constant 0 : index
    %0 = vector.load %arg0[%c0, %c0_0] : memref<68x8xf32, #tpu.memory_space<vmem>>, vector<68x8xf32>
    %1 = vector.extract_strided_slice %0 {offsets = [0, 0], sizes = [66, 8], strides = [1, 1]} : vector<68x8xf32> to vector<66x8xf32>
    %c0_1 = arith.constant 0 : index
    %c0_2 = arith.constant 0 : index
    %c0_3 = arith.constant 0 : index
    %2 = vector.load %arg2[%c0_1, %c0_2, %c0_3] : memref<3x8x128xf32, #tpu.memory_space<vmem>>, vector<1x8x128xf32>
    %3 = vector.shape_cast %2 : vector<1x8x128xf32> to vector<8x128xf32>
    %cst = arith.constant dense<0.000000e+00> : vector<66x128xf32>
    %4 = tpu.matmul %1, %3, %cst {dimension_numbers = #tpu.dot_dimension_numbers<[1], [0], [0], [1], [0, 0, 1, 1], [], []>} : vector<66x8xf32>, vector<8x128xf32>, vector<66x128xf32> -> vector<66x128xf32>
    %5 = vector.extract_strided_slice %0 {offsets = [1, 0], sizes = [66, 8], strides = [1, 1]} : vector<68x8xf32> to vector<66x8xf32>
    %c1 = arith.constant 1 : index
    %c0_4 = arith.constant 0 : index
    %c0_5 = arith.constant 0 : index
    %6 = vector.load %arg2[%c1, %c0_4, %c0_5] : memref<3x8x128xf32, #tpu.memory_space<vmem>>, vector<1x8x128xf32>
    %7 = vector.shape_cast %6 : vector<1x8x128xf32> to vector<8x128xf32>
    %cst_6 = arith.constant dense<0.000000e+00> : vector<66x128xf32>
    %8 = tpu.matmul %5, %7, %cst_6 {dimension_numbers = #tpu.dot_dimension_numbers<[1], [0], [0], [1], [0, 0, 1, 1], [], []>} : vector<66x8xf32>, vector<8x128xf32>, vector<66x128xf32> -> vector<66x128xf32>
    %9 = arith.addf %4, %8 : vector<66x128xf32>
    %10 = vector.extract_strided_slice %0 {offsets = [2, 0], sizes = [66, 8], strides = [1, 1]} : vector<68x8xf32> to vector<66x8xf32>
    %c2 = arith.constant 2 : index
    %c0_7 = arith.constant 0 : index
    %c0_8 = arith.constant 0 : index
    %11 = vector.load %arg2[%c2, %c0_7, %c0_8] : memref<3x8x128xf32, #tpu.memory_space<vmem>>, vector<1x8x128xf32>
    %12 = vector.shape_cast %11 : vector<1x8x128xf32> to vector<8x128xf32>
    %cst_9 = arith.constant dense<0.000000e+00> : vector<66x128xf32>
    %13 = tpu.matmul %10, %12, %cst_9 {dimension_numbers = #tpu.dot_dimension_numbers<[1], [0], [0], [1], [0, 0, 1, 1], [], []>} : vector<66x8xf32>, vector<8x128xf32>, vector<66x128xf32> -> vector<66x128xf32>
    %14 = arith.addf %9, %13 : vector<66x128xf32>
    %c0_10 = arith.constant 0 : index
    %c0_11 = arith.constant 0 : index
    %15 = vector.load %arg3[%c0_10, %c0_11] : memref<2x128xf32, #tpu.memory_space<vmem>>, vector<1x128xf32>
    %16 = vector.broadcast %15 : vector<1x128xf32> to vector<66x128xf32>
    %17 = arith.mulf %14, %16 : vector<66x128xf32>
    %c1_12 = arith.constant 1 : index
    %c0_13 = arith.constant 0 : index
    %18 = vector.load %arg3[%c1_12, %c0_13] : memref<2x128xf32, #tpu.memory_space<vmem>>, vector<1x128xf32>
    %19 = vector.broadcast %18 : vector<1x128xf32> to vector<66x128xf32>
    %20 = arith.addf %17, %19 : vector<66x128xf32>
    %cst_14 = arith.constant 5.000000e-01 : f32
    %21 = vector.broadcast %cst_14 : f32 to vector<66x128xf32>
    %22 = arith.mulf %21, %20 : vector<66x128xf32>
    %cst_15 = arith.constant 4.471500e-02 : f32
    %23 = vector.broadcast %cst_15 : f32 to vector<66x128xf32>
    %24 = arith.mulf %23, %20 : vector<66x128xf32>
    %25 = arith.mulf %24, %20 : vector<66x128xf32>
    %26 = arith.mulf %25, %20 : vector<66x128xf32>
    %27 = arith.addf %20, %26 : vector<66x128xf32>
    %cst_16 = arith.constant 0.797884583 : f32
    %28 = vector.broadcast %cst_16 : f32 to vector<66x128xf32>
    %29 = arith.mulf %28, %27 : vector<66x128xf32>
    %30 = math.tanh %29 : vector<66x128xf32>
    %cst_17 = arith.constant 1.000000e+00 : f32
    %31 = vector.broadcast %cst_17 : f32 to vector<66x128xf32>
    %32 = arith.addf %31, %30 : vector<66x128xf32>
    %33 = arith.mulf %22, %32 : vector<66x128xf32>
    %c0_18 = arith.constant 0 : index
    %c0_19 = arith.constant 0 : index
    %34 = vector.load %arg10[%c0_18, %c0_19] : memref<68x66xf32, #tpu.memory_space<vmem>>, vector<68x66xf32>
    %cst_20 = arith.constant dense<0.000000e+00> : vector<68x128xf32>
    %35 = tpu.matmul %34, %33, %cst_20 {dimension_numbers = #tpu.dot_dimension_numbers<[1], [0], [0], [1], [0, 0, 1, 1], [], []>} : vector<68x66xf32>, vector<66x128xf32>, vector<68x128xf32> -> vector<68x128xf32>
    %36 = vector.extract_strided_slice %35 {offsets = [0, 0], sizes = [66, 128], strides = [1, 1]} : vector<68x128xf32> to vector<66x128xf32>
    %c0_21 = arith.constant 0 : index
    %c0_22 = arith.constant 0 : index
    %c0_23 = arith.constant 0 : index
    %37 = vector.load %arg4[%c0_21, %c0_22, %c0_23] : memref<3x128x128xf32, #tpu.memory_space<vmem>>, vector<1x128x128xf32>
    %38 = vector.shape_cast %37 : vector<1x128x128xf32> to vector<128x128xf32>
    %cst_24 = arith.constant dense<0.000000e+00> : vector<66x128xf32>
    %39 = tpu.matmul %36, %38, %cst_24 {dimension_numbers = #tpu.dot_dimension_numbers<[1], [0], [0], [1], [0, 0, 1, 1], [], []>} : vector<66x128xf32>, vector<128x128xf32>, vector<66x128xf32> -> vector<66x128xf32>
    %40 = vector.extract_strided_slice %35 {offsets = [1, 0], sizes = [66, 128], strides = [1, 1]} : vector<68x128xf32> to vector<66x128xf32>
    %c1_25 = arith.constant 1 : index
    %c0_26 = arith.constant 0 : index
    %c0_27 = arith.constant 0 : index
    %41 = vector.load %arg4[%c1_25, %c0_26, %c0_27] : memref<3x128x128xf32, #tpu.memory_space<vmem>>, vector<1x128x128xf32>
    %42 = vector.shape_cast %41 : vector<1x128x128xf32> to vector<128x128xf32>
    %cst_28 = arith.constant dense<0.000000e+00> : vector<66x128xf32>
    %43 = tpu.matmul %40, %42, %cst_28 {dimension_numbers = #tpu.dot_dimension_numbers<[1], [0], [0], [1], [0, 0, 1, 1], [], []>} : vector<66x128xf32>, vector<128x128xf32>, vector<66x128xf32> -> vector<66x128xf32>
    %44 = arith.addf %39, %43 : vector<66x128xf32>
    %45 = vector.extract_strided_slice %35 {offsets = [2, 0], sizes = [66, 128], strides = [1, 1]} : vector<68x128xf32> to vector<66x128xf32>
    %c2_29 = arith.constant 2 : index
    %c0_30 = arith.constant 0 : index
    %c0_31 = arith.constant 0 : index
    %46 = vector.load %arg4[%c2_29, %c0_30, %c0_31] : memref<3x128x128xf32, #tpu.memory_space<vmem>>, vector<1x128x128xf32>
    %47 = vector.shape_cast %46 : vector<1x128x128xf32> to vector<128x128xf32>
    %cst_32 = arith.constant dense<0.000000e+00> : vector<66x128xf32>
    %48 = tpu.matmul %45, %47, %cst_32 {dimension_numbers = #tpu.dot_dimension_numbers<[1], [0], [0], [1], [0, 0, 1, 1], [], []>} : vector<66x128xf32>, vector<128x128xf32>, vector<66x128xf32> -> vector<66x128xf32>
    %49 = arith.addf %44, %48 : vector<66x128xf32>
    %c0_33 = arith.constant 0 : index
    %c0_34 = arith.constant 0 : index
    %50 = vector.load %arg5[%c0_33, %c0_34] : memref<2x128xf32, #tpu.memory_space<vmem>>, vector<1x128xf32>
    %51 = vector.broadcast %50 : vector<1x128xf32> to vector<66x128xf32>
    %52 = arith.mulf %49, %51 : vector<66x128xf32>
    %c1_35 = arith.constant 1 : index
    %c0_36 = arith.constant 0 : index
    %53 = vector.load %arg5[%c1_35, %c0_36] : memref<2x128xf32, #tpu.memory_space<vmem>>, vector<1x128xf32>
    %54 = vector.broadcast %53 : vector<1x128xf32> to vector<66x128xf32>
    %55 = arith.addf %52, %54 : vector<66x128xf32>
    %cst_37 = arith.constant 5.000000e-01 : f32
    %56 = vector.broadcast %cst_37 : f32 to vector<66x128xf32>
    %57 = arith.mulf %56, %55 : vector<66x128xf32>
    %cst_38 = arith.constant 4.471500e-02 : f32
    %58 = vector.broadcast %cst_38 : f32 to vector<66x128xf32>
    %59 = arith.mulf %58, %55 : vector<66x128xf32>
    %60 = arith.mulf %59, %55 : vector<66x128xf32>
    %61 = arith.mulf %60, %55 : vector<66x128xf32>
    %62 = arith.addf %55, %61 : vector<66x128xf32>
    %cst_39 = arith.constant 0.797884583 : f32
    %63 = vector.broadcast %cst_39 : f32 to vector<66x128xf32>
    %64 = arith.mulf %63, %62 : vector<66x128xf32>
    %65 = math.tanh %64 : vector<66x128xf32>
    %cst_40 = arith.constant 1.000000e+00 : f32
    %66 = vector.broadcast %cst_40 : f32 to vector<66x128xf32>
    %67 = arith.addf %66, %65 : vector<66x128xf32>
    %68 = arith.mulf %57, %67 : vector<66x128xf32>
    %c0_41 = arith.constant 0 : index
    %c0_42 = arith.constant 0 : index
    %69 = vector.load %arg11[%c0_41, %c0_42] : memref<36x66xf32, #tpu.memory_space<vmem>>, vector<36x66xf32>
    %cst_43 = arith.constant dense<0.000000e+00> : vector<36x128xf32>
    %70 = tpu.matmul %69, %68, %cst_43 {dimension_numbers = #tpu.dot_dimension_numbers<[1], [0], [0], [1], [0, 0, 1, 1], [], []>} : vector<36x66xf32>, vector<66x128xf32>, vector<36x128xf32> -> vector<36x128xf32>
    %71 = vector.extract_strided_slice %70 {offsets = [0, 0], sizes = [34, 128], strides = [1, 1]} : vector<36x128xf32> to vector<34x128xf32>
    %c0_44 = arith.constant 0 : index
    %c0_45 = arith.constant 0 : index
    %c0_46 = arith.constant 0 : index
    %72 = vector.load %arg6[%c0_44, %c0_45, %c0_46] : memref<3x128x128xf32, #tpu.memory_space<vmem>>, vector<1x128x128xf32>
    %73 = vector.shape_cast %72 : vector<1x128x128xf32> to vector<128x128xf32>
    %cst_47 = arith.constant dense<0.000000e+00> : vector<34x128xf32>
    %74 = tpu.matmul %71, %73, %cst_47 {dimension_numbers = #tpu.dot_dimension_numbers<[1], [0], [0], [1], [0, 0, 1, 1], [], []>} : vector<34x128xf32>, vector<128x128xf32>, vector<34x128xf32> -> vector<34x128xf32>
    %75 = vector.extract_strided_slice %70 {offsets = [1, 0], sizes = [34, 128], strides = [1, 1]} : vector<36x128xf32> to vector<34x128xf32>
    %c1_48 = arith.constant 1 : index
    %c0_49 = arith.constant 0 : index
    %c0_50 = arith.constant 0 : index
    %76 = vector.load %arg6[%c1_48, %c0_49, %c0_50] : memref<3x128x128xf32, #tpu.memory_space<vmem>>, vector<1x128x128xf32>
    %77 = vector.shape_cast %76 : vector<1x128x128xf32> to vector<128x128xf32>
    %cst_51 = arith.constant dense<0.000000e+00> : vector<34x128xf32>
    %78 = tpu.matmul %75, %77, %cst_51 {dimension_numbers = #tpu.dot_dimension_numbers<[1], [0], [0], [1], [0, 0, 1, 1], [], []>} : vector<34x128xf32>, vector<128x128xf32>, vector<34x128xf32> -> vector<34x128xf32>
    %79 = arith.addf %74, %78 : vector<34x128xf32>
    %80 = vector.extract_strided_slice %70 {offsets = [2, 0], sizes = [34, 128], strides = [1, 1]} : vector<36x128xf32> to vector<34x128xf32>
    %c2_52 = arith.constant 2 : index
    %c0_53 = arith.constant 0 : index
    %c0_54 = arith.constant 0 : index
    %81 = vector.load %arg6[%c2_52, %c0_53, %c0_54] : memref<3x128x128xf32, #tpu.memory_space<vmem>>, vector<1x128x128xf32>
    %82 = vector.shape_cast %81 : vector<1x128x128xf32> to vector<128x128xf32>
    %cst_55 = arith.constant dense<0.000000e+00> : vector<34x128xf32>
    %83 = tpu.matmul %80, %82, %cst_55 {dimension_numbers = #tpu.dot_dimension_numbers<[1], [0], [0], [1], [0, 0, 1, 1], [], []>} : vector<34x128xf32>, vector<128x128xf32>, vector<34x128xf32> -> vector<34x128xf32>
    %84 = arith.addf %79, %83 : vector<34x128xf32>
    %c0_56 = arith.constant 0 : index
    %c0_57 = arith.constant 0 : index
    %85 = vector.load %arg7[%c0_56, %c0_57] : memref<2x128xf32, #tpu.memory_space<vmem>>, vector<1x128xf32>
    %86 = vector.broadcast %85 : vector<1x128xf32> to vector<34x128xf32>
    %87 = arith.mulf %84, %86 : vector<34x128xf32>
    %c1_58 = arith.constant 1 : index
    %c0_59 = arith.constant 0 : index
    %88 = vector.load %arg7[%c1_58, %c0_59] : memref<2x128xf32, #tpu.memory_space<vmem>>, vector<1x128xf32>
    %89 = vector.broadcast %88 : vector<1x128xf32> to vector<34x128xf32>
    %90 = arith.addf %87, %89 : vector<34x128xf32>
    %cst_60 = arith.constant 5.000000e-01 : f32
    %91 = vector.broadcast %cst_60 : f32 to vector<34x128xf32>
    %92 = arith.mulf %91, %90 : vector<34x128xf32>
    %cst_61 = arith.constant 4.471500e-02 : f32
    %93 = vector.broadcast %cst_61 : f32 to vector<34x128xf32>
    %94 = arith.mulf %93, %90 : vector<34x128xf32>
    %95 = arith.mulf %94, %90 : vector<34x128xf32>
    %96 = arith.mulf %95, %90 : vector<34x128xf32>
    %97 = arith.addf %90, %96 : vector<34x128xf32>
    %cst_62 = arith.constant 0.797884583 : f32
    %98 = vector.broadcast %cst_62 : f32 to vector<34x128xf32>
    %99 = arith.mulf %98, %97 : vector<34x128xf32>
    %100 = math.tanh %99 : vector<34x128xf32>
    %cst_63 = arith.constant 1.000000e+00 : f32
    %101 = vector.broadcast %cst_63 : f32 to vector<34x128xf32>
    %102 = arith.addf %101, %100 : vector<34x128xf32>
    %103 = arith.mulf %92, %102 : vector<34x128xf32>
    %c0_64 = arith.constant 0 : index
    %c0_65 = arith.constant 0 : index
    %104 = vector.load %arg12[%c0_64, %c0_65] : memref<20x34xf32, #tpu.memory_space<vmem>>, vector<20x34xf32>
    %cst_66 = arith.constant dense<0.000000e+00> : vector<20x128xf32>
    %105 = tpu.matmul %104, %103, %cst_66 {dimension_numbers = #tpu.dot_dimension_numbers<[1], [0], [0], [1], [0, 0, 1, 1], [], []>} : vector<20x34xf32>, vector<34x128xf32>, vector<20x128xf32> -> vector<20x128xf32>
    %106 = vector.extract_strided_slice %105 {offsets = [0, 0], sizes = [18, 128], strides = [1, 1]} : vector<20x128xf32> to vector<18x128xf32>
    %c0_67 = arith.constant 0 : index
    %c0_68 = arith.constant 0 : index
    %c0_69 = arith.constant 0 : index
    %107 = vector.load %arg8[%c0_67, %c0_68, %c0_69] : memref<3x128x128xf32, #tpu.memory_space<vmem>>, vector<1x128x128xf32>
    %108 = vector.shape_cast %107 : vector<1x128x128xf32> to vector<128x128xf32>
    %cst_70 = arith.constant dense<0.000000e+00> : vector<18x128xf32>
    %109 = tpu.matmul %106, %108, %cst_70 {dimension_numbers = #tpu.dot_dimension_numbers<[1], [0], [0], [1], [0, 0, 1, 1], [], []>} : vector<18x128xf32>, vector<128x128xf32>, vector<18x128xf32> -> vector<18x128xf32>
    %110 = vector.extract_strided_slice %105 {offsets = [1, 0], sizes = [18, 128], strides = [1, 1]} : vector<20x128xf32> to vector<18x128xf32>
    %c1_71 = arith.constant 1 : index
    %c0_72 = arith.constant 0 : index
    %c0_73 = arith.constant 0 : index
    %111 = vector.load %arg8[%c1_71, %c0_72, %c0_73] : memref<3x128x128xf32, #tpu.memory_space<vmem>>, vector<1x128x128xf32>
    %112 = vector.shape_cast %111 : vector<1x128x128xf32> to vector<128x128xf32>
    %cst_74 = arith.constant dense<0.000000e+00> : vector<18x128xf32>
    %113 = tpu.matmul %110, %112, %cst_74 {dimension_numbers = #tpu.dot_dimension_numbers<[1], [0], [0], [1], [0, 0, 1, 1], [], []>} : vector<18x128xf32>, vector<128x128xf32>, vector<18x128xf32> -> vector<18x128xf32>
    %114 = arith.addf %109, %113 : vector<18x128xf32>
    %115 = vector.extract_strided_slice %105 {offsets = [2, 0], sizes = [18, 128], strides = [1, 1]} : vector<20x128xf32> to vector<18x128xf32>
    %c2_75 = arith.constant 2 : index
    %c0_76 = arith.constant 0 : index
    %c0_77 = arith.constant 0 : index
    %116 = vector.load %arg8[%c2_75, %c0_76, %c0_77] : memref<3x128x128xf32, #tpu.memory_space<vmem>>, vector<1x128x128xf32>
    %117 = vector.shape_cast %116 : vector<1x128x128xf32> to vector<128x128xf32>
    %cst_78 = arith.constant dense<0.000000e+00> : vector<18x128xf32>
    %118 = tpu.matmul %115, %117, %cst_78 {dimension_numbers = #tpu.dot_dimension_numbers<[1], [0], [0], [1], [0, 0, 1, 1], [], []>} : vector<18x128xf32>, vector<128x128xf32>, vector<18x128xf32> -> vector<18x128xf32>
    %119 = arith.addf %114, %118 : vector<18x128xf32>
    %c0_79 = arith.constant 0 : index
    %c0_80 = arith.constant 0 : index
    %120 = vector.load %arg9[%c0_79, %c0_80] : memref<2x128xf32, #tpu.memory_space<vmem>>, vector<1x128xf32>
    %121 = vector.broadcast %120 : vector<1x128xf32> to vector<18x128xf32>
    %122 = arith.mulf %119, %121 : vector<18x128xf32>
    %c1_81 = arith.constant 1 : index
    %c0_82 = arith.constant 0 : index
    %123 = vector.load %arg9[%c1_81, %c0_82] : memref<2x128xf32, #tpu.memory_space<vmem>>, vector<1x128xf32>
    %124 = vector.broadcast %123 : vector<1x128xf32> to vector<18x128xf32>
    %125 = arith.addf %122, %124 : vector<18x128xf32>
    %cst_83 = arith.constant 5.000000e-01 : f32
    %126 = vector.broadcast %cst_83 : f32 to vector<18x128xf32>
    %127 = arith.mulf %126, %125 : vector<18x128xf32>
    %cst_84 = arith.constant 4.471500e-02 : f32
    %128 = vector.broadcast %cst_84 : f32 to vector<18x128xf32>
    %129 = arith.mulf %128, %125 : vector<18x128xf32>
    %130 = arith.mulf %129, %125 : vector<18x128xf32>
    %131 = arith.mulf %130, %125 : vector<18x128xf32>
    %132 = arith.addf %125, %131 : vector<18x128xf32>
    %cst_85 = arith.constant 0.797884583 : f32
    %133 = vector.broadcast %cst_85 : f32 to vector<18x128xf32>
    %134 = arith.mulf %133, %132 : vector<18x128xf32>
    %135 = math.tanh %134 : vector<18x128xf32>
    %cst_86 = arith.constant 1.000000e+00 : f32
    %136 = vector.broadcast %cst_86 : f32 to vector<18x128xf32>
    %137 = arith.addf %136, %135 : vector<18x128xf32>
    %138 = arith.mulf %127, %137 : vector<18x128xf32>
    %c0_87 = arith.constant 0 : index
    %c0_88 = arith.constant 0 : index
    %139 = vector.load %arg13[%c0_87, %c0_88] : memref<8x18xf32, #tpu.memory_space<vmem>>, vector<8x18xf32>
    %cst_89 = arith.constant dense<0.000000e+00> : vector<8x128xf32>
    %140 = tpu.matmul %139, %138, %cst_89 {dimension_numbers = #tpu.dot_dimension_numbers<[1], [0], [0], [1], [0, 0, 1, 1], [], []>} : vector<8x18xf32>, vector<18x128xf32>, vector<8x128xf32> -> vector<8x128xf32>
    %c0_90 = arith.constant 0 : index
    %c0_91 = arith.constant 0 : index
    %141 = vector.load %arg14[%c0_90, %c0_91] : memref<128x192xf32, #tpu.memory_space<vmem>>, vector<128x192xf32>
    %cst_92 = arith.constant dense<0.000000e+00> : vector<8x192xf32>
    %142 = tpu.matmul %140, %141, %cst_92 {dimension_numbers = #tpu.dot_dimension_numbers<[1], [0], [0], [1], [0, 0, 1, 1], [], []>} : vector<8x128xf32>, vector<128x192xf32>, vector<8x192xf32> -> vector<8x192xf32>
    %c0_93 = arith.constant 0 : index
    %c0_94 = arith.constant 0 : index
    %143 = vector.load %arg16[%c0_93, %c0_94] : memref<1x192xf32, #tpu.memory_space<vmem>>, vector<1x192xf32>
    %144 = vector.broadcast %143 : vector<1x192xf32> to vector<8x192xf32>
    %145 = arith.addf %142, %144 : vector<8x192xf32>
    %c0_95 = arith.constant 0 : index
    %c0_96 = arith.constant 0 : index
    %146 = vector.load %arg15[%c0_95, %c0_96] : memref<128x192xf32, #tpu.memory_space<vmem>>, vector<128x192xf32>
    %cst_97 = arith.constant dense<0.000000e+00> : vector<8x192xf32>
    %147 = tpu.matmul %140, %146, %cst_97 {dimension_numbers = #tpu.dot_dimension_numbers<[1], [0], [0], [1], [0, 0, 1, 1], [], []>} : vector<8x128xf32>, vector<128x192xf32>, vector<8x192xf32> -> vector<8x192xf32>
    %c0_98 = arith.constant 0 : index
    %c0_99 = arith.constant 0 : index
    %148 = vector.load %arg17[%c0_98, %c0_99] : memref<64x192xf32, #tpu.memory_space<vmem>>, vector<64x192xf32>
    %c0_100 = arith.constant 0 : index
    %c0_101 = arith.constant 0 : index
    %149 = vector.load %arg18[%c0_100, %c0_101] : memref<1x64xf32, #tpu.memory_space<vmem>>, vector<1x64xf32>
    %150 = vector.shape_cast %149 : vector<1x64xf32> to vector<1x64xf32>
    %151 = vector.broadcast %150 : vector<1x64xf32> to vector<2x64xf32>
    %cst_102 = arith.constant 0.000000e+00 : f32
    %152 = vector.broadcast %cst_102 : f32 to vector<2x64xf32>
    %153 = vector.extract_strided_slice %145 {offsets = [0, 0], sizes = [2, 192], strides = [1, 1]} : vector<8x192xf32> to vector<2x192xf32>
    %154 = vector.extract_strided_slice %147 {offsets = [6, 0], sizes = [2, 192], strides = [1, 1]} : vector<8x192xf32> to vector<2x192xf32>
    %155 = arith.addf %153, %154 : vector<2x192xf32>
    %cst_103 = arith.constant dense<0.000000e+00> : vector<2x192xf32>
    %156 = tpu.matmul %152, %148, %cst_103 {dimension_numbers = #tpu.dot_dimension_numbers<[1], [0], [0], [1], [0, 0, 1, 1], [], []>} : vector<2x64xf32>, vector<64x192xf32>, vector<2x192xf32> -> vector<2x192xf32>
    %157 = vector.extract_strided_slice %155 {offsets = [0, 0], sizes = [2, 128], strides = [1, 1]} : vector<2x192xf32> to vector<2x128xf32>
    %158 = vector.extract_strided_slice %156 {offsets = [0, 0], sizes = [2, 128], strides = [1, 1]} : vector<2x192xf32> to vector<2x128xf32>
    %159 = arith.addf %157, %158 : vector<2x128xf32>
    %cst_104 = arith.constant 0.000000e+00 : f32
    %160 = vector.broadcast %cst_104 : f32 to vector<2x128xf32>
    %161 = arith.subf %160, %159 : vector<2x128xf32>
    %162 = math.exp %161 : vector<2x128xf32>
    %cst_105 = arith.constant 1.000000e+00 : f32
    %163 = vector.broadcast %cst_105 : f32 to vector<2x128xf32>
    %164 = arith.addf %163, %162 : vector<2x128xf32>
    %cst_106 = arith.constant 1.000000e+00 : f32
    %165 = vector.broadcast %cst_106 : f32 to vector<2x128xf32>
    %166 = arith.divf %165, %164 : vector<2x128xf32>
    %167 = vector.extract_strided_slice %166 {offsets = [0, 0], sizes = [2, 64], strides = [1, 1]} : vector<2x128xf32> to vector<2x64xf32>
    %168 = vector.extract_strided_slice %166 {offsets = [0, 64], sizes = [2, 64], strides = [1, 1]} : vector<2x128xf32> to vector<2x64xf32>
    %169 = vector.extract_strided_slice %155 {offsets = [0, 128], sizes = [2, 64], strides = [1, 1]} : vector<2x192xf32> to vector<2x64xf32>
    %170 = vector.extract_strided_slice %156 {offsets = [0, 128], sizes = [2, 64], strides = [1, 1]} : vector<2x192xf32> to vector<2x64xf32>
    %171 = arith.addf %170, %151 : vector<2x64xf32>
    %172 = arith.mulf %167, %171 : vector<2x64xf32>
    %173 = arith.addf %169, %172 : vector<2x64xf32>
    %174 = math.tanh %173 : vector<2x64xf32>
    %175 = arith.subf %152, %174 : vector<2x64xf32>
    %176 = arith.mulf %168, %175 : vector<2x64xf32>
    %177 = arith.addf %174, %176 : vector<2x64xf32>
    %178 = vector.extract_strided_slice %145 {offsets = [2, 0], sizes = [2, 192], strides = [1, 1]} : vector<8x192xf32> to vector<2x192xf32>
    %179 = vector.extract_strided_slice %147 {offsets = [4, 0], sizes = [2, 192], strides = [1, 1]} : vector<8x192xf32> to vector<2x192xf32>
    %180 = arith.addf %178, %179 : vector<2x192xf32>
    %cst_107 = arith.constant dense<0.000000e+00> : vector<2x192xf32>
    %181 = tpu.matmul %177, %148, %cst_107 {dimension_numbers = #tpu.dot_dimension_numbers<[1], [0], [0], [1], [0, 0, 1, 1], [], []>} : vector<2x64xf32>, vector<64x192xf32>, vector<2x192xf32> -> vector<2x192xf32>
    %182 = vector.extract_strided_slice %180 {offsets = [0, 0], sizes = [2, 128], strides = [1, 1]} : vector<2x192xf32> to vector<2x128xf32>
    %183 = vector.extract_strided_slice %181 {offsets = [0, 0], sizes = [2, 128], strides = [1, 1]} : vector<2x192xf32> to vector<2x128xf32>
    %184 = arith.addf %182, %183 : vector<2x128xf32>
    %cst_108 = arith.constant 0.000000e+00 : f32
    %185 = vector.broadcast %cst_108 : f32 to vector<2x128xf32>
    %186 = arith.subf %185, %184 : vector<2x128xf32>
    %187 = math.exp %186 : vector<2x128xf32>
    %cst_109 = arith.constant 1.000000e+00 : f32
    %188 = vector.broadcast %cst_109 : f32 to vector<2x128xf32>
    %189 = arith.addf %188, %187 : vector<2x128xf32>
    %cst_110 = arith.constant 1.000000e+00 : f32
    %190 = vector.broadcast %cst_110 : f32 to vector<2x128xf32>
    %191 = arith.divf %190, %189 : vector<2x128xf32>
    %192 = vector.extract_strided_slice %191 {offsets = [0, 0], sizes = [2, 64], strides = [1, 1]} : vector<2x128xf32> to vector<2x64xf32>
    %193 = vector.extract_strided_slice %191 {offsets = [0, 64], sizes = [2, 64], strides = [1, 1]} : vector<2x128xf32> to vector<2x64xf32>
    %194 = vector.extract_strided_slice %180 {offsets = [0, 128], sizes = [2, 64], strides = [1, 1]} : vector<2x192xf32> to vector<2x64xf32>
    %195 = vector.extract_strided_slice %181 {offsets = [0, 128], sizes = [2, 64], strides = [1, 1]} : vector<2x192xf32> to vector<2x64xf32>
    %196 = arith.addf %195, %151 : vector<2x64xf32>
    %197 = arith.mulf %192, %196 : vector<2x64xf32>
    %198 = arith.addf %194, %197 : vector<2x64xf32>
    %199 = math.tanh %198 : vector<2x64xf32>
    %200 = arith.subf %177, %199 : vector<2x64xf32>
    %201 = arith.mulf %193, %200 : vector<2x64xf32>
    %202 = arith.addf %199, %201 : vector<2x64xf32>
    %203 = vector.extract_strided_slice %145 {offsets = [4, 0], sizes = [2, 192], strides = [1, 1]} : vector<8x192xf32> to vector<2x192xf32>
    %204 = vector.extract_strided_slice %147 {offsets = [2, 0], sizes = [2, 192], strides = [1, 1]} : vector<8x192xf32> to vector<2x192xf32>
    %205 = arith.addf %203, %204 : vector<2x192xf32>
    %cst_111 = arith.constant dense<0.000000e+00> : vector<2x192xf32>
    %206 = tpu.matmul %202, %148, %cst_111 {dimension_numbers = #tpu.dot_dimension_numbers<[1], [0], [0], [1], [0, 0, 1, 1], [], []>} : vector<2x64xf32>, vector<64x192xf32>, vector<2x192xf32> -> vector<2x192xf32>
    %207 = vector.extract_strided_slice %205 {offsets = [0, 0], sizes = [2, 128], strides = [1, 1]} : vector<2x192xf32> to vector<2x128xf32>
    %208 = vector.extract_strided_slice %206 {offsets = [0, 0], sizes = [2, 128], strides = [1, 1]} : vector<2x192xf32> to vector<2x128xf32>
    %209 = arith.addf %207, %208 : vector<2x128xf32>
    %cst_112 = arith.constant 0.000000e+00 : f32
    %210 = vector.broadcast %cst_112 : f32 to vector<2x128xf32>
    %211 = arith.subf %210, %209 : vector<2x128xf32>
    %212 = math.exp %211 : vector<2x128xf32>
    %cst_113 = arith.constant 1.000000e+00 : f32
    %213 = vector.broadcast %cst_113 : f32 to vector<2x128xf32>
    %214 = arith.addf %213, %212 : vector<2x128xf32>
    %cst_114 = arith.constant 1.000000e+00 : f32
    %215 = vector.broadcast %cst_114 : f32 to vector<2x128xf32>
    %216 = arith.divf %215, %214 : vector<2x128xf32>
    %217 = vector.extract_strided_slice %216 {offsets = [0, 0], sizes = [2, 64], strides = [1, 1]} : vector<2x128xf32> to vector<2x64xf32>
    %218 = vector.extract_strided_slice %216 {offsets = [0, 64], sizes = [2, 64], strides = [1, 1]} : vector<2x128xf32> to vector<2x64xf32>
    %219 = vector.extract_strided_slice %205 {offsets = [0, 128], sizes = [2, 64], strides = [1, 1]} : vector<2x192xf32> to vector<2x64xf32>
    %220 = vector.extract_strided_slice %206 {offsets = [0, 128], sizes = [2, 64], strides = [1, 1]} : vector<2x192xf32> to vector<2x64xf32>
    %221 = arith.addf %220, %151 : vector<2x64xf32>
    %222 = arith.mulf %217, %221 : vector<2x64xf32>
    %223 = arith.addf %219, %222 : vector<2x64xf32>
    %224 = math.tanh %223 : vector<2x64xf32>
    %225 = arith.subf %202, %224 : vector<2x64xf32>
    %226 = arith.mulf %218, %225 : vector<2x64xf32>
    %227 = arith.addf %224, %226 : vector<2x64xf32>
    %228 = vector.extract_strided_slice %145 {offsets = [6, 0], sizes = [2, 192], strides = [1, 1]} : vector<8x192xf32> to vector<2x192xf32>
    %229 = vector.extract_strided_slice %147 {offsets = [0, 0], sizes = [2, 192], strides = [1, 1]} : vector<8x192xf32> to vector<2x192xf32>
    %230 = arith.addf %228, %229 : vector<2x192xf32>
    %cst_115 = arith.constant dense<0.000000e+00> : vector<2x192xf32>
    %231 = tpu.matmul %227, %148, %cst_115 {dimension_numbers = #tpu.dot_dimension_numbers<[1], [0], [0], [1], [0, 0, 1, 1], [], []>} : vector<2x64xf32>, vector<64x192xf32>, vector<2x192xf32> -> vector<2x192xf32>
    %232 = vector.extract_strided_slice %230 {offsets = [0, 0], sizes = [2, 128], strides = [1, 1]} : vector<2x192xf32> to vector<2x128xf32>
    %233 = vector.extract_strided_slice %231 {offsets = [0, 0], sizes = [2, 128], strides = [1, 1]} : vector<2x192xf32> to vector<2x128xf32>
    %234 = arith.addf %232, %233 : vector<2x128xf32>
    %cst_116 = arith.constant 0.000000e+00 : f32
    %235 = vector.broadcast %cst_116 : f32 to vector<2x128xf32>
    %236 = arith.subf %235, %234 : vector<2x128xf32>
    %237 = math.exp %236 : vector<2x128xf32>
    %cst_117 = arith.constant 1.000000e+00 : f32
    %238 = vector.broadcast %cst_117 : f32 to vector<2x128xf32>
    %239 = arith.addf %238, %237 : vector<2x128xf32>
    %cst_118 = arith.constant 1.000000e+00 : f32
    %240 = vector.broadcast %cst_118 : f32 to vector<2x128xf32>
    %241 = arith.divf %240, %239 : vector<2x128xf32>
    %242 = vector.extract_strided_slice %241 {offsets = [0, 0], sizes = [2, 64], strides = [1, 1]} : vector<2x128xf32> to vector<2x64xf32>
    %243 = vector.extract_strided_slice %241 {offsets = [0, 64], sizes = [2, 64], strides = [1, 1]} : vector<2x128xf32> to vector<2x64xf32>
    %244 = vector.extract_strided_slice %230 {offsets = [0, 128], sizes = [2, 64], strides = [1, 1]} : vector<2x192xf32> to vector<2x64xf32>
    %245 = vector.extract_strided_slice %231 {offsets = [0, 128], sizes = [2, 64], strides = [1, 1]} : vector<2x192xf32> to vector<2x64xf32>
    %246 = arith.addf %245, %151 : vector<2x64xf32>
    %247 = arith.mulf %242, %246 : vector<2x64xf32>
    %248 = arith.addf %244, %247 : vector<2x64xf32>
    %249 = math.tanh %248 : vector<2x64xf32>
    %250 = arith.subf %227, %249 : vector<2x64xf32>
    %251 = arith.mulf %243, %250 : vector<2x64xf32>
    %252 = arith.addf %249, %251 : vector<2x64xf32>
    %253 = tpu.concatenate %177, %202, %227, %252 in 0 : vector<2x64xf32>, vector<2x64xf32>, vector<2x64xf32>, vector<2x64xf32> -> vector<8x64xf32>
    %c0_119 = arith.constant 0 : index
    %c0_120 = arith.constant 0 : index
    %254 = vector.load %arg19[%c0_119, %c0_120] : memref<64x192xf32, #tpu.memory_space<vmem>>, vector<64x192xf32>
    %cst_121 = arith.constant dense<0.000000e+00> : vector<8x192xf32>
    %255 = tpu.matmul %253, %254, %cst_121 {dimension_numbers = #tpu.dot_dimension_numbers<[1], [0], [0], [1], [0, 0, 1, 1], [], []>} : vector<8x64xf32>, vector<64x192xf32>, vector<8x192xf32> -> vector<8x192xf32>
    %c0_122 = arith.constant 0 : index
    %c0_123 = arith.constant 0 : index
    %256 = vector.load %arg21[%c0_122, %c0_123] : memref<1x192xf32, #tpu.memory_space<vmem>>, vector<1x192xf32>
    %257 = vector.broadcast %256 : vector<1x192xf32> to vector<8x192xf32>
    %258 = arith.addf %255, %257 : vector<8x192xf32>
    %c0_124 = arith.constant 0 : index
    %c0_125 = arith.constant 0 : index
    %259 = vector.load %arg20[%c0_124, %c0_125] : memref<64x192xf32, #tpu.memory_space<vmem>>, vector<64x192xf32>
    %cst_126 = arith.constant dense<0.000000e+00> : vector<8x192xf32>
    %260 = tpu.matmul %253, %259, %cst_126 {dimension_numbers = #tpu.dot_dimension_numbers<[1], [0], [0], [1], [0, 0, 1, 1], [], []>} : vector<8x64xf32>, vector<64x192xf32>, vector<8x192xf32> -> vector<8x192xf32>
    %c0_127 = arith.constant 0 : index
    %c0_128 = arith.constant 0 : index
    %261 = vector.load %arg22[%c0_127, %c0_128] : memref<64x192xf32, #tpu.memory_space<vmem>>, vector<64x192xf32>
    %c0_129 = arith.constant 0 : index
    %c0_130 = arith.constant 0 : index
    %262 = vector.load %arg23[%c0_129, %c0_130] : memref<1x64xf32, #tpu.memory_space<vmem>>, vector<1x64xf32>
    %263 = vector.shape_cast %262 : vector<1x64xf32> to vector<1x64xf32>
    %264 = vector.broadcast %263 : vector<1x64xf32> to vector<2x64xf32>
    %cst_131 = arith.constant 0.000000e+00 : f32
    %265 = vector.broadcast %cst_131 : f32 to vector<2x64xf32>
    %266 = vector.extract_strided_slice %258 {offsets = [0, 0], sizes = [2, 192], strides = [1, 1]} : vector<8x192xf32> to vector<2x192xf32>
    %267 = vector.extract_strided_slice %260 {offsets = [6, 0], sizes = [2, 192], strides = [1, 1]} : vector<8x192xf32> to vector<2x192xf32>
    %268 = arith.addf %266, %267 : vector<2x192xf32>
    %cst_132 = arith.constant dense<0.000000e+00> : vector<2x192xf32>
    %269 = tpu.matmul %265, %261, %cst_132 {dimension_numbers = #tpu.dot_dimension_numbers<[1], [0], [0], [1], [0, 0, 1, 1], [], []>} : vector<2x64xf32>, vector<64x192xf32>, vector<2x192xf32> -> vector<2x192xf32>
    %270 = vector.extract_strided_slice %268 {offsets = [0, 0], sizes = [2, 128], strides = [1, 1]} : vector<2x192xf32> to vector<2x128xf32>
    %271 = vector.extract_strided_slice %269 {offsets = [0, 0], sizes = [2, 128], strides = [1, 1]} : vector<2x192xf32> to vector<2x128xf32>
    %272 = arith.addf %270, %271 : vector<2x128xf32>
    %cst_133 = arith.constant 0.000000e+00 : f32
    %273 = vector.broadcast %cst_133 : f32 to vector<2x128xf32>
    %274 = arith.subf %273, %272 : vector<2x128xf32>
    %275 = math.exp %274 : vector<2x128xf32>
    %cst_134 = arith.constant 1.000000e+00 : f32
    %276 = vector.broadcast %cst_134 : f32 to vector<2x128xf32>
    %277 = arith.addf %276, %275 : vector<2x128xf32>
    %cst_135 = arith.constant 1.000000e+00 : f32
    %278 = vector.broadcast %cst_135 : f32 to vector<2x128xf32>
    %279 = arith.divf %278, %277 : vector<2x128xf32>
    %280 = vector.extract_strided_slice %279 {offsets = [0, 0], sizes = [2, 64], strides = [1, 1]} : vector<2x128xf32> to vector<2x64xf32>
    %281 = vector.extract_strided_slice %279 {offsets = [0, 64], sizes = [2, 64], strides = [1, 1]} : vector<2x128xf32> to vector<2x64xf32>
    %282 = vector.extract_strided_slice %268 {offsets = [0, 128], sizes = [2, 64], strides = [1, 1]} : vector<2x192xf32> to vector<2x64xf32>
    %283 = vector.extract_strided_slice %269 {offsets = [0, 128], sizes = [2, 64], strides = [1, 1]} : vector<2x192xf32> to vector<2x64xf32>
    %284 = arith.addf %283, %264 : vector<2x64xf32>
    %285 = arith.mulf %280, %284 : vector<2x64xf32>
    %286 = arith.addf %282, %285 : vector<2x64xf32>
    %287 = math.tanh %286 : vector<2x64xf32>
    %288 = arith.subf %265, %287 : vector<2x64xf32>
    %289 = arith.mulf %281, %288 : vector<2x64xf32>
    %290 = arith.addf %287, %289 : vector<2x64xf32>
    %291 = vector.extract_strided_slice %258 {offsets = [2, 0], sizes = [2, 192], strides = [1, 1]} : vector<8x192xf32> to vector<2x192xf32>
    %292 = vector.extract_strided_slice %260 {offsets = [4, 0], sizes = [2, 192], strides = [1, 1]} : vector<8x192xf32> to vector<2x192xf32>
    %293 = arith.addf %291, %292 : vector<2x192xf32>
    %cst_136 = arith.constant dense<0.000000e+00> : vector<2x192xf32>
    %294 = tpu.matmul %290, %261, %cst_136 {dimension_numbers = #tpu.dot_dimension_numbers<[1], [0], [0], [1], [0, 0, 1, 1], [], []>} : vector<2x64xf32>, vector<64x192xf32>, vector<2x192xf32> -> vector<2x192xf32>
    %295 = vector.extract_strided_slice %293 {offsets = [0, 0], sizes = [2, 128], strides = [1, 1]} : vector<2x192xf32> to vector<2x128xf32>
    %296 = vector.extract_strided_slice %294 {offsets = [0, 0], sizes = [2, 128], strides = [1, 1]} : vector<2x192xf32> to vector<2x128xf32>
    %297 = arith.addf %295, %296 : vector<2x128xf32>
    %cst_137 = arith.constant 0.000000e+00 : f32
    %298 = vector.broadcast %cst_137 : f32 to vector<2x128xf32>
    %299 = arith.subf %298, %297 : vector<2x128xf32>
    %300 = math.exp %299 : vector<2x128xf32>
    %cst_138 = arith.constant 1.000000e+00 : f32
    %301 = vector.broadcast %cst_138 : f32 to vector<2x128xf32>
    %302 = arith.addf %301, %300 : vector<2x128xf32>
    %cst_139 = arith.constant 1.000000e+00 : f32
    %303 = vector.broadcast %cst_139 : f32 to vector<2x128xf32>
    %304 = arith.divf %303, %302 : vector<2x128xf32>
    %305 = vector.extract_strided_slice %304 {offsets = [0, 0], sizes = [2, 64], strides = [1, 1]} : vector<2x128xf32> to vector<2x64xf32>
    %306 = vector.extract_strided_slice %304 {offsets = [0, 64], sizes = [2, 64], strides = [1, 1]} : vector<2x128xf32> to vector<2x64xf32>
    %307 = vector.extract_strided_slice %293 {offsets = [0, 128], sizes = [2, 64], strides = [1, 1]} : vector<2x192xf32> to vector<2x64xf32>
    %308 = vector.extract_strided_slice %294 {offsets = [0, 128], sizes = [2, 64], strides = [1, 1]} : vector<2x192xf32> to vector<2x64xf32>
    %309 = arith.addf %308, %264 : vector<2x64xf32>
    %310 = arith.mulf %305, %309 : vector<2x64xf32>
    %311 = arith.addf %307, %310 : vector<2x64xf32>
    %312 = math.tanh %311 : vector<2x64xf32>
    %313 = arith.subf %290, %312 : vector<2x64xf32>
    %314 = arith.mulf %306, %313 : vector<2x64xf32>
    %315 = arith.addf %312, %314 : vector<2x64xf32>
    %316 = vector.extract_strided_slice %258 {offsets = [4, 0], sizes = [2, 192], strides = [1, 1]} : vector<8x192xf32> to vector<2x192xf32>
    %317 = vector.extract_strided_slice %260 {offsets = [2, 0], sizes = [2, 192], strides = [1, 1]} : vector<8x192xf32> to vector<2x192xf32>
    %318 = arith.addf %316, %317 : vector<2x192xf32>
    %cst_140 = arith.constant dense<0.000000e+00> : vector<2x192xf32>
    %319 = tpu.matmul %315, %261, %cst_140 {dimension_numbers = #tpu.dot_dimension_numbers<[1], [0], [0], [1], [0, 0, 1, 1], [], []>} : vector<2x64xf32>, vector<64x192xf32>, vector<2x192xf32> -> vector<2x192xf32>
    %320 = vector.extract_strided_slice %318 {offsets = [0, 0], sizes = [2, 128], strides = [1, 1]} : vector<2x192xf32> to vector<2x128xf32>
    %321 = vector.extract_strided_slice %319 {offsets = [0, 0], sizes = [2, 128], strides = [1, 1]} : vector<2x192xf32> to vector<2x128xf32>
    %322 = arith.addf %320, %321 : vector<2x128xf32>
    %cst_141 = arith.constant 0.000000e+00 : f32
    %323 = vector.broadcast %cst_141 : f32 to vector<2x128xf32>
    %324 = arith.subf %323, %322 : vector<2x128xf32>
    %325 = math.exp %324 : vector<2x128xf32>
    %cst_142 = arith.constant 1.000000e+00 : f32
    %326 = vector.broadcast %cst_142 : f32 to vector<2x128xf32>
    %327 = arith.addf %326, %325 : vector<2x128xf32>
    %cst_143 = arith.constant 1.000000e+00 : f32
    %328 = vector.broadcast %cst_143 : f32 to vector<2x128xf32>
    %329 = arith.divf %328, %327 : vector<2x128xf32>
    %330 = vector.extract_strided_slice %329 {offsets = [0, 0], sizes = [2, 64], strides = [1, 1]} : vector<2x128xf32> to vector<2x64xf32>
    %331 = vector.extract_strided_slice %329 {offsets = [0, 64], sizes = [2, 64], strides = [1, 1]} : vector<2x128xf32> to vector<2x64xf32>
    %332 = vector.extract_strided_slice %318 {offsets = [0, 128], sizes = [2, 64], strides = [1, 1]} : vector<2x192xf32> to vector<2x64xf32>
    %333 = vector.extract_strided_slice %319 {offsets = [0, 128], sizes = [2, 64], strides = [1, 1]} : vector<2x192xf32> to vector<2x64xf32>
    %334 = arith.addf %333, %264 : vector<2x64xf32>
    %335 = arith.mulf %330, %334 : vector<2x64xf32>
    %336 = arith.addf %332, %335 : vector<2x64xf32>
    %337 = math.tanh %336 : vector<2x64xf32>
    %338 = arith.subf %315, %337 : vector<2x64xf32>
    %339 = arith.mulf %331, %338 : vector<2x64xf32>
    %340 = arith.addf %337, %339 : vector<2x64xf32>
    %341 = vector.extract_strided_slice %258 {offsets = [6, 0], sizes = [2, 192], strides = [1, 1]} : vector<8x192xf32> to vector<2x192xf32>
    %342 = vector.extract_strided_slice %260 {offsets = [0, 0], sizes = [2, 192], strides = [1, 1]} : vector<8x192xf32> to vector<2x192xf32>
    %343 = arith.addf %341, %342 : vector<2x192xf32>
    %cst_144 = arith.constant dense<0.000000e+00> : vector<2x192xf32>
    %344 = tpu.matmul %340, %261, %cst_144 {dimension_numbers = #tpu.dot_dimension_numbers<[1], [0], [0], [1], [0, 0, 1, 1], [], []>} : vector<2x64xf32>, vector<64x192xf32>, vector<2x192xf32> -> vector<2x192xf32>
    %345 = vector.extract_strided_slice %343 {offsets = [0, 0], sizes = [2, 128], strides = [1, 1]} : vector<2x192xf32> to vector<2x128xf32>
    %346 = vector.extract_strided_slice %344 {offsets = [0, 0], sizes = [2, 128], strides = [1, 1]} : vector<2x192xf32> to vector<2x128xf32>
    %347 = arith.addf %345, %346 : vector<2x128xf32>
    %cst_145 = arith.constant 0.000000e+00 : f32
    %348 = vector.broadcast %cst_145 : f32 to vector<2x128xf32>
    %349 = arith.subf %348, %347 : vector<2x128xf32>
    %350 = math.exp %349 : vector<2x128xf32>
    %cst_146 = arith.constant 1.000000e+00 : f32
    %351 = vector.broadcast %cst_146 : f32 to vector<2x128xf32>
    %352 = arith.addf %351, %350 : vector<2x128xf32>
    %cst_147 = arith.constant 1.000000e+00 : f32
    %353 = vector.broadcast %cst_147 : f32 to vector<2x128xf32>
    %354 = arith.divf %353, %352 : vector<2x128xf32>
    %355 = vector.extract_strided_slice %354 {offsets = [0, 0], sizes = [2, 64], strides = [1, 1]} : vector<2x128xf32> to vector<2x64xf32>
    %356 = vector.extract_strided_slice %354 {offsets = [0, 64], sizes = [2, 64], strides = [1, 1]} : vector<2x128xf32> to vector<2x64xf32>
    %357 = vector.extract_strided_slice %343 {offsets = [0, 128], sizes = [2, 64], strides = [1, 1]} : vector<2x192xf32> to vector<2x64xf32>
    %358 = vector.extract_strided_slice %344 {offsets = [0, 128], sizes = [2, 64], strides = [1, 1]} : vector<2x192xf32> to vector<2x64xf32>
    %359 = arith.addf %358, %264 : vector<2x64xf32>
    %360 = arith.mulf %355, %359 : vector<2x64xf32>
    %361 = arith.addf %357, %360 : vector<2x64xf32>
    %362 = math.tanh %361 : vector<2x64xf32>
    %363 = arith.subf %340, %362 : vector<2x64xf32>
    %364 = arith.mulf %356, %363 : vector<2x64xf32>
    %365 = arith.addf %362, %364 : vector<2x64xf32>
    %366 = vector.extract_strided_slice %365 {offsets = [0, 0], sizes = [2, 32], strides = [1, 1]} : vector<2x64xf32> to vector<2x32xf32>
    %367 = vector.extract_strided_slice %290 {offsets = [0, 32], sizes = [2, 32], strides = [1, 1]} : vector<2x64xf32> to vector<2x32xf32>
    %c0_148 = arith.constant 0 : index
    %c0_149 = arith.constant 0 : index
    %368 = vector.load %arg24[%c0_148, %c0_149] : memref<64x12xf32, #tpu.memory_space<vmem>>, vector<64x12xf32>
    %369 = vector.extract_strided_slice %368 {offsets = [0, 0], sizes = [32, 12], strides = [1, 1]} : vector<64x12xf32> to vector<32x12xf32>
    %cst_150 = arith.constant dense<0.000000e+00> : vector<2x12xf32>
    %370 = tpu.matmul %366, %369, %cst_150 {dimension_numbers = #tpu.dot_dimension_numbers<[1], [0], [0], [1], [0, 0, 1, 1], [], []>} : vector<2x32xf32>, vector<32x12xf32>, vector<2x12xf32> -> vector<2x12xf32>
    %371 = vector.extract_strided_slice %368 {offsets = [32, 0], sizes = [32, 12], strides = [1, 1]} : vector<64x12xf32> to vector<32x12xf32>
    %cst_151 = arith.constant dense<0.000000e+00> : vector<2x12xf32>
    %372 = tpu.matmul %367, %371, %cst_151 {dimension_numbers = #tpu.dot_dimension_numbers<[1], [0], [0], [1], [0, 0, 1, 1], [], []>} : vector<2x32xf32>, vector<32x12xf32>, vector<2x12xf32> -> vector<2x12xf32>
    %373 = arith.addf %370, %372 : vector<2x12xf32>
    %c0_152 = arith.constant 0 : index
    %c0_153 = arith.constant 0 : index
    %374 = vector.load %arg1[%c0_152, %c0_153] : memref<2x24xf32, #tpu.memory_space<vmem>>, vector<2x24xf32>
    %c0_154 = arith.constant 0 : index
    %c0_155 = arith.constant 0 : index
    %375 = vector.load %arg25[%c0_154, %c0_155] : memref<24x96xf32, #tpu.memory_space<vmem>>, vector<24x96xf32>
    %cst_156 = arith.constant dense<0.000000e+00> : vector<2x96xf32>
    %376 = tpu.matmul %374, %375, %cst_156 {dimension_numbers = #tpu.dot_dimension_numbers<[1], [0], [0], [1], [0, 0, 1, 1], [], []>} : vector<2x24xf32>, vector<24x96xf32>, vector<2x96xf32> -> vector<2x96xf32>
    %cst_157 = arith.constant 0.000000e+00 : f32
    %377 = vector.broadcast %cst_157 : f32 to vector<2x96xf32>
    %378 = arith.maximumf %376, %377 : vector<2x96xf32>
    %c0_158 = arith.constant 0 : index
    %c0_159 = arith.constant 0 : index
    %379 = vector.load %arg26[%c0_158, %c0_159] : memref<96x64xf32, #tpu.memory_space<vmem>>, vector<96x64xf32>
    %cst_160 = arith.constant dense<0.000000e+00> : vector<2x64xf32>
    %380 = tpu.matmul %378, %379, %cst_160 {dimension_numbers = #tpu.dot_dimension_numbers<[1], [0], [0], [1], [0, 0, 1, 1], [], []>} : vector<2x96xf32>, vector<96x64xf32>, vector<2x64xf32> -> vector<2x64xf32>
    %cst_161 = arith.constant 0.000000e+00 : f32
    %381 = vector.broadcast %cst_161 : f32 to vector<2x64xf32>
    %382 = arith.maximumf %380, %381 : vector<2x64xf32>
    %c0_162 = arith.constant 0 : index
    %c0_163 = arith.constant 0 : index
    %383 = vector.load %arg27[%c0_162, %c0_163] : memref<64x128xf32, #tpu.memory_space<vmem>>, vector<64x128xf32>
    %cst_164 = arith.constant dense<0.000000e+00> : vector<2x128xf32>
    %384 = tpu.matmul %382, %383, %cst_164 {dimension_numbers = #tpu.dot_dimension_numbers<[1], [0], [0], [1], [0, 0, 1, 1], [], []>} : vector<2x64xf32>, vector<64x128xf32>, vector<2x128xf32> -> vector<2x128xf32>
    %c0_165 = arith.constant 0 : index
    %c0_166 = arith.constant 0 : index
    %385 = vector.load %arg28[%c0_165, %c0_166] : memref<12x1xf32, #tpu.memory_space<vmem>>, vector<12x1xf32>
    %cst_167 = arith.constant dense<0.000000e+00> : vector<2x1xf32>
    %386 = tpu.matmul %373, %385, %cst_167 {dimension_numbers = #tpu.dot_dimension_numbers<[1], [0], [0], [1], [0, 0, 1, 1], [], []>} : vector<2x12xf32>, vector<12x1xf32>, vector<2x1xf32> -> vector<2x1xf32>
    %c0_168 = arith.constant 0 : index
    %c0_169 = arith.constant 0 : index
    %387 = vector.load %arg29[%c0_168, %c0_169] : memref<128x1xf32, #tpu.memory_space<vmem>>, vector<128x1xf32>
    %cst_170 = arith.constant dense<0.000000e+00> : vector<2x1xf32>
    %388 = tpu.matmul %384, %387, %cst_170 {dimension_numbers = #tpu.dot_dimension_numbers<[1], [0], [0], [1], [0, 0, 1, 1], [], []>} : vector<2x128xf32>, vector<128x1xf32>, vector<2x1xf32> -> vector<2x1xf32>
    %389 = arith.addf %386, %388 : vector<2x1xf32>
    %c0_171 = arith.constant 0 : index
    %c0_172 = arith.constant 0 : index
    %390 = vector.load %arg30[%c0_171, %c0_172] : memref<1x1xf32, #tpu.memory_space<vmem>>, vector<1x1xf32>
    %391 = vector.broadcast %390 : vector<1x1xf32> to vector<2x1xf32>
    %392 = arith.addf %389, %391 : vector<2x1xf32>
    %cst_173 = arith.constant 0.000000e+00 : f32
    %393 = vector.broadcast %cst_173 : f32 to vector<2x1xf32>
    %394 = arith.maximumf %392, %393 : vector<2x1xf32>
    %395 = math.absf %392 : vector<2x1xf32>
    %cst_174 = arith.constant 0.000000e+00 : f32
    %396 = vector.broadcast %cst_174 : f32 to vector<2x1xf32>
    %397 = arith.subf %396, %395 : vector<2x1xf32>
    %398 = math.exp %397 : vector<2x1xf32>
    %cst_175 = arith.constant 1.000000e+00 : f32
    %399 = vector.broadcast %cst_175 : f32 to vector<2x1xf32>
    %400 = arith.addf %399, %398 : vector<2x1xf32>
    %401 = math.log %400 : vector<2x1xf32>
    %402 = arith.addf %394, %401 : vector<2x1xf32>
    %c0_176 = arith.constant 0 : index
    %c0_177 = arith.constant 0 : index
    %403 = vector.load %arg31[%c0_176, %c0_177] : memref<2x1xf32, #tpu.memory_space<vmem>>, vector<2x1xf32>
    tpu.vector_store %arg31[%c0_176, %c0_177], %402 {strides = array<i32>} : memref<2x1xf32, #tpu.memory_space<vmem>>, vector<2x1xf32>,
    return
  }
}

</mosaic_0001>

<llo_original>
// kernel: fwd.1
$region0: #{fwd.1}
  #allocation0 [shape = 'u32[]', space=smem, size = 0x4, offset = 0x4, fixed_abs, tag = 'smem constant byte address 0x4 - core index']
  #allocation1 [shape = 'u32[144,128]{1,0:T(1,128)}', space=vmem, size = 0x12000, scoped, tag = 'internal scratch']
  #allocation2 [shape = 'f32[1,1]{1,0:T(1,128)S(1)}', space=vmem, size = 0x200, scoped, tag = 'scoped memory for fwd.1']
  %s0 = inlined_call_operand.smem [shape: u32[32], index: -1, kind: input, shape index: {}]
  %s1 = sld [smem:[%s0]]
  %s2 = scalar_lea.smem %s0, 1
  %s3 = sld [smem:[%s2]]
  %s4 = scalar_lea.smem %s0, 2
  %s5 = sld [smem:[%s4]]
  %s6 = scalar_lea.smem %s0, 3
  %s7 = sld [smem:[%s6]]
  %s8 = scalar_lea.smem %s0, 4
  %s9 = sld [smem:[%s8]]
  %s10 = scalar_lea.smem %s0, 5
  %s11 = sld [smem:[%s10]]
  %s12 = scalar_lea.smem %s0, 6
  %s13 = sld [smem:[%s12]]
  %s14 = scalar_lea.smem %s0, 7
  %s15 = sld [smem:[%s14]]
  %s16 = scalar_lea.smem %s0, 8
  %s17 = sld [smem:[%s16]]
  %s18 = scalar_lea.smem %s0, 9
  %s19 = sld [smem:[%s18]]
  %s20 = scalar_lea.smem %s0, 10
  %s21 = sld [smem:[%s20]]
  %s22 = scalar_lea.smem %s0, 11
  %s23 = sld [smem:[%s22]]
  %s24 = scalar_lea.smem %s0, 12
  %s25 = sld [smem:[%s24]]
  %s26 = scalar_lea.smem %s0, 13
  %s27 = sld [smem:[%s26]]
  %s28 = scalar_lea.smem %s0, 14
  %s29 = sld [smem:[%s28]]
  %s30 = scalar_lea.smem %s0, 15
  %s31 = sld [smem:[%s30]]
  %s32 = scalar_lea.smem %s0, 16
  %s33 = sld [smem:[%s32]]
  %s34 = scalar_lea.smem %s0, 17
  %s35 = sld [smem:[%s34]]
  %s36 = scalar_lea.smem %s0, 18
  %s37 = sld [smem:[%s36]]
  %s38 = scalar_lea.smem %s0, 19
  %s39 = sld [smem:[%s38]]
  %s40 = scalar_lea.smem %s0, 20
  %s41 = sld [smem:[%s40]]
  %s42 = scalar_lea.smem %s0, 21
  %s43 = sld [smem:[%s42]]
  %s44 = scalar_lea.smem %s0, 22
  %s45 = sld [smem:[%s44]]
  %s46 = scalar_lea.smem %s0, 23
  %s47 = sld [smem:[%s46]]
  %s48 = scalar_lea.smem %s0, 24
  %s49 = sld [smem:[%s48]]
  %s50 = scalar_lea.smem %s0, 25
  %s51 = sld [smem:[%s50]]
  %s52 = scalar_lea.smem %s0, 26
  %s53 = sld [smem:[%s52]]
  %s54 = scalar_lea.smem %s0, 27
  %s55 = sld [smem:[%s54]]
  %s56 = scalar_lea.smem %s0, 28
  %s57 = sld [smem:[%s56]]
  %s58 = scalar_lea.smem %s0, 29
  %s59 = sld [smem:[%s58]]
  %s60 = scalar_lea.smem %s0, 30
  %s61 = sld [smem:[%s60]]
  %s62 = scalar_lea.smem %s0, 31
  %s63 = sld [smem:[%s62]]
  %s64 = sld [smem:[#allocation0]]
  $region202: #{fwd.1} parent=0
    _
  %s66 = ssub.s32 1, %s64
  %s67 = scalar_select 0, %s66, %s64
  %v68 = vstv %s61
  %69 = vst [vmem:[#allocation2] sm:$0x1] %v68
  $region1: #{fwd.1} parent=0
    #allocation3 [shape = 'u8[12288]{0}', space=vmem, size = 0x3000, scoped, tag = 'input window, operand 2, single buffered']
    #allocation4 [shape = 's32[1]{0}', space=sflag, size = 0x4, scoped, tag = 'scoped memory for fwd.1']
    #allocation5 [shape = 'u8[1024]{0}', space=vmem, size = 0x400, scoped, tag = 'input window, operand 3, single buffered']
    #allocation6 [shape = 's32[1]{0}', space=sflag, size = 0x4, scoped, tag = 'scoped memory for fwd.1']
    #allocation7 [shape = 'u8[1024]{0}', space=vmem, size = 0x400, scoped, tag = 'input window, operand 5, single buffered']
    #allocation8 [shape = 'u8[1024]{0}', space=vmem, size = 0x400, scoped, tag = 'input window, operand 7, single buffered']
    #allocation9 [shape = 's32[1]{0}', space=sflag, size = 0x4, scoped, tag = 'scoped memory for fwd.1']
    #allocation10 [shape = 'u8[1024]{0}', space=vmem, size = 0x400, scoped, tag = 'input window, operand 9, single buffered']
    #allocation11 [shape = 'u8[36864]{0}', space=vmem, size = 0x9000, scoped, tag = 'input window, operand 10, single buffered']
    #allocation12 [shape = 's32[1]{0}', space=sflag, size = 0x4, scoped, tag = 'scoped memory for fwd.1']
    #allocation13 [shape = 'u8[20480]{0}', space=vmem, size = 0x5000, scoped, tag = 'input window, operand 11, single buffered']
    #allocation14 [shape = 'u8[12288]{0}', space=vmem, size = 0x3000, scoped, tag = 'input window, operand 12, single buffered']
    #allocation15 [shape = 's32[1]{0}', space=sflag, size = 0x4, scoped, tag = 'scoped memory for fwd.1']
    #allocation16 [shape = 'u8[4096]{0}', space=vmem, size = 0x1000, scoped, tag = 'input window, operand 13, single buffered']
    #allocation17 [shape = 'u8[1024]{0}', space=vmem, size = 0x400, scoped, tag = 'input window, operand 16, single buffered']
    #allocation18 [shape = 's32[1]{0}', space=sflag, size = 0x4, scoped, tag = 'scoped memory for fwd.1']
    #allocation19 [shape = 'u8[512]{0}', space=vmem, size = 0x400, scoped, tag = 'input window, operand 18, single buffered']
    #allocation20 [shape = 'u8[65536]{0}', space=vmem, size = 0x10000, scoped, tag = 'input window, operand 19, single buffered']
    #allocation21 [shape = 's32[1]{0}', space=sflag, size = 0x4, scoped, tag = 'scoped memory for fwd.1']
    #allocation22 [shape = 'u8[65536]{0}', space=vmem, size = 0x10000, scoped, tag = 'input window, operand 20, single buffered']
    #allocation23 [shape = 'u8[1024]{0}', space=vmem, size = 0x400, scoped, tag = 'input window, operand 21, single buffered']
    #allocation24 [shape = 's32[1]{0}', space=sflag, size = 0x4, scoped, tag = 'scoped memory for fwd.1']
    #allocation25 [shape = 'u8[65536]{0}', space=vmem, size = 0x10000, scoped, tag = 'input window, operand 22, single buffered']
    #allocation26 [shape = 'u8[512]{0}', space=vmem, size = 0x400, scoped, tag = 'input window, operand 23, single buffered']
    #allocation27 [shape = 's32[1]{0}', space=sflag, size = 0x4, scoped, tag = 'scoped memory for fwd.1']
    #allocation28 [shape = 'u8[12288]{0}', space=vmem, size = 0x3000, scoped, tag = 'input window, operand 25, single buffered']
    %70 = vsyncpa [#allocation4], 0
    %71 = vsyncpa [#allocation6], 0
    %72 = vsyncpa [#allocation9], 0
    %73 = vsyncpa [#allocation12], 0
    %74 = vsyncpa [#allocation15], 0
    %75 = vsyncpa [#allocation18], 0
    %76 = vsyncpa [#allocation21], 0
    %77 = vsyncpa [#allocation24], 0
    %78 = vsyncpa [#allocation27], 0
    // Predicated region
    $region2: #{fwd.1} parent=1 // pred_check
      _
    $region3: #{fwd.1} parent=1 // pred_check_branch
      %80 = sbr.rel (0) target = $region5
    $region4: #{fwd.1} parent=1 // pred_region
      _
    $region5: #{fwd.1} parent=1 // pred_fallthru
      _
    // Predicated region
    $region6: #{fwd.1} parent=1 // pred_check
      _
    $region7: #{fwd.1} parent=1 // pred_check_branch
      %82 = sbr.rel (0) target = $region9
    $region8: #{fwd.1} parent=1 // pred_region
      _
    $region9: #{fwd.1} parent=1 // pred_fallthru
      _
    // Predicated region
    $region10: #{fwd.1} parent=1 // pred_check
      _
    $region11: #{fwd.1} parent=1 // pred_check_branch
      %84 = sbr.rel (0) target = $region13
    $region12: #{fwd.1} parent=1 // pred_region
      %s86 = ssub.s32 384, 384
      %87 = vsyncadd [#allocation4], %s86
      %s88 = sshll.u32 [#allocation3], 4
      %s89 = int_to_ptr.vmem [resolvable:$true] %s88
      %94 = dma.hbm_to_vmem [thread:$0]  %s5, 384, %s89, [#allocation4], 128, 128, 8
    $region13: #{fwd.1} parent=1 // pred_fallthru
      _
    // Predicated region
    $region14: #{fwd.1} parent=1 // pred_check
      _
    $region15: #{fwd.1} parent=1 // pred_check_branch
      %96 = sbr.rel (0) target = $region17
    $region16: #{fwd.1} parent=1 // pred_region
      %s98 = ssub.s32 32, 32
      %99 = vsyncadd [#allocation6], %s98
      %s101 = sshll.u32 [#allocation5], 4
      %s102 = int_to_ptr.vmem [resolvable:$true] %s101
      %104 = dma.hbm_to_vmem [thread:$0]  %s7, 32, %s102, [#allocation6]
    $region17: #{fwd.1} parent=1 // pred_fallthru
      _
    // Predicated region
    $region18: #{fwd.1} parent=1 // pred_check
      _
    $region19: #{fwd.1} parent=1 // pred_check_branch
      %106 = sbr.rel (0) target = $region21
    $region20: #{fwd.1} parent=1 // pred_region
      _
    $region21: #{fwd.1} parent=1 // pred_fallthru
      _
    // Predicated region
    $region22: #{fwd.1} parent=1 // pred_check
      _
    $region23: #{fwd.1} parent=1 // pred_check_branch
      %108 = sbr.rel (0) target = $region25
    $region24: #{fwd.1} parent=1 // pred_region
      %s110 = ssub.s32 32, 32
      %111 = vsyncadd [#allocation6], %s110
      %s113 = sshll.u32 [#allocation7], 4
      %s114 = int_to_ptr.vmem [resolvable:$true] %s113
      %116 = dma.hbm_to_vmem [thread:$0]  %s11, 32, %s114, [#allocation6]
    $region25: #{fwd.1} parent=1 // pred_fallthru
      _
    // Predicated region
    $region26: #{fwd.1} parent=1 // pred_check
      _
    $region27: #{fwd.1} parent=1 // pred_check_branch
      %118 = sbr.rel (0) target = $region29
    $region28: #{fwd.1} parent=1 // pred_region
      _
    $region29: #{fwd.1} parent=1 // pred_fallthru
      _
    // Predicated region
    $region30: #{fwd.1} parent=1 // pred_check
      _
    $region31: #{fwd.1} parent=1 // pred_check_branch
      %120 = sbr.rel (0) target = $region33
    $region32: #{fwd.1} parent=1 // pred_region
      %s122 = ssub.s32 32, 32
      %123 = vsyncadd [#allocation9], %s122
      %s125 = sshll.u32 [#allocation8], 4
      %s126 = int_to_ptr.vmem [resolvable:$true] %s125
      %128 = dma.hbm_to_vmem [thread:$0]  %s15, 32, %s126, [#allocation9]
    $region33: #{fwd.1} parent=1 // pred_fallthru
      _
    // Predicated region
    $region34: #{fwd.1} parent=1 // pred_check
      _
    $region35: #{fwd.1} parent=1 // pred_check_branch
      %130 = sbr.rel (0) target = $region37
    $region36: #{fwd.1} parent=1 // pred_region
      _
    $region37: #{fwd.1} parent=1 // pred_fallthru
      _
    // Predicated region
    $region38: #{fwd.1} parent=1 // pred_check
      _
    $region39: #{fwd.1} parent=1 // pred_check_branch
      %132 = sbr.rel (0) target = $region41
    $region40: #{fwd.1} parent=1 // pred_region
      %s134 = ssub.s32 32, 32
      %135 = vsyncadd [#allocation9], %s134
      %s137 = sshll.u32 [#allocation10], 4
      %s138 = int_to_ptr.vmem [resolvable:$true] %s137
      %140 = dma.hbm_to_vmem [thread:$0]  %s19, 32, %s138, [#allocation9]
    $region41: #{fwd.1} parent=1 // pred_fallthru
      _
    // Predicated region
    $region42: #{fwd.1} parent=1 // pred_check
      _
    $region43: #{fwd.1} parent=1 // pred_check_branch
      %142 = sbr.rel (0) target = $region45
    $region44: #{fwd.1} parent=1 // pred_region
      %s144 = ssub.s32 1152, 1152
      %145 = vsyncadd [#allocation12], %s144
      %s146 = sshll.u32 [#allocation11], 4
      %s147 = int_to_ptr.vmem [resolvable:$true] %s146
      %152 = dma.hbm_to_vmem [thread:$0]  %s21, 1152, %s147, [#allocation12], 128, 128, 8
    $region45: #{fwd.1} parent=1 // pred_fallthru
      _
    // Predicated region
    $region46: #{fwd.1} parent=1 // pred_check
      _
    $region47: #{fwd.1} parent=1 // pred_check_branch
      %154 = sbr.rel (0) target = $region49
    $region48: #{fwd.1} parent=1 // pred_region
      %s156 = ssub.s32 640, 640
      %157 = vsyncadd [#allocation12], %s156
      %s158 = sshll.u32 [#allocation13], 4
      %s159 = int_to_ptr.vmem [resolvable:$true] %s158
      %164 = dma.hbm_to_vmem [thread:$0]  %s23, 640, %s159, [#allocation12], 128, 128, 8
    $region49: #{fwd.1} parent=1 // pred_fallthru
      _
    // Predicated region
    $region50: #{fwd.1} parent=1 // pred_check
      _
    $region51: #{fwd.1} parent=1 // pred_check_branch
      %166 = sbr.rel (0) target = $region53
    $region52: #{fwd.1} parent=1 // pred_region
      %s168 = ssub.s32 384, 384
      %169 = vsyncadd [#allocation15], %s168
      %s170 = sshll.u32 [#allocation14], 4
      %s171 = int_to_ptr.vmem [resolvable:$true] %s170
      %176 = dma.hbm_to_vmem [thread:$0]  %s25, 384, %s171, [#allocation15], 128, 128, 8
    $region53: #{fwd.1} parent=1 // pred_fallthru
      _
    // Predicated region
    $region54: #{fwd.1} parent=1 // pred_check
      _
    $region55: #{fwd.1} parent=1 // pred_check_branch
      %178 = sbr.rel (0) target = $region57
    $region56: #{fwd.1} parent=1 // pred_region
      %s180 = ssub.s32 128, 128
      %181 = vsyncadd [#allocation15], %s180
      %s183 = sshll.u32 [#allocation16], 4
      %s184 = int_to_ptr.vmem [resolvable:$true] %s183
      %186 = dma.hbm_to_vmem [thread:$0]  %s27, 128, %s184, [#allocation15]
    $region57: #{fwd.1} parent=1 // pred_fallthru
      _
    // Predicated region
    $region58: #{fwd.1} parent=1 // pred_check
      _
    $region59: #{fwd.1} parent=1 // pred_check_branch
      %188 = sbr.rel (0) target = $region61
    $region60: #{fwd.1} parent=1 // pred_region
      _
    $region61: #{fwd.1} parent=1 // pred_fallthru
      _
    // Predicated region
    $region62: #{fwd.1} parent=1 // pred_check
      _
    $region63: #{fwd.1} parent=1 // pred_check_branch
      %190 = sbr.rel (0) target = $region65
    $region64: #{fwd.1} parent=1 // pred_region
      _
    $region65: #{fwd.1} parent=1 // pred_fallthru
      _
    // Predicated region
    $region66: #{fwd.1} parent=1 // pred_check
      _
    $region67: #{fwd.1} parent=1 // pred_check_branch
      %192 = sbr.rel (0) target = $region69
    $region68: #{fwd.1} parent=1 // pred_region
      %s194 = ssub.s32 32, 32
      %195 = vsyncadd [#allocation18], %s194
      %s197 = sshll.u32 [#allocation17], 4
      %s198 = int_to_ptr.vmem [resolvable:$true] %s197
      %200 = dma.hbm_to_vmem [thread:$0]  %s33, 32, %s198, [#allocation18]
    $region69: #{fwd.1} parent=1 // pred_fallthru
      _
    // Predicated region
    $region70: #{fwd.1} parent=1 // pred_check
      _
    $region71: #{fwd.1} parent=1 // pred_check_branch
      %202 = sbr.rel (0) target = $region73
    $region72: #{fwd.1} parent=1 // pred_region
      _
    $region73: #{fwd.1} parent=1 // pred_fallthru
      _
    // Predicated region
    $region74: #{fwd.1} parent=1 // pred_check
      _
    $region75: #{fwd.1} parent=1 // pred_check_branch
      %204 = sbr.rel (0) target = $region77
    $region76: #{fwd.1} parent=1 // pred_region
      %s206 = ssub.s32 16, 16
      %207 = vsyncadd [#allocation18], %s206
      %s209 = sshll.u32 [#allocation19], 4
      %s210 = int_to_ptr.vmem [resolvable:$true] %s209
      %212 = dma.hbm_to_vmem [thread:$0]  %s37, 16, %s210, [#allocation18]
    $region77: #{fwd.1} parent=1 // pred_fallthru
      _
    // Predicated region
    $region78: #{fwd.1} parent=1 // pred_check
      _
    $region79: #{fwd.1} parent=1 // pred_check_branch
      %214 = sbr.rel (0) target = $region81
    $region80: #{fwd.1} parent=1 // pred_region
      %s216 = ssub.s32 2048, 2048
      %217 = vsyncadd [#allocation21], %s216
      %s218 = sshll.u32 [#allocation20], 4
      %s219 = int_to_ptr.vmem [resolvable:$true] %s218
      %224 = dma.hbm_to_vmem [thread:$0]  %s39, 2048, %s219, [#allocation21], 256, 256, 16
    $region81: #{fwd.1} parent=1 // pred_fallthru
      _
    // Predicated region
    $region82: #{fwd.1} parent=1 // pred_check
      _
    $region83: #{fwd.1} parent=1 // pred_check_branch
      %226 = sbr.rel (0) target = $region85
    $region84: #{fwd.1} parent=1 // pred_region
      %s228 = ssub.s32 2048, 2048
      %229 = vsyncadd [#allocation21], %s228
      %s230 = sshll.u32 [#allocation22], 4
      %s231 = int_to_ptr.vmem [resolvable:$true] %s230
      %236 = dma.hbm_to_vmem [thread:$0]  %s41, 2048, %s231, [#allocation21], 256, 256, 16
    $region85: #{fwd.1} parent=1 // pred_fallthru
      _
    // Predicated region
    $region86: #{fwd.1} parent=1 // pred_check
      _
    $region87: #{fwd.1} parent=1 // pred_check_branch
      %238 = sbr.rel (0) target = $region89
    $region88: #{fwd.1} parent=1 // pred_region
      %s240 = ssub.s32 32, 32
      %241 = vsyncadd [#allocation24], %s240
      %s243 = sshll.u32 [#allocation23], 4
      %s244 = int_to_ptr.vmem [resolvable:$true] %s243
      %246 = dma.hbm_to_vmem [thread:$0]  %s43, 32, %s244, [#allocation24]
    $region89: #{fwd.1} parent=1 // pred_fallthru
      _
    // Predicated region
    $region90: #{fwd.1} parent=1 // pred_check
      _
    $region91: #{fwd.1} parent=1 // pred_check_branch
      %248 = sbr.rel (0) target = $region93
    $region92: #{fwd.1} parent=1 // pred_region
      %s250 = ssub.s32 2048, 2048
      %251 = vsyncadd [#allocation24], %s250
      %s252 = sshll.u32 [#allocation25], 4
      %s253 = int_to_ptr.vmem [resolvable:$true] %s252
      %258 = dma.hbm_to_vmem [thread:$0]  %s45, 2048, %s253, [#allocation24], 256, 256, 16
    $region93: #{fwd.1} parent=1 // pred_fallthru
      _
    // Predicated region
    $region94: #{fwd.1} parent=1 // pred_check
      _
    $region95: #{fwd.1} parent=1 // pred_check_branch
      %260 = sbr.rel (0) target = $region97
    $region96: #{fwd.1} parent=1 // pred_region
      %s262 = ssub.s32 16, 16
      %263 = vsyncadd [#allocation27], %s262
      %s265 = sshll.u32 [#allocation26], 4
      %s266 = int_to_ptr.vmem [resolvable:$true] %s265
      %268 = dma.hbm_to_vmem [thread:$0]  %s47, 16, %s266, [#allocation27]
    $region97: #{fwd.1} parent=1 // pred_fallthru
      _
    // Predicated region
    $region98: #{fwd.1} parent=1 // pred_check
      _
    $region99: #{fwd.1} parent=1 // pred_check_branch
      %270 = sbr.rel (0) target = $region101
    $region100: #{fwd.1} parent=1 // pred_region
      _
    $region101: #{fwd.1} parent=1 // pred_fallthru
      _
    // Predicated region
    $region102: #{fwd.1} parent=1 // pred_check
      _
    $region103: #{fwd.1} parent=1 // pred_check_branch
      %272 = sbr.rel (0) target = $region105
    $region104: #{fwd.1} parent=1 // pred_region
      %s274 = ssub.s32 384, 384
      %275 = vsyncadd [#allocation27], %s274
      %s276 = sshll.u32 [#allocation28], 4
      %s277 = int_to_ptr.vmem [resolvable:$true] %s276
      %282 = dma.hbm_to_vmem [thread:$0]  %s51, 384, %s277, [#allocation27], 128, 128, 8
    $region105: #{fwd.1} parent=1 // pred_fallthru
      _
    // Predicated region
    $region106: #{fwd.1} parent=1 // pred_check
      _
    $region107: #{fwd.1} parent=1 // pred_check_branch
      %284 = sbr.rel (0) target = $region109
    $region108: #{fwd.1} parent=1 // pred_region
      _
    $region109: #{fwd.1} parent=1 // pred_fallthru
      _
    // Predicated region
    $region110: #{fwd.1} parent=1 // pred_check
      _
    $region111: #{fwd.1} parent=1 // pred_check_branch
      %286 = sbr.rel (0) target = $region113
    $region112: #{fwd.1} parent=1 // pred_region
      _
    $region113: #{fwd.1} parent=1 // pred_fallthru
      _
    // Predicated region
    $region114: #{fwd.1} parent=1 // pred_check
      _
    $region115: #{fwd.1} parent=1 // pred_check_branch
      %288 = sbr.rel (0) target = $region117
    $region116: #{fwd.1} parent=1 // pred_region
      _
    $region117: #{fwd.1} parent=1 // pred_fallthru
      _
    // Predicated region
    $region118: #{fwd.1} parent=1 // pred_check
      _
    $region119: #{fwd.1} parent=1 // pred_check_branch
      %290 = sbr.rel (0) target = $region121
    $region120: #{fwd.1} parent=1 // pred_region
      _
    $region121: #{fwd.1} parent=1 // pred_fallthru
      _
    // Predicated region
    $region122: #{fwd.1} parent=1 // pred_check
      _
    $region123: #{fwd.1} parent=1 // pred_check_branch
      %292 = sbr.rel (0) target = $region125
    $region124: #{fwd.1} parent=1 // pred_region
      _
    $region125: #{fwd.1} parent=1 // pred_fallthru
      _
    // Predicated region
    $region126: #{fwd.1} parent=1 // pred_check
      _
    $region127: #{fwd.1} parent=1 // pred_check_branch
      %294 = sbr.rel (0) target = $region129
    $region128: #{fwd.1} parent=1 // pred_region
      %295 = dma.done [#allocation4], 384
    $region129: #{fwd.1} parent=1 // pred_fallthru
      _
    // Predicated region
    $region130: #{fwd.1} parent=1 // pred_check
      _
    $region131: #{fwd.1} parent=1 // pred_check_branch
      %297 = sbr.rel (0) target = $region133
    $region132: #{fwd.1} parent=1 // pred_region
      %298 = dma.done [#allocation6], 32
    $region133: #{fwd.1} parent=1 // pred_fallthru
      _
    // Predicated region
    $region134: #{fwd.1} parent=1 // pred_check
      _
    $region135: #{fwd.1} parent=1 // pred_check_branch
      %300 = sbr.rel (0) target = $region137
    $region136: #{fwd.1} parent=1 // pred_region
      %301 = dma.done [#allocation6], 32
    $region137: #{fwd.1} parent=1 // pred_fallthru
      _
    // Predicated region
    $region138: #{fwd.1} parent=1 // pred_check
      _
    $region139: #{fwd.1} parent=1 // pred_check_branch
      %303 = sbr.rel (0) target = $region141
    $region140: #{fwd.1} parent=1 // pred_region
      %304 = dma.done [#allocation9], 32
    $region141: #{fwd.1} parent=1 // pred_fallthru
      _
    // Predicated region
    $region142: #{fwd.1} parent=1 // pred_check
      _
    $region143: #{fwd.1} parent=1 // pred_check_branch
      %306 = sbr.rel (0) target = $region145
    $region144: #{fwd.1} parent=1 // pred_region
      %307 = dma.done [#allocation9], 32
    $region145: #{fwd.1} parent=1 // pred_fallthru
      _
    // Predicated region
    $region146: #{fwd.1} parent=1 // pred_check
      _
    $region147: #{fwd.1} parent=1 // pred_check_branch
      %309 = sbr.rel (0) target = $region149
    $region148: #{fwd.1} parent=1 // pred_region
      %310 = dma.done [#allocation12], 1152
    $region149: #{fwd.1} parent=1 // pred_fallthru
      _
    // Predicated region
    $region150: #{fwd.1} parent=1 // pred_check
      _
    $region151: #{fwd.1} parent=1 // pred_check_branch
      %312 = sbr.rel (0) target = $region153
    $region152: #{fwd.1} parent=1 // pred_region
      %313 = dma.done [#allocation12], 640
    $region153: #{fwd.1} parent=1 // pred_fallthru
      _
    // Predicated region
    $region154: #{fwd.1} parent=1 // pred_check
      _
    $region155: #{fwd.1} parent=1 // pred_check_branch
      %315 = sbr.rel (0) target = $region157
    $region156: #{fwd.1} parent=1 // pred_region
      %316 = dma.done [#allocation15], 384
    $region157: #{fwd.1} parent=1 // pred_fallthru
      _
    // Predicated region
    $region158: #{fwd.1} parent=1 // pred_check
      _
    $region159: #{fwd.1} parent=1 // pred_check_branch
      %318 = sbr.rel (0) target = $region161
    $region160: #{fwd.1} parent=1 // pred_region
      %319 = dma.done [#allocation15], 128
    $region161: #{fwd.1} parent=1 // pred_fallthru
      _
    // Predicated region
    $region162: #{fwd.1} parent=1 // pred_check
      _
    $region163: #{fwd.1} parent=1 // pred_check_branch
      %321 = sbr.rel (0) target = $region165
    $region164: #{fwd.1} parent=1 // pred_region
      %322 = dma.done [#allocation18], 32
    $region165: #{fwd.1} parent=1 // pred_fallthru
      _
    // Predicated region
    $region166: #{fwd.1} parent=1 // pred_check
      _
    $region167: #{fwd.1} parent=1 // pred_check_branch
      %324 = sbr.rel (0) target = $region169
    $region168: #{fwd.1} parent=1 // pred_region
      %325 = dma.done [#allocation18], 16
    $region169: #{fwd.1} parent=1 // pred_fallthru
      _
    // Predicated region
    $region170: #{fwd.1} parent=1 // pred_check
      _
    $region171: #{fwd.1} parent=1 // pred_check_branch
      %327 = sbr.rel (0) target = $region173
    $region172: #{fwd.1} parent=1 // pred_region
      %328 = dma.done [#allocation21], 2048
    $region173: #{fwd.1} parent=1 // pred_fallthru
      _
    // Predicated region
    $region174: #{fwd.1} parent=1 // pred_check
      _
    $region175: #{fwd.1} parent=1 // pred_check_branch
      %330 = sbr.rel (0) target = $region177
    $region176: #{fwd.1} parent=1 // pred_region
      %331 = dma.done [#allocation21], 2048
    $region177: #{fwd.1} parent=1 // pred_fallthru
      _
    // Predicated region
    $region178: #{fwd.1} parent=1 // pred_check
      _
    $region179: #{fwd.1} parent=1 // pred_check_branch
      %333 = sbr.rel (0) target = $region181
    $region180: #{fwd.1} parent=1 // pred_region
      %334 = dma.done [#allocation24], 32
    $region181: #{fwd.1} parent=1 // pred_fallthru
      _
    // Predicated region
    $region182: #{fwd.1} parent=1 // pred_check
      _
    $region183: #{fwd.1} parent=1 // pred_check_branch
      %336 = sbr.rel (0) target = $region185
    $region184: #{fwd.1} parent=1 // pred_region
      %337 = dma.done [#allocation24], 2048
    $region185: #{fwd.1} parent=1 // pred_fallthru
      _
    // Predicated region
    $region186: #{fwd.1} parent=1 // pred_check
      _
    $region187: #{fwd.1} parent=1 // pred_check_branch
      %339 = sbr.rel (0) target = $region189
    $region188: #{fwd.1} parent=1 // pred_region
      %340 = dma.done [#allocation27], 16
    $region189: #{fwd.1} parent=1 // pred_fallthru
      _
    // Predicated region
    $region190: #{fwd.1} parent=1 // pred_check
      _
    $region191: #{fwd.1} parent=1 // pred_check_branch
      %342 = sbr.rel (0) target = $region193
    $region192: #{fwd.1} parent=1 // pred_region
      %343 = dma.done [#allocation27], 384
    $region193: #{fwd.1} parent=1 // pred_fallthru
      _
    %v344 = vld [vmem:[%s1] sm:$0xff]
    %v345 = vld [vmem:[%s1 + $0x8] sm:$0xff]
    %v346 = vld [vmem:[%s1 + $0x10] sm:$0xff]
    %v347 = vld [vmem:[%s1 + $0x18] sm:$0xff]
    %v348 = vld [vmem:[%s1 + $0x20] sm:$0xff]
    %v349 = vld [vmem:[%s1 + $0x28] sm:$0xff]
    %v350 = vld [vmem:[%s1 + $0x30] sm:$0xff]
    %v351 = vld [vmem:[%s1 + $0x38] sm:$0xff]
    %v352 = vld [vmem:[%s1 + $0x40] sm:$0xf]
    %v353 = vld [vmem:[#allocation3] sm:$0xff]
    %s354 = scalar_lea.vmem [#allocation3], 8
    %v355 = vld [vmem:[%s354] sm:$0xff]
    %vm365 = vcmask 1046528
    %v366 = vrot.slane %v344, 1
    %v367 = vrot.slane %v345, 1
    %v368 = vsel %vm365, %v366, %v367
    %v369 = vrot.slane %v346, 1
    %v370 = vsel %vm365, %v367, %v369
    %v371 = vrot.slane %v347, 1
    %v372 = vsel %vm365, %v369, %v371
    %v373 = vrot.slane %v348, 1
    %v374 = vsel %vm365, %v371, %v373
    %v375 = vrot.slane %v349, 1
    %v376 = vsel %vm365, %v373, %v375
    %v377 = vrot.slane %v350, 1
    %v378 = vsel %vm365, %v375, %v377
    %v379 = vrot.slane %v351, 1
    %v380 = vsel %vm365, %v377, %v379
    %v381 = vrot.slane %v352, 1
    %v382 = vsel %vm365, %v379, %v381
    %vm383 = vcmask 64512
    %v384 = vsel %vm383, %v368, 0
    %v386 = vsel %vm383, %v370, 0
    %v388 = vsel %vm383, %v372, 0
    %v390 = vsel %vm383, %v374, 0
    %v392 = vsel %vm383, %v376, 0
    %v394 = vsel %vm383, %v378, 0
    %v396 = vsel %vm383, %v380, 0
    %v398 = vsel %vm383, %v382, 0
    %v400 = vsel %vm383, %v381, 0
    %402 = vmatprep.subr.mxu0 0.0
    %403 = vmatpush1.msra.mxu0 %v355
    %404 = vmatprep.subr.mxu0 0.0
    %405 = vmatpush1.msra.mxu0 0.0
    %406 = vmatprep.subr.mxu0 0.0
    %407 = vmatpush1.msra.mxu0 0.0
    %408 = vmatprep.subr.mxu0 0.0
    %409 = vmatpush1.msra.mxu0 0.0
    %410 = vmatprep.subr.mxu0 0.0
    %411 = vmatpush1.msra.mxu0 0.0
    %412 = vmatprep.subr.mxu0 0.0
    %413 = vmatpush1.msra.mxu0 0.0
    %414 = vmatprep.subr.mxu0 0.0
    %415 = vmatpush1.msra.mxu0 0.0
    %416 = vmatprep.subr.mxu0 0.0
    %417 = vmatpush1.msra.mxu0 0.0
    %418 = vmatprep.subr.mxu0 0.0
    %419 = vmatpush1.msra.mxu0 0.0
    %420 = vmatprep.subr.mxu0 0.0
    %421 = vmatpush1.msra.mxu0 0.0
    %422 = vmatprep.subr.mxu0 0.0
    %423 = vmatpush1.msra.mxu0 0.0
    %424 = vmatprep.subr.mxu0 0.0
    %425 = vmatpush1.msra.mxu0 0.0
    %426 = vmatprep.subr.mxu0 0.0
    %427 = vmatpush1.msra.mxu0 0.0
    %428 = vmatprep.subr.mxu0 0.0
    %429 = vmatpush1.msra.mxu0 0.0
    %430 = vmatprep.subr.mxu0 0.0
    %431 = vmatpush1.msra.mxu0 0.0
    %432 = vmatprep.subr.mxu0 0.0
    %433 = vmatpush1.msra.mxu0 0.0
    %434 = vmatprep.subr.mxu0 0.0
    %435 = vmatpush1.msra.mxu0 0.0
    %436 = vmatprep.subr.mxu0 0.0
    %437 = vmatpush1.msra.mxu0 0.0
    %438 = vmatprep.subr.mxu0 0.0
    %439 = vmatpush1.msra.mxu0 0.0
    %440 = vmatprep.subr.mxu0 0.0
    %441 = vmatpush1.msra.mxu0 0.0
    %442 = vmatprep.subr.mxu0 0.0
    %443 = vmatpush1.msra.mxu0 0.0
    %444 = vmatprep.subr.mxu0 0.0
    %445 = vmatpush1.msra.mxu0 0.0
    %446 = vmatprep.subr.mxu0 0.0
    %447 = vmatpush1.msra.mxu0 0.0
    %448 = vmatprep.subr.mxu0 0.0
    %449 = vmatpush1.msra.mxu0 0.0
    %450 = vmatprep.subr.mxu0 0.0
    %451 = vmatpush1.msra.mxu0 0.0
    %452 = vmatprep.subr.mxu0 0.0
    %453 = vmatpush1.msra.mxu0 0.0
    %454 = vmatprep.subr.mxu0 0.0
    %455 = vmatpush1.msra.mxu0 0.0
    %456 = vmatprep.subr.mxu0 0.0
    %457 = vmatpush1.msra.mxu0 0.0
    %458 = vmatprep.subr.mxu0 0.0
    %459 = vmatpush1.msra.mxu0 0.0
    %460 = vmatprep.subr.mxu0 0.0
    %461 = vmatpush1.msra.mxu0 0.0
    %462 = vmatprep.subr.mxu0 0.0
    %463 = vmatpush1.msra.mxu0 0.0
    %464 = vmatprep.subr.mxu0 0.0
    %465 = vmatpush1.msra.mxu0 0.0
    %466 = vmatprep.mubr.f32.mxu0 0.0
    %467 = vmatmul.mubr.f32.gmra.mrb[0].mxu0 %v384
    %v468 = vpop.f32.mrb[0].mxu0
    %v469 = vadd.f32 0.0, %v468
    %v470 = vpop.f32.mrb[0].mxu0
    %471 = vmatprep.mubr.f32.mxu0 0.0
    %472 = vmatmul.mubr.f32.gmra.mrb[0].mxu0 %v386
    %v473 = vpop.f32.mrb[0].mxu0
    %v474 = vadd.f32 0.0, %v473
    %v475 = vpop.f32.mrb[0].mxu0
    %476 = vmatprep.mubr.f32.mxu0 0.0
    %477 = vmatmul.mubr.f32.gmra.mrb[0].mxu0 %v388
    %v478 = vpop.f32.mrb[0].mxu0
    %v479 = vadd.f32 0.0, %v478
    %v480 = vpop.f32.mrb[0].mxu0
    %481 = vmatprep.mubr.f32.mxu0 0.0
    %482 = vmatmul.mubr.f32.gmra.mrb[0].mxu0 %v390
    %v483 = vpop.f32.mrb[0].mxu0
    %v484 = vadd.f32 0.0, %v483
    %v485 = vpop.f32.mrb[0].mxu0
    %486 = vmatprep.mubr.f32.mxu0 0.0
    %487 = vmatmul.mubr.f32.gmra.mrb[0].mxu0 %v392
    %v488 = vpop.f32.mrb[0].mxu0
    %v489 = vadd.f32 0.0, %v488
    %v490 = vpop.f32.mrb[0].mxu0
    %491 = vmatprep.mubr.f32.mxu0 0.0
    %492 = vmatmul.mubr.f32.gmra.mrb[0].mxu0 %v394
    %v493 = vpop.f32.mrb[0].mxu0
    %v494 = vadd.f32 0.0, %v493
    %v495 = vpop.f32.mrb[0].mxu0
    %496 = vmatprep.mubr.f32.mxu0 0.0
    %497 = vmatmul.mubr.f32.gmra.mrb[0].mxu0 %v396
    %v498 = vpop.f32.mrb[0].mxu0
    %v499 = vadd.f32 0.0, %v498
    %v500 = vpop.f32.mrb[0].mxu0
    %501 = vmatprep.mubr.f32.mxu0 0.0
    %502 = vmatmul.mubr.f32.gmra.mrb[0].mxu0 %v398
    %v503 = vpop.f32.mrb[0].mxu0
    %v504 = vadd.f32 0.0, %v503
    %v505 = vpop.f32.mrb[0].mxu0
    %506 = vmatprep.mubr.f32.mxu0 0.0
    %507 = vmatmul.mubr.f32.gmra.mrb[0].mxu0 %v400
    %v508 = vpop.f32.mrb[0].mxu0
    %v509 = vadd.f32 0.0, %v508
    %v510 = vpop.f32.mrb[0].mxu0
    %511 = vdwg.mxu0
    %v512 = vsel %vm383, %v344, 0
    %v514 = vsel %vm383, %v345, 0
    %v516 = vsel %vm383, %v346, 0
    %v518 = vsel %vm383, %v347, 0
    %v520 = vsel %vm383, %v348, 0
    %v522 = vsel %vm383, %v349, 0
    %v524 = vsel %vm383, %v350, 0
    %v526 = vsel %vm383, %v351, 0
    %v528 = vsel %vm383, %v352, 0
    %530 = vmatprep.subr.mxu0 0.0
    %531 = vmatpush1.msra.mxu0 %v353
    %532 = vmatprep.subr.mxu0 0.0
    %533 = vmatpush1.msra.mxu0 0.0
    %534 = vmatprep.subr.mxu0 0.0
    %535 = vmatpush1.msra.mxu0 0.0
    %536 = vmatprep.subr.mxu0 0.0
    %537 = vmatpush1.msra.mxu0 0.0
    %538 = vmatprep.subr.mxu0 0.0
    %539 = vmatpush1.msra.mxu0 0.0
    %540 = vmatprep.subr.mxu0 0.0
    %541 = vmatpush1.msra.mxu0 0.0
    %542 = vmatprep.subr.mxu0 0.0
    %543 = vmatpush1.msra.mxu0 0.0
    %544 = vmatprep.subr.mxu0 0.0
    %545 = vmatpush1.msra.mxu0 0.0
    %546 = vmatprep.subr.mxu0 0.0
    %547 = vmatpush1.msra.mxu0 0.0
    %548 = vmatprep.subr.mxu0 0.0
    %549 = vmatpush1.msra.mxu0 0.0
    %550 = vmatprep.subr.mxu0 0.0
    %551 = vmatpush1.msra.mxu0 0.0
    %552 = vmatprep.subr.mxu0 0.0
    %553 = vmatpush1.msra.mxu0 0.0
    %554 = vmatprep.subr.mxu0 0.0
    %555 = vmatpush1.msra.mxu0 0.0
    %556 = vmatprep.subr.mxu0 0.0
    %557 = vmatpush1.msra.mxu0 0.0
    %558 = vmatprep.subr.mxu0 0.0
    %559 = vmatpush1.msra.mxu0 0.0
    %560 = vmatprep.subr.mxu0 0.0
    %561 = vmatpush1.msra.mxu0 0.0
    %562 = vmatprep.subr.mxu0 0.0
    %563 = vmatpush1.msra.mxu0 0.0
    %564 = vmatprep.subr.mxu0 0.0
    %565 = vmatpush1.msra.mxu0 0.0
    %566 = vmatprep.subr.mxu0 0.0
    %567 = vmatpush1.msra.mxu0 0.0
    %568 = vmatprep.subr.mxu0 0.0
    %569 = vmatpush1.msra.mxu0 0.0
    %570 = vmatprep.subr.mxu0 0.0
    %571 = vmatpush1.msra.mxu0 0.0
    %572 = vmatprep.subr.mxu0 0.0
    %573 = vmatpush1.msra.mxu0 0.0
    %574 = vmatprep.subr.mxu0 0.0
    %575 = vmatpush1.msra.mxu0 0.0
    %576 = vmatprep.subr.mxu0 0.0
    %577 = vmatpush1.msra.mxu0 0.0
    %578 = vmatprep.subr.mxu0 0.0
    %579 = vmatpush1.msra.mxu0 0.0
    %580 = vmatprep.subr.mxu0 0.0
    %581 = vmatpush1.msra.mxu0 0.0
    %582 = vmatprep.subr.mxu0 0.0
    %583 = vmatpush1.msra.mxu0 0.0
    %584 = vmatprep.subr.mxu0 0.0
    %585 = vmatpush1.msra.mxu0 0.0
    %586 = vmatprep.subr.mxu0 0.0
    %587 = vmatpush1.msra.mxu0 0.0
    %588 = vmatprep.subr.mxu0 0.0
    %589 = vmatpush1.msra.mxu0 0.0
    %590 = vmatprep.subr.mxu0 0.0
    %591 = vmatpush1.msra.mxu0 0.0
    %592 = vmatprep.subr.mxu0 0.0
    %593 = vmatpush1.msra.mxu0 0.0
    %594 = vmatprep.mubr.f32.mxu0 0.0
    %595 = vmatmul.mubr.f32.gmra.mrb[0].mxu0 %v512
    %v596 = vpop.f32.mrb[0].mxu0
    %v597 = vadd.f32 %v469, %v596
    %v598 = vpop.f32.mrb[0].mxu0
    %599 = vmatprep.mubr.f32.mxu0 0.0
    %600 = vmatmul.mubr.f32.gmra.mrb[0].mxu0 %v514
    %v601 = vpop.f32.mrb[0].mxu0
    %v602 = vadd.f32 %v474, %v601
    %v603 = vpop.f32.mrb[0].mxu0
    %604 = vmatprep.mubr.f32.mxu0 0.0
    %605 = vmatmul.mubr.f32.gmra.mrb[0].mxu0 %v516
    %v606 = vpop.f32.mrb[0].mxu0
    %v607 = vadd.f32 %v479, %v606
    %v608 = vpop.f32.mrb[0].mxu0
    %609 = vmatprep.mubr.f32.mxu0 0.0
    %610 = vmatmul.mubr.f32.gmra.mrb[0].mxu0 %v518
    %v611 = vpop.f32.mrb[0].mxu0
    %v612 = vadd.f32 %v484, %v611
    %v613 = vpop.f32.mrb[0].mxu0
    %614 = vmatprep.mubr.f32.mxu0 0.0
    %615 = vmatmul.mubr.f32.gmra.mrb[0].mxu0 %v520
    %v616 = vpop.f32.mrb[0].mxu0
    %v617 = vadd.f32 %v489, %v616
    %v618 = vpop.f32.mrb[0].mxu0
    %619 = vmatprep.mubr.f32.mxu0 0.0
    %620 = vmatmul.mubr.f32.gmra.mrb[0].mxu0 %v522
    %v621 = vpop.f32.mrb[0].mxu0
    %v622 = vadd.f32 %v494, %v621
    %v623 = vpop.f32.mrb[0].mxu0
    %624 = vmatprep.mubr.f32.mxu0 0.0
    %625 = vmatmul.mubr.f32.gmra.mrb[0].mxu0 %v524
    %v626 = vpop.f32.mrb[0].mxu0
    %v627 = vadd.f32 %v499, %v626
    %v628 = vpop.f32.mrb[0].mxu0
    %629 = vmatprep.mubr.f32.mxu0 0.0
    %630 = vmatmul.mubr.f32.gmra.mrb[0].mxu0 %v526
    %v631 = vpop.f32.mrb[0].mxu0
    %v632 = vadd.f32 %v504, %v631
    %v633 = vpop.f32.mrb[0].mxu0
    %634 = vmatprep.mubr.f32.mxu0 0.0
    %635 = vmatmul.mubr.f32.gmra.mrb[0].mxu0 %v528
    %v636 = vpop.f32.mrb[0].mxu0
    %v637 = vadd.f32 %v509, %v636
    %v638 = vpop.f32.mrb[0].mxu0
    %639 = vdwg.mxu0
    %s640 = scalar_lea.vmem [#allocation3], 16
    %v641 = vld [vmem:[%s640] sm:$0xff]
    %vm642 = vcmask 1045504
    %v643 = vrot.slane %v344, 2
    %v644 = vrot.slane %v345, 2
    %v645 = vsel %vm642, %v643, %v644
    %v646 = vrot.slane %v346, 2
    %v647 = vsel %vm642, %v644, %v646
    %v648 = vrot.slane %v347, 2
    %v649 = vsel %vm642, %v646, %v648
    %v650 = vrot.slane %v348, 2
    %v651 = vsel %vm642, %v648, %v650
    %v652 = vrot.slane %v349, 2
    %v653 = vsel %vm642, %v650, %v652
    %v654 = vrot.slane %v350, 2
    %v655 = vsel %vm642, %v652, %v654
    %v656 = vrot.slane %v351, 2
    %v657 = vsel %vm642, %v654, %v656
    %v658 = vrot.slane %v352, 2
    %v659 = vsel %vm642, %v656, %v658
    %v660 = vsel %vm383, %v645, 0
    %v662 = vsel %vm383, %v647, 0
    %v664 = vsel %vm383, %v649, 0
    %v666 = vsel %vm383, %v651, 0
    %v668 = vsel %vm383, %v653, 0
    %v670 = vsel %vm383, %v655, 0
    %v672 = vsel %vm383, %v657, 0
    %v674 = vsel %vm383, %v659, 0
    %v676 = vsel %vm383, %v658, 0
    %678 = vmatprep.subr.mxu0 0.0
    %679 = vmatpush1.msra.mxu0 %v641
    %680 = vmatprep.subr.mxu0 0.0
    %681 = vmatpush1.msra.mxu0 0.0
    %682 = vmatprep.subr.mxu0 0.0
    %683 = vmatpush1.msra.mxu0 0.0
    %684 = vmatprep.subr.mxu0 0.0
    %685 = vmatpush1.msra.mxu0 0.0
    %686 = vmatprep.subr.mxu0 0.0
    %687 = vmatpush1.msra.mxu0 0.0
    %688 = vmatprep.subr.mxu0 0.0
    %689 = vmatpush1.msra.mxu0 0.0
    %690 = vmatprep.subr.mxu0 0.0
    %691 = vmatpush1.msra.mxu0 0.0
    %692 = vmatprep.subr.mxu0 0.0
    %693 = vmatpush1.msra.mxu0 0.0
    %694 = vmatprep.subr.mxu0 0.0
    %695 = vmatpush1.msra.mxu0 0.0
    %696 = vmatprep.subr.mxu0 0.0
    %697 = vmatpush1.msra.mxu0 0.0
    %698 = vmatprep.subr.mxu0 0.0
    %699 = vmatpush1.msra.mxu0 0.0
    %700 = vmatprep.subr.mxu0 0.0
    %701 = vmatpush1.msra.mxu0 0.0
    %702 = vmatprep.subr.mxu0 0.0
    %703 = vmatpush1.msra.mxu0 0.0
    %704 = vmatprep.subr.mxu0 0.0
    %705 = vmatpush1.msra.mxu0 0.0
    %706 = vmatprep.subr.mxu0 0.0
    %707 = vmatpush1.msra.mxu0 0.0
    %708 = vmatprep.subr.mxu0 0.0
    %709 = vmatpush1.msra.mxu0 0.0
    %710 = vmatprep.subr.mxu0 0.0
    %711 = vmatpush1.msra.mxu0 0.0
    %712 = vmatprep.subr.mxu0 0.0
    %713 = vmatpush1.msra.mxu0 0.0
    %714 = vmatprep.subr.mxu0 0.0
    %715 = vmatpush1.msra.mxu0 0.0
    %716 = vmatprep.subr.mxu0 0.0
    %717 = vmatpush1.msra.mxu0 0.0
    %718 = vmatprep.subr.mxu0 0.0
    %719 = vmatpush1.msra.mxu0 0.0
    %720 = vmatprep.subr.mxu0 0.0
    %721 = vmatpush1.msra.mxu0 0.0
    %722 = vmatprep.subr.mxu0 0.0
    %723 = vmatpush1.msra.mxu0 0.0
    %724 = vmatprep.subr.mxu0 0.0
    %725 = vmatpush1.msra.mxu0 0.0
    %726 = vmatprep.subr.mxu0 0.0
    %727 = vmatpush1.msra.mxu0 0.0
    %728 = vmatprep.subr.mxu0 0.0
    %729 = vmatpush1.msra.mxu0 0.0
    %730 = vmatprep.subr.mxu0 0.0
    %731 = vmatpush1.msra.mxu0 0.0
    %732 = vmatprep.subr.mxu0 0.0
    %733 = vmatpush1.msra.mxu0 0.0
    %734 = vmatprep.subr.mxu0 0.0
    %735 = vmatpush1.msra.mxu0 0.0
    %736 = vmatprep.subr.mxu0 0.0
    %737 = vmatpush1.msra.mxu0 0.0
    %738 = vmatprep.subr.mxu0 0.0
    %739 = vmatpush1.msra.mxu0 0.0
    %740 = vmatprep.subr.mxu0 0.0
    %741 = vmatpush1.msra.mxu0 0.0
    %742 = vmatprep.mubr.f32.mxu0 0.0
    %743 = vmatmul.mubr.f32.gmra.mrb[0].mxu0 %v660
    %v744 = vpop.f32.mrb[0].mxu0
    %v745 = vadd.f32 0.0, %v744
    %v746 = vpop.f32.mrb[0].mxu0
    %747 = vmatprep.mubr.f32.mxu0 0.0
    %748 = vmatmul.mubr.f32.gmra.mrb[0].mxu0 %v662
    %v749 = vpop.f32.mrb[0].mxu0
    %v750 = vadd.f32 0.0, %v749
    %v751 = vpop.f32.mrb[0].mxu0
    %752 = vmatprep.mubr.f32.mxu0 0.0
    %753 = vmatmul.mubr.f32.gmra.mrb[0].mxu0 %v664
    %v754 = vpop.f32.mrb[0].mxu0
    %v755 = vadd.f32 0.0, %v754
    %v756 = vpop.f32.mrb[0].mxu0
    %757 = vmatprep.mubr.f32.mxu0 0.0
    %758 = vmatmul.mubr.f32.gmra.mrb[0].mxu0 %v666
    %v759 = vpop.f32.mrb[0].mxu0
    %v760 = vadd.f32 0.0, %v759
    %v761 = vpop.f32.mrb[0].mxu0
    %762 = vmatprep.mubr.f32.mxu0 0.0
    %763 = vmatmul.mubr.f32.gmra.mrb[0].mxu0 %v668
    %v764 = vpop.f32.mrb[0].mxu0
    %v765 = vadd.f32 0.0, %v764
    %v766 = vpop.f32.mrb[0].mxu0
    %767 = vmatprep.mubr.f32.mxu0 0.0
    %768 = vmatmul.mubr.f32.gmra.mrb[0].mxu0 %v670
    %v769 = vpop.f32.mrb[0].mxu0
    %v770 = vadd.f32 0.0, %v769
    %v771 = vpop.f32.mrb[0].mxu0
    %772 = vmatprep.mubr.f32.mxu0 0.0
    %773 = vmatmul.mubr.f32.gmra.mrb[0].mxu0 %v672
    %v774 = vpop.f32.mrb[0].mxu0
    %v775 = vadd.f32 0.0, %v774
    %v776 = vpop.f32.mrb[0].mxu0
    %777 = vmatprep.mubr.f32.mxu0 0.0
    %778 = vmatmul.mubr.f32.gmra.mrb[0].mxu0 %v674
    %v779 = vpop.f32.mrb[0].mxu0
    %v780 = vadd.f32 0.0, %v779
    %v781 = vpop.f32.mrb[0].mxu0
    %782 = vmatprep.mubr.f32.mxu0 0.0
    %783 = vmatmul.mubr.f32.gmra.mrb[0].mxu0 %v676
    %v784 = vpop.f32.mrb[0].mxu0
    %v785 = vadd.f32 0.0, %v784
    %v786 = vpop.f32.mrb[0].mxu0
    %787 = vdwg.mxu0
    %v788 = vadd.f32 %v597, %v745
    %v789 = vadd.f32 %v602, %v750
    %v790 = vadd.f32 %v607, %v755
    %v791 = vadd.f32 %v612, %v760
    %v792 = vadd.f32 %v617, %v765
    %v793 = vadd.f32 %v622, %v770
    %v794 = vadd.f32 %v627, %v775
    %v795 = vadd.f32 %v632, %v780
    %v796 = vadd.f32 %v637, %v785
    %v797 = vld [vmem:[#allocation5] sm:$0x1]
    %v798 = vlaneseq
    %v799 = vshrl.u32 %v798, 7
    %v800 = vsub.s32 0, %v799
    %v801 = vrot.slane %v797, %v800
    %v802 = vmul.f32 %v788, %v801
    %v803 = vmul.f32 %v789, %v801
    %v804 = vmul.f32 %v790, %v801
    %v805 = vmul.f32 %v791, %v801
    %v806 = vmul.f32 %v792, %v801
    %v807 = vmul.f32 %v793, %v801
    %v808 = vmul.f32 %v794, %v801
    %v809 = vmul.f32 %v795, %v801
    %v810 = vmul.f32 %v796, %v801
    %v811 = vld [vmem:[#allocation5 + $0x1] sm:$0x1]
    %v812 = vlaneseq
    %v813 = vshrl.u32 %v812, 7
    %v814 = vsub.s32 0, %v813
    %v815 = vrot.slane %v811, %v814
    %v816 = vadd.f32 %v802, %v815
    %v817 = vadd.f32 %v803, %v815
    %v818 = vadd.f32 %v804, %v815
    %v819 = vadd.f32 %v805, %v815
    %v820 = vadd.f32 %v806, %v815
    %v821 = vadd.f32 %v807, %v815
    %v822 = vadd.f32 %v808, %v815
    %v823 = vadd.f32 %v809, %v815
    %v824 = vadd.f32 %v810, %v815
    %v825 = vmul.f32 %v816, 0.5
    %v826 = vmul.f32 %v817, 0.5
    %v827 = vmul.f32 %v818, 0.5
    %v828 = vmul.f32 %v819, 0.5
    %v829 = vmul.f32 %v820, 0.5
    %v830 = vmul.f32 %v821, 0.5
    %v831 = vmul.f32 %v822, 0.5
    %v832 = vmul.f32 %v823, 0.5
    %v833 = vmul.f32 %v824, 0.5
    %v834 = vmul.f32 %v816, 0.044715
    %v835 = vmul.f32 %v817, 0.044715
    %v836 = vmul.f32 %v818, 0.044715
    %v837 = vmul.f32 %v819, 0.044715
    %v838 = vmul.f32 %v820, 0.044715
    %v839 = vmul.f32 %v821, 0.044715
    %v840 = vmul.f32 %v822, 0.044715
    %v841 = vmul.f32 %v823, 0.044715
    %v842 = vmul.f32 %v824, 0.044715
    %v843 = vmul.f32 %v834, %v816
    %v844 = vmul.f32 %v835, %v817
    %v845 = vmul.f32 %v836, %v818
    %v846 = vmul.f32 %v837, %v819
    %v847 = vmul.f32 %v838, %v820
    %v848 = vmul.f32 %v839, %v821
    %v849 = vmul.f32 %v840, %v822
    %v850 = vmul.f32 %v841, %v823
    %v851 = vmul.f32 %v842, %v824
    %v852 = vmul.f32 %v843, %v816
    %v853 = vmul.f32 %v844, %v817
    %v854 = vmul.f32 %v845, %v818
    %v855 = vmul.f32 %v846, %v819
    %v856 = vmul.f32 %v847, %v820
    %v857 = vmul.f32 %v848, %v821
    %v858 = vmul.f32 %v849, %v822
    %v859 = vmul.f32 %v850, %v823
    %v860 = vmul.f32 %v851, %v824
    %v861 = vadd.f32 %v816, %v852
    %v862 = vadd.f32 %v817, %v853
    %v863 = vadd.f32 %v818, %v854
    %v864 = vadd.f32 %v819, %v855
    %v865 = vadd.f32 %v820, %v856
    %v866 = vadd.f32 %v821, %v857
    %v867 = vadd.f32 %v822, %v858
    %v868 = vadd.f32 %v823, %v859
    %v869 = vadd.f32 %v824, %v860
    %v870 = vmul.f32 %v861, 0.7978846
    %v871 = vmul.f32 %v862, 0.7978846
    %v872 = vmul.f32 %v863, 0.7978846
    %v873 = vmul.f32 %v864, 0.7978846
    %v874 = vmul.f32 %v865, 0.7978846
    %v875 = vmul.f32 %v866, 0.7978846
    %v876 = vmul.f32 %v867, 0.7978846
    %v877 = vmul.f32 %v868, 0.7978846
    %v878 = vmul.f32 %v869, 0.7978846
    %v879 = vtanh.pop %v870
    %v880 = vtanh.pop %v871
    %v881 = vtanh.pop %v872
    %v882 = vtanh.pop %v873
    %v883 = vtanh.pop %v874
    %v884 = vtanh.pop %v875
    %v885 = vtanh.pop %v876
    %v886 = vtanh.pop %v877
    %v887 = vtanh.pop %v878
    %v888 = vadd.f32 %v879, 1.0
    %v889 = vadd.f32 %v880, 1.0
    %v890 = vadd.f32 %v881, 1.0
    %v891 = vadd.f32 %v882, 1.0
    %v892 = vadd.f32 %v883, 1.0
    %v893 = vadd.f32 %v884, 1.0
    %v894 = vadd.f32 %v885, 1.0
    %v895 = vadd.f32 %v886, 1.0
    %v896 = vadd.f32 %v887, 1.0
    %v897 = vmul.f32 %v825, %v888
    %v898 = vmul.f32 %v826, %v889
    %v899 = vmul.f32 %v827, %v890
    %v900 = vmul.f32 %v828, %v891
    %v901 = vmul.f32 %v829, %v892
    %v902 = vmul.f32 %v830, %v893
    %v903 = vmul.f32 %v831, %v894
    %v904 = vmul.f32 %v832, %v895
    %v905 = vmul.f32 %v833, %v896
    %v906 = vld [vmem:[#allocation11] sm:$0xff]
    %v907 = vld [vmem:[#allocation11 + $0x8] sm:$0xff]
    %v908 = vld [vmem:[#allocation11 + $0x10] sm:$0xff]
    %v909 = vld [vmem:[#allocation11 + $0x18] sm:$0xff]
    %v910 = vld [vmem:[#allocation11 + $0x20] sm:$0xff]
    %v911 = vld [vmem:[#allocation11 + $0x28] sm:$0xff]
    %v912 = vld [vmem:[#allocation11 + $0x30] sm:$0xff]
    %v913 = vld [vmem:[#allocation11 + $0x38] sm:$0xff]
    %v914 = vld [vmem:[#allocation11 + $0x40] sm:$0xf]
    %vm915 = vcmask 539648
    %v917 = vsel %vm915, %v906, 0
    %v920 = vsel %vm915, %v907, 0
    %v923 = vsel %vm915, %v908, 0
    %v926 = vsel %vm915, %v909, 0
    %v929 = vsel %vm915, %v910, 0
    %v932 = vsel %vm915, %v911, 0
    %v935 = vsel %vm915, %v912, 0
    %v938 = vsel %vm915, %v913, 0
    %v941 = vsel %vm915, %v914, 0
    %vm943 = vcmask 1041408
    %v945 = vsel %vm943, %v905, 0
    %947 = vmatprep.subr.mxu0 0.0
    %948 = vmatpush1.msra.mxu0 %v897
    %949 = vmatprep.subr.mxu0 0.0
    %950 = vmatpush1.msra.mxu0 %v898
    %951 = vmatprep.subr.mxu0 0.0
    %952 = vmatpush1.msra.mxu0 %v899
    %953 = vmatprep.subr.mxu0 0.0
    %954 = vmatpush1.msra.mxu0 %v900
    %955 = vmatprep.subr.mxu0 0.0
    %956 = vmatpush1.msra.mxu0 %v901
    %957 = vmatprep.subr.mxu0 0.0
    %958 = vmatpush1.msra.mxu0 %v902
    %959 = vmatprep.subr.mxu0 0.0
    %960 = vmatpush1.msra.mxu0 %v903
    %961 = vmatprep.subr.mxu0 0.0
    %962 = vmatpush1.msra.mxu0 %v904
    %963 = vmatprep.subr.mxu0 0.0
    %964 = vmatpush1.msra.mxu0 %v945
    %965 = vmatprep.subr.mxu0 0.0
    %966 = vmatpush1.msra.mxu0 0.0
    %967 = vmatprep.subr.mxu0 0.0
    %968 = vmatpush1.msra.mxu0 0.0
    %969 = vmatprep.subr.mxu0 0.0
    %970 = vmatpush1.msra.mxu0 0.0
    %971 = vmatprep.subr.mxu0 0.0
    %972 = vmatpush1.msra.mxu0 0.0
    %973 = vmatprep.subr.mxu0 0.0
    %974 = vmatpush1.msra.mxu0 0.0
    %975 = vmatprep.subr.mxu0 0.0
    %976 = vmatpush1.msra.mxu0 0.0
    %977 = vmatprep.subr.mxu0 0.0
    %978 = vmatpush1.msra.mxu0 0.0
    %979 = vmatprep.subr.mxu0 0.0
    %980 = vmatpush1.msra.mxu0 0.0
    %981 = vmatprep.subr.mxu0 0.0
    %982 = vmatpush1.msra.mxu0 0.0
    %983 = vmatprep.subr.mxu0 0.0
    %984 = vmatpush1.msra.mxu0 0.0
    %985 = vmatprep.subr.mxu0 0.0
    %986 = vmatpush1.msra.mxu0 0.0
    %987 = vmatprep.subr.mxu0 0.0
    %988 = vmatpush1.msra.mxu0 0.0
    %989 = vmatprep.subr.mxu0 0.0
    %990 = vmatpush1.msra.mxu0 0.0
    %991 = vmatprep.subr.mxu0 0.0
    %992 = vmatpush1.msra.mxu0 0.0
    %993 = vmatprep.subr.mxu0 0.0
    %994 = vmatpush1.msra.mxu0 0.0
    %995 = vmatprep.subr.mxu0 0.0
    %996 = vmatpush1.msra.mxu0 0.0
    %997 = vmatprep.subr.mxu0 0.0
    %998 = vmatpush1.msra.mxu0 0.0
    %999 = vmatprep.subr.mxu0 0.0
    %1000 = vmatpush1.msra.mxu0 0.0
    %1001 = vmatprep.subr.mxu0 0.0
    %1002 = vmatpush1.msra.mxu0 0.0
    %1003 = vmatprep.subr.mxu0 0.0
    %1004 = vmatpush1.msra.mxu0 0.0
    %1005 = vmatprep.subr.mxu0 0.0
    %1006 = vmatpush1.msra.mxu0 0.0
    %1007 = vmatprep.subr.mxu0 0.0
    %1008 = vmatpush1.msra.mxu0 0.0
    %1009 = vmatprep.subr.mxu0 0.0
    %1010 = vmatpush1.msra.mxu0 0.0
    %1011 = vmatprep.mubr.f32.mxu0 0.0
    %1012 = vmatmul.mubr.f32.gmra.mrb[0].mxu0 %v917
    %v1013 = vpop.f32.mrb[0].mxu0
    %v1014 = vadd.f32 0.0, %v1013
    %v1015 = vpop.f32.mrb[0].mxu0
    %1016 = vmatprep.mubr.f32.mxu0 0.0
    %1017 = vmatmul.mubr.f32.gmra.mrb[0].mxu0 %v920
    %v1018 = vpop.f32.mrb[0].mxu0
    %v1019 = vadd.f32 0.0, %v1018
    %v1020 = vpop.f32.mrb[0].mxu0
    %1021 = vmatprep.mubr.f32.mxu0 0.0
    %1022 = vmatmul.mubr.f32.gmra.mrb[0].mxu0 %v923
    %v1023 = vpop.f32.mrb[0].mxu0
    %v1024 = vadd.f32 0.0, %v1023
    %v1025 = vpop.f32.mrb[0].mxu0
    %1026 = vmatprep.mubr.f32.mxu0 0.0
    %1027 = vmatmul.mubr.f32.gmra.mrb[0].mxu0 %v926
    %v1028 = vpop.f32.mrb[0].mxu0
    %v1029 = vadd.f32 0.0, %v1028
    %v1030 = vpop.f32.mrb[0].mxu0
    %1031 = vmatprep.mubr.f32.mxu0 0.0
    %1032 = vmatmul.mubr.f32.gmra.mrb[0].mxu0 %v929
    %v1033 = vpop.f32.mrb[0].mxu0
    %v1034 = vadd.f32 0.0, %v1033
    %v1035 = vpop.f32.mrb[0].mxu0
    %1036 = vmatprep.mubr.f32.mxu0 0.0
    %1037 = vmatmul.mubr.f32.gmra.mrb[0].mxu0 %v932
    %v1038 = vpop.f32.mrb[0].mxu0
    %v1039 = vadd.f32 0.0, %v1038
    %v1040 = vpop.f32.mrb[0].mxu0
    %1041 = vmatprep.mubr.f32.mxu0 0.0
    %1042 = vmatmul.mubr.f32.gmra.mrb[0].mxu0 %v935
    %v1043 = vpop.f32.mrb[0].mxu0
    %v1044 = vadd.f32 0.0, %v1043
    %v1045 = vpop.f32.mrb[0].mxu0
    %1046 = vmatprep.mubr.f32.mxu0 0.0
    %1047 = vmatmul.mubr.f32.gmra.mrb[0].mxu0 %v938
    %v1048 = vpop.f32.mrb[0].mxu0
    %v1049 = vadd.f32 0.0, %v1048
    %v1050 = vpop.f32.mrb[0].mxu0
    %1051 = vmatprep.mubr.f32.mxu0 0.0
    %1052 = vmatmul.mubr.f32.gmra.mrb[0].mxu0 %v941
    %v1053 = vpop.f32.mrb[0].mxu0
    %v1054 = vadd.f32 0.0, %v1053
    %v1055 = vpop.f32.mrb[0].mxu0
    %1056 = vdwg.mxu0
    %v1057 = vld [vmem:[%s9] sm:$0xff]
    %v1058 = vld [vmem:[%s9 + $0x8] sm:$0xff]
    %v1059 = vld [vmem:[%s9 + $0x10] sm:$0xff]
    %v1060 = vld [vmem:[%s9 + $0x18] sm:$0xff]
    %v1061 = vld [vmem:[%s9 + $0x20] sm:$0xff]
    %v1062 = vld [vmem:[%s9 + $0x28] sm:$0xff]
    %v1063 = vld [vmem:[%s9 + $0x30] sm:$0xff]
    %v1064 = vld [vmem:[%s9 + $0x38] sm:$0xff]
    %v1065 = vld [vmem:[%s9 + $0x40] sm:$0xff]
    %v1066 = vld [vmem:[%s9 + $0x48] sm:$0xff]
    %v1067 = vld [vmem:[%s9 + $0x50] sm:$0xff]
    %v1068 = vld [vmem:[%s9 + $0x58] sm:$0xff]
    %v1069 = vld [vmem:[%s9 + $0x60] sm:$0xff]
    %v1070 = vld [vmem:[%s9 + $0x68] sm:$0xff]
    %v1071 = vld [vmem:[%s9 + $0x70] sm:$0xff]
    %v1072 = vld [vmem:[%s9 + $0x78] sm:$0xff]
    %s1073 = scalar_lea.vmem %s9, 128
    %v1074 = vld [vmem:[%s1073] sm:$0xff]
    %v1075 = vld [vmem:[%s1073 + $0x8] sm:$0xff]
    %v1076 = vld [vmem:[%s1073 + $0x10] sm:$0xff]
    %v1077 = vld [vmem:[%s1073 + $0x18] sm:$0xff]
    %v1078 = vld [vmem:[%s1073 + $0x20] sm:$0xff]
    %v1079 = vld [vmem:[%s1073 + $0x28] sm:$0xff]
    %v1080 = vld [vmem:[%s1073 + $0x30] sm:$0xff]
    %v1081 = vld [vmem:[%s1073 + $0x38] sm:$0xff]
    %v1082 = vld [vmem:[%s1073 + $0x40] sm:$0xff]
    %v1083 = vld [vmem:[%s1073 + $0x48] sm:$0xff]
    %v1084 = vld [vmem:[%s1073 + $0x50] sm:$0xff]
    %v1085 = vld [vmem:[%s1073 + $0x58] sm:$0xff]
    %v1086 = vld [vmem:[%s1073 + $0x60] sm:$0xff]
    %v1087 = vld [vmem:[%s1073 + $0x68] sm:$0xff]
    %v1088 = vld [vmem:[%s1073 + $0x70] sm:$0xff]
    %v1089 = vld [vmem:[%s1073 + $0x78] sm:$0xff]
    %v1099 = vrot.slane %v1014, 1
    %v1100 = vrot.slane %v1019, 1
    %v1101 = vsel %vm365, %v1099, %v1100
    %v1102 = vrot.slane %v1024, 1
    %v1103 = vsel %vm365, %v1100, %v1102
    %v1104 = vrot.slane %v1029, 1
    %v1105 = vsel %vm365, %v1102, %v1104
    %v1106 = vrot.slane %v1034, 1
    %v1107 = vsel %vm365, %v1104, %v1106
    %v1108 = vrot.slane %v1039, 1
    %v1109 = vsel %vm365, %v1106, %v1108
    %v1110 = vrot.slane %v1044, 1
    %v1111 = vsel %vm365, %v1108, %v1110
    %v1112 = vrot.slane %v1049, 1
    %v1113 = vsel %vm365, %v1110, %v1112
    %v1114 = vrot.slane %v1054, 1
    %v1115 = vsel %vm365, %v1112, %v1114
    %1125 = vmatprep.subr.mxu0 0.0
    %1126 = vmatpush1.msra.mxu0 %v1074
    %1127 = vmatprep.subr.mxu0 0.0
    %1128 = vmatpush1.msra.mxu0 %v1075
    %1129 = vmatprep.subr.mxu0 0.0
    %1130 = vmatpush1.msra.mxu0 %v1076
    %1131 = vmatprep.subr.mxu0 0.0
    %1132 = vmatpush1.msra.mxu0 %v1077
    %1133 = vmatprep.subr.mxu0 0.0
    %1134 = vmatpush1.msra.mxu0 %v1078
    %1135 = vmatprep.subr.mxu0 0.0
    %1136 = vmatpush1.msra.mxu0 %v1079
    %1137 = vmatprep.subr.mxu0 0.0
    %1138 = vmatpush1.msra.mxu0 %v1080
    %1139 = vmatprep.subr.mxu0 0.0
    %1140 = vmatpush1.msra.mxu0 %v1081
    %1141 = vmatprep.subr.mxu0 0.0
    %1142 = vmatpush1.msra.mxu0 %v1082
    %1143 = vmatprep.subr.mxu0 0.0
    %1144 = vmatpush1.msra.mxu0 %v1083
    %1145 = vmatprep.subr.mxu0 0.0
    %1146 = vmatpush1.msra.mxu0 %v1084
    %1147 = vmatprep.subr.mxu0 0.0
    %1148 = vmatpush1.msra.mxu0 %v1085
    %1149 = vmatprep.subr.mxu0 0.0
    %1150 = vmatpush1.msra.mxu0 %v1086
    %1151 = vmatprep.subr.mxu0 0.0
    %1152 = vmatpush1.msra.mxu0 %v1087
    %1153 = vmatprep.subr.mxu0 0.0
    %1154 = vmatpush1.msra.mxu0 %v1088
    %1155 = vmatprep.subr.mxu0 0.0
    %1156 = vmatpush1.msra.mxu0 %v1089
    %1157 = vmatprep.subr.mxu0 0.0
    %1158 = vmatpush1.msra.mxu0 0.0
    %1159 = vmatprep.subr.mxu0 0.0
    %1160 = vmatpush1.msra.mxu0 0.0
    %1161 = vmatprep.subr.mxu0 0.0
    %1162 = vmatpush1.msra.mxu0 0.0
    %1163 = vmatprep.subr.mxu0 0.0
    %1164 = vmatpush1.msra.mxu0 0.0
    %1165 = vmatprep.subr.mxu0 0.0
    %1166 = vmatpush1.msra.mxu0 0.0
    %1167 = vmatprep.subr.mxu0 0.0
    %1168 = vmatpush1.msra.mxu0 0.0
    %1169 = vmatprep.subr.mxu0 0.0
    %1170 = vmatpush1.msra.mxu0 0.0
    %1171 = vmatprep.subr.mxu0 0.0
    %1172 = vmatpush1.msra.mxu0 0.0
    %1173 = vmatprep.subr.mxu0 0.0
    %1174 = vmatpush1.msra.mxu0 0.0
    %1175 = vmatprep.subr.mxu0 0.0
    %1176 = vmatpush1.msra.mxu0 0.0
    %1177 = vmatprep.subr.mxu0 0.0
    %1178 = vmatpush1.msra.mxu0 0.0
    %1179 = vmatprep.subr.mxu0 0.0
    %1180 = vmatpush1.msra.mxu0 0.0
    %1181 = vmatprep.subr.mxu0 0.0
    %1182 = vmatpush1.msra.mxu0 0.0
    %1183 = vmatprep.subr.mxu0 0.0
    %1184 = vmatpush1.msra.mxu0 0.0
    %1185 = vmatprep.subr.mxu0 0.0
    %1186 = vmatpush1.msra.mxu0 0.0
    %1187 = vmatprep.subr.mxu0 0.0
    %1188 = vmatpush1.msra.mxu0 0.0
    %1189 = vmatprep.mubr.f32.mxu0 0.0
    %1190 = vmatmul.mubr.f32.gmra.mrb[0].mxu0 %v1101
    %v1191 = vpop.f32.mrb[0].mxu0
    %v1192 = vadd.f32 0.0, %v1191
    %v1193 = vpop.f32.mrb[0].mxu0
    %1194 = vmatprep.mubr.f32.mxu0 0.0
    %1195 = vmatmul.mubr.f32.gmra.mrb[0].mxu0 %v1103
    %v1196 = vpop.f32.mrb[0].mxu0
    %v1197 = vadd.f32 0.0, %v1196
    %v1198 = vpop.f32.mrb[0].mxu0
    %1199 = vmatprep.mubr.f32.mxu0 0.0
    %1200 = vmatmul.mubr.f32.gmra.mrb[0].mxu0 %v1105
    %v1201 = vpop.f32.mrb[0].mxu0
    %v1202 = vadd.f32 0.0, %v1201
    %v1203 = vpop.f32.mrb[0].mxu0
    %1204 = vmatprep.mubr.f32.mxu0 0.0
    %1205 = vmatmul.mubr.f32.gmra.mrb[0].mxu0 %v1107
    %v1206 = vpop.f32.mrb[0].mxu0
    %v1207 = vadd.f32 0.0, %v1206
    %v1208 = vpop.f32.mrb[0].mxu0
    %1209 = vmatprep.mubr.f32.mxu0 0.0
    %1210 = vmatmul.mubr.f32.gmra.mrb[0].mxu0 %v1109
    %v1211 = vpop.f32.mrb[0].mxu0
    %v1212 = vadd.f32 0.0, %v1211
    %v1213 = vpop.f32.mrb[0].mxu0
    %1214 = vmatprep.mubr.f32.mxu0 0.0
    %1215 = vmatmul.mubr.f32.gmra.mrb[0].mxu0 %v1111
    %v1216 = vpop.f32.mrb[0].mxu0
    %v1217 = vadd.f32 0.0, %v1216
    %v1218 = vpop.f32.mrb[0].mxu0
    %1219 = vmatprep.mubr.f32.mxu0 0.0
    %1220 = vmatmul.mubr.f32.gmra.mrb[0].mxu0 %v1113
    %v1221 = vpop.f32.mrb[0].mxu0
    %v1222 = vadd.f32 0.0, %v1221
    %v1223 = vpop.f32.mrb[0].mxu0
    %1224 = vmatprep.mubr.f32.mxu0 0.0
    %1225 = vmatmul.mubr.f32.gmra.mrb[0].mxu0 %v1115
    %v1226 = vpop.f32.mrb[0].mxu0
    %v1227 = vadd.f32 0.0, %v1226
    %v1228 = vpop.f32.mrb[0].mxu0
    %1229 = vmatprep.mubr.f32.mxu0 0.0
    %1230 = vmatmul.mubr.f32.gmra.mrb[0].mxu0 %v1114
    %v1231 = vpop.f32.mrb[0].mxu0
    %v1232 = vadd.f32 0.0, %v1231
    %v1233 = vpop.f32.mrb[0].mxu0
    %1234 = vdwg.mxu0
    %1235 = vmatprep.subr.mxu0 0.0
    %1236 = vmatpush1.msra.mxu0 %v1057
    %1237 = vmatprep.subr.mxu0 0.0
    %1238 = vmatpush1.msra.mxu0 %v1058
    %1239 = vmatprep.subr.mxu0 0.0
    %1240 = vmatpush1.msra.mxu0 %v1059
    %1241 = vmatprep.subr.mxu0 0.0
    %1242 = vmatpush1.msra.mxu0 %v1060
    %1243 = vmatprep.subr.mxu0 0.0
    %1244 = vmatpush1.msra.mxu0 %v1061
    %1245 = vmatprep.subr.mxu0 0.0
    %1246 = vmatpush1.msra.mxu0 %v1062
    %1247 = vmatprep.subr.mxu0 0.0
    %1248 = vmatpush1.msra.mxu0 %v1063
    %1249 = vmatprep.subr.mxu0 0.0
    %1250 = vmatpush1.msra.mxu0 %v1064
    %1251 = vmatprep.subr.mxu0 0.0
    %1252 = vmatpush1.msra.mxu0 %v1065
    %1253 = vmatprep.subr.mxu0 0.0
    %1254 = vmatpush1.msra.mxu0 %v1066
    %1255 = vmatprep.subr.mxu0 0.0
    %1256 = vmatpush1.msra.mxu0 %v1067
    %1257 = vmatprep.subr.mxu0 0.0
    %1258 = vmatpush1.msra.mxu0 %v1068
    %1259 = vmatprep.subr.mxu0 0.0
    %1260 = vmatpush1.msra.mxu0 %v1069
    %1261 = vmatprep.subr.mxu0 0.0
    %1262 = vmatpush1.msra.mxu0 %v1070
    %1263 = vmatprep.subr.mxu0 0.0
    %1264 = vmatpush1.msra.mxu0 %v1071
    %1265 = vmatprep.subr.mxu0 0.0
    %1266 = vmatpush1.msra.mxu0 %v1072
    %1267 = vmatprep.subr.mxu0 0.0
    %1268 = vmatpush1.msra.mxu0 0.0
    %1269 = vmatprep.subr.mxu0 0.0
    %1270 = vmatpush1.msra.mxu0 0.0
    %1271 = vmatprep.subr.mxu0 0.0
    %1272 = vmatpush1.msra.mxu0 0.0
    %1273 = vmatprep.subr.mxu0 0.0
    %1274 = vmatpush1.msra.mxu0 0.0
    %1275 = vmatprep.subr.mxu0 0.0
    %1276 = vmatpush1.msra.mxu0 0.0
    %1277 = vmatprep.subr.mxu0 0.0
    %1278 = vmatpush1.msra.mxu0 0.0
    %1279 = vmatprep.subr.mxu0 0.0
    %1280 = vmatpush1.msra.mxu0 0.0
    %1281 = vmatprep.subr.mxu0 0.0
    %1282 = vmatpush1.msra.mxu0 0.0
    %1283 = vmatprep.subr.mxu0 0.0
    %1284 = vmatpush1.msra.mxu0 0.0
    %1285 = vmatprep.subr.mxu0 0.0
    %1286 = vmatpush1.msra.mxu0 0.0
    %1287 = vmatprep.subr.mxu0 0.0
    %1288 = vmatpush1.msra.mxu0 0.0
    %1289 = vmatprep.subr.mxu0 0.0
    %1290 = vmatpush1.msra.mxu0 0.0
    %1291 = vmatprep.subr.mxu0 0.0
    %1292 = vmatpush1.msra.mxu0 0.0
    %1293 = vmatprep.subr.mxu0 0.0
    %1294 = vmatpush1.msra.mxu0 0.0
    %1295 = vmatprep.subr.mxu0 0.0
    %1296 = vmatpush1.msra.mxu0 0.0
    %1297 = vmatprep.subr.mxu0 0.0
    %1298 = vmatpush1.msra.mxu0 0.0
    %1299 = vmatprep.mubr.f32.mxu0 0.0
    %1300 = vmatmul.mubr.f32.gmra.mrb[0].mxu0 %v1014
    %v1301 = vpop.f32.mrb[0].mxu0
    %v1302 = vadd.f32 %v1192, %v1301
    %v1303 = vpop.f32.mrb[0].mxu0
    %1304 = vmatprep.mubr.f32.mxu0 0.0
    %1305 = vmatmul.mubr.f32.gmra.mrb[0].mxu0 %v1019
    %v1306 = vpop.f32.mrb[0].mxu0
    %v1307 = vadd.f32 %v1197, %v1306
    %v1308 = vpop.f32.mrb[0].mxu0
    %1309 = vmatprep.mubr.f32.mxu0 0.0
    %1310 = vmatmul.mubr.f32.gmra.mrb[0].mxu0 %v1024
    %v1311 = vpop.f32.mrb[0].mxu0
    %v1312 = vadd.f32 %v1202, %v1311
    %v1313 = vpop.f32.mrb[0].mxu0
    %1314 = vmatprep.mubr.f32.mxu0 0.0
    %1315 = vmatmul.mubr.f32.gmra.mrb[0].mxu0 %v1029
    %v1316 = vpop.f32.mrb[0].mxu0
    %v1317 = vadd.f32 %v1207, %v1316
    %v1318 = vpop.f32.mrb[0].mxu0
    %1319 = vmatprep.mubr.f32.mxu0 0.0
    %1320 = vmatmul.mubr.f32.gmra.mrb[0].mxu0 %v1034
    %v1321 = vpop.f32.mrb[0].mxu0
    %v1322 = vadd.f32 %v1212, %v1321
    %v1323 = vpop.f32.mrb[0].mxu0
    %1324 = vmatprep.mubr.f32.mxu0 0.0
    %1325 = vmatmul.mubr.f32.gmra.mrb[0].mxu0 %v1039
    %v1326 = vpop.f32.mrb[0].mxu0
    %v1327 = vadd.f32 %v1217, %v1326
    %v1328 = vpop.f32.mrb[0].mxu0
    %1329 = vmatprep.mubr.f32.mxu0 0.0
    %1330 = vmatmul.mubr.f32.gmra.mrb[0].mxu0 %v1044
    %v1331 = vpop.f32.mrb[0].mxu0
    %v1332 = vadd.f32 %v1222, %v1331
    %v1333 = vpop.f32.mrb[0].mxu0
    %1334 = vmatprep.mubr.f32.mxu0 0.0
    %1335 = vmatmul.mubr.f32.gmra.mrb[0].mxu0 %v1049
    %v1336 = vpop.f32.mrb[0].mxu0
    %v1337 = vadd.f32 %v1227, %v1336
    %v1338 = vpop.f32.mrb[0].mxu0
    %1339 = vmatprep.mubr.f32.mxu0 0.0
    %1340 = vmatmul.mubr.f32.gmra.mrb[0].mxu0 %v1054
    %v1341 = vpop.f32.mrb[0].mxu0
    %v1342 = vadd.f32 %v1232, %v1341
    %v1343 = vpop.f32.mrb[0].mxu0
    %1344 = vdwg.mxu0
    %s1345 = scalar_lea.vmem %s9, 256
    %v1346 = vld [vmem:[%s1345] sm:$0xff]
    %v1347 = vld [vmem:[%s1345 + $0x8] sm:$0xff]
    %v1348 = vld [vmem:[%s1345 + $0x10] sm:$0xff]
    %v1349 = vld [vmem:[%s1345 + $0x18] sm:$0xff]
    %v1350 = vld [vmem:[%s1345 + $0x20] sm:$0xff]
    %v1351 = vld [vmem:[%s1345 + $0x28] sm:$0xff]
    %v1352 = vld [vmem:[%s1345 + $0x30] sm:$0xff]
    %v1353 = vld [vmem:[%s1345 + $0x38] sm:$0xff]
    %v1354 = vld [vmem:[%s1345 + $0x40] sm:$0xff]
    %v1355 = vld [vmem:[%s1345 + $0x48] sm:$0xff]
    %v1356 = vld [vmem:[%s1345 + $0x50] sm:$0xff]
    %v1357 = vld [vmem:[%s1345 + $0x58] sm:$0xff]
    %v1358 = vld [vmem:[%s1345 + $0x60] sm:$0xff]
    %v1359 = vld [vmem:[%s1345 + $0x68] sm:$0xff]
    %v1360 = vld [vmem:[%s1345 + $0x70] sm:$0xff]
    %v1361 = vld [vmem:[%s1345 + $0x78] sm:$0xff]
    %v1362 = vrot.slane %v1014, 2
    %v1363 = vrot.slane %v1019, 2
    %v1364 = vsel %vm642, %v1362, %v1363
    %v1365 = vrot.slane %v1024, 2
    %v1366 = vsel %vm642, %v1363, %v1365
    %v1367 = vrot.slane %v1029, 2
    %v1368 = vsel %vm642, %v1365, %v1367
    %v1369 = vrot.slane %v1034, 2
    %v1370 = vsel %vm642, %v1367, %v1369
    %v1371 = vrot.slane %v1039, 2
    %v1372 = vsel %vm642, %v1369, %v1371
    %v1373 = vrot.slane %v1044, 2
    %v1374 = vsel %vm642, %v1371, %v1373
    %v1375 = vrot.slane %v1049, 2
    %v1376 = vsel %vm642, %v1373, %v1375
    %v1377 = vrot.slane %v1054, 2
    %v1378 = vsel %vm642, %v1375, %v1377
    %1388 = vmatprep.subr.mxu0 0.0
    %1389 = vmatpush1.msra.mxu0 %v1346
    %1390 = vmatprep.subr.mxu0 0.0
    %1391 = vmatpush1.msra.mxu0 %v1347
    %1392 = vmatprep.subr.mxu0 0.0
    %1393 = vmatpush1.msra.mxu0 %v1348
    %1394 = vmatprep.subr.mxu0 0.0
    %1395 = vmatpush1.msra.mxu0 %v1349
    %1396 = vmatprep.subr.mxu0 0.0
    %1397 = vmatpush1.msra.mxu0 %v1350
    %1398 = vmatprep.subr.mxu0 0.0
    %1399 = vmatpush1.msra.mxu0 %v1351
    %1400 = vmatprep.subr.mxu0 0.0
    %1401 = vmatpush1.msra.mxu0 %v1352
    %1402 = vmatprep.subr.mxu0 0.0
    %1403 = vmatpush1.msra.mxu0 %v1353
    %1404 = vmatprep.subr.mxu0 0.0
    %1405 = vmatpush1.msra.mxu0 %v1354
    %1406 = vmatprep.subr.mxu0 0.0
    %1407 = vmatpush1.msra.mxu0 %v1355
    %1408 = vmatprep.subr.mxu0 0.0
    %1409 = vmatpush1.msra.mxu0 %v1356
    %1410 = vmatprep.subr.mxu0 0.0
    %1411 = vmatpush1.msra.mxu0 %v1357
    %1412 = vmatprep.subr.mxu0 0.0
    %1413 = vmatpush1.msra.mxu0 %v1358
    %1414 = vmatprep.subr.mxu0 0.0
    %1415 = vmatpush1.msra.mxu0 %v1359
    %1416 = vmatprep.subr.mxu0 0.0
    %1417 = vmatpush1.msra.mxu0 %v1360
    %1418 = vmatprep.subr.mxu0 0.0
    %1419 = vmatpush1.msra.mxu0 %v1361
    %1420 = vmatprep.subr.mxu0 0.0
    %1421 = vmatpush1.msra.mxu0 0.0
    %1422 = vmatprep.subr.mxu0 0.0
    %1423 = vmatpush1.msra.mxu0 0.0
    %1424 = vmatprep.subr.mxu0 0.0
    %1425 = vmatpush1.msra.mxu0 0.0
    %1426 = vmatprep.subr.mxu0 0.0
    %1427 = vmatpush1.msra.mxu0 0.0
    %1428 = vmatprep.subr.mxu0 0.0
    %1429 = vmatpush1.msra.mxu0 0.0
    %1430 = vmatprep.subr.mxu0 0.0
    %1431 = vmatpush1.msra.mxu0 0.0
    %1432 = vmatprep.subr.mxu0 0.0
    %1433 = vmatpush1.msra.mxu0 0.0
    %1434 = vmatprep.subr.mxu0 0.0
    %1435 = vmatpush1.msra.mxu0 0.0
    %1436 = vmatprep.subr.mxu0 0.0
    %1437 = vmatpush1.msra.mxu0 0.0
    %1438 = vmatprep.subr.mxu0 0.0
    %1439 = vmatpush1.msra.mxu0 0.0
    %1440 = vmatprep.subr.mxu0 0.0
    %1441 = vmatpush1.msra.mxu0 0.0
    %1442 = vmatprep.subr.mxu0 0.0
    %1443 = vmatpush1.msra.mxu0 0.0
    %1444 = vmatprep.subr.mxu0 0.0
    %1445 = vmatpush1.msra.mxu0 0.0
    %1446 = vmatprep.subr.mxu0 0.0
    %1447 = vmatpush1.msra.mxu0 0.0
    %1448 = vmatprep.subr.mxu0 0.0
    %1449 = vmatpush1.msra.mxu0 0.0
    %1450 = vmatprep.subr.mxu0 0.0
    %1451 = vmatpush1.msra.mxu0 0.0
    %1452 = vmatprep.mubr.f32.mxu0 0.0
    %1453 = vmatmul.mubr.f32.gmra.mrb[0].mxu0 %v1364
    %v1454 = vpop.f32.mrb[0].mxu0
    %v1455 = vadd.f32 0.0, %v1454
    %v1456 = vpop.f32.mrb[0].mxu0
    %1457 = vmatprep.mubr.f32.mxu0 0.0
    %1458 = vmatmul.mubr.f32.gmra.mrb[0].mxu0 %v1366
    %v1459 = vpop.f32.mrb[0].mxu0
    %v1460 = vadd.f32 0.0, %v1459
    %v1461 = vpop.f32.mrb[0].mxu0
    %1462 = vmatprep.mubr.f32.mxu0 0.0
    %1463 = vmatmul.mubr.f32.gmra.mrb[0].mxu0 %v1368
    %v1464 = vpop.f32.mrb[0].mxu0
    %v1465 = vadd.f32 0.0, %v1464
    %v1466 = vpop.f32.mrb[0].mxu0
    %1467 = vmatprep.mubr.f32.mxu0 0.0
    %1468 = vmatmul.mubr.f32.gmra.mrb[0].mxu0 %v1370
    %v1469 = vpop.f32.mrb[0].mxu0
    %v1470 = vadd.f32 0.0, %v1469
    %v1471 = vpop.f32.mrb[0].mxu0
    %1472 = vmatprep.mubr.f32.mxu0 0.0
    %1473 = vmatmul.mubr.f32.gmra.mrb[0].mxu0 %v1372
    %v1474 = vpop.f32.mrb[0].mxu0
    %v1475 = vadd.f32 0.0, %v1474
    %v1476 = vpop.f32.mrb[0].mxu0
    %1477 = vmatprep.mubr.f32.mxu0 0.0
    %1478 = vmatmul.mubr.f32.gmra.mrb[0].mxu0 %v1374
    %v1479 = vpop.f32.mrb[0].mxu0
    %v1480 = vadd.f32 0.0, %v1479
    %v1481 = vpop.f32.mrb[0].mxu0
    %1482 = vmatprep.mubr.f32.mxu0 0.0
    %1483 = vmatmul.mubr.f32.gmra.mrb[0].mxu0 %v1376
    %v1484 = vpop.f32.mrb[0].mxu0
    %v1485 = vadd.f32 0.0, %v1484
    %v1486 = vpop.f32.mrb[0].mxu0
    %1487 = vmatprep.mubr.f32.mxu0 0.0
    %1488 = vmatmul.mubr.f32.gmra.mrb[0].mxu0 %v1378
    %v1489 = vpop.f32.mrb[0].mxu0
    %v1490 = vadd.f32 0.0, %v1489
    %v1491 = vpop.f32.mrb[0].mxu0
    %1492 = vmatprep.mubr.f32.mxu0 0.0
    %1493 = vmatmul.mubr.f32.gmra.mrb[0].mxu0 %v1377
    %v1494 = vpop.f32.mrb[0].mxu0
    %v1495 = vadd.f32 0.0, %v1494
    %v1496 = vpop.f32.mrb[0].mxu0
    %1497 = vdwg.mxu0
    %v1498 = vadd.f32 %v1302, %v1455
    %v1499 = vadd.f32 %v1307, %v1460
    %v1500 = vadd.f32 %v1312, %v1465
    %v1501 = vadd.f32 %v1317, %v1470
    %v1502 = vadd.f32 %v1322, %v1475
    %v1503 = vadd.f32 %v1327, %v1480
    %v1504 = vadd.f32 %v1332, %v1485
    %v1505 = vadd.f32 %v1337, %v1490
    %v1506 = vadd.f32 %v1342, %v1495
    %v1507 = vld [vmem:[#allocation7] sm:$0x1]
    %v1508 = vlaneseq
    %v1509 = vshrl.u32 %v1508, 7
    %v1510 = vsub.s32 0, %v1509
    %v1511 = vrot.slane %v1507, %v1510
    %v1512 = vmul.f32 %v1498, %v1511
    %v1513 = vmul.f32 %v1499, %v1511
    %v1514 = vmul.f32 %v1500, %v1511
    %v1515 = vmul.f32 %v1501, %v1511
    %v1516 = vmul.f32 %v1502, %v1511
    %v1517 = vmul.f32 %v1503, %v1511
    %v1518 = vmul.f32 %v1504, %v1511
    %v1519 = vmul.f32 %v1505, %v1511
    %v1520 = vmul.f32 %v1506, %v1511
    %v1521 = vld [vmem:[#allocation7 + $0x1] sm:$0x1]
    %v1522 = vlaneseq
    %v1523 = vshrl.u32 %v1522, 7
    %v1524 = vsub.s32 0, %v1523
    %v1525 = vrot.slane %v1521, %v1524
    %v1526 = vadd.f32 %v1512, %v1525
    %v1527 = vadd.f32 %v1513, %v1525
    %v1528 = vadd.f32 %v1514, %v1525
    %v1529 = vadd.f32 %v1515, %v1525
    %v1530 = vadd.f32 %v1516, %v1525
    %v1531 = vadd.f32 %v1517, %v1525
    %v1532 = vadd.f32 %v1518, %v1525
    %v1533 = vadd.f32 %v1519, %v1525
    %v1534 = vadd.f32 %v1520, %v1525
    %v1535 = vmul.f32 %v1526, 0.5
    %v1536 = vmul.f32 %v1527, 0.5
    %v1537 = vmul.f32 %v1528, 0.5
    %v1538 = vmul.f32 %v1529, 0.5
    %v1539 = vmul.f32 %v1530, 0.5
    %v1540 = vmul.f32 %v1531, 0.5
    %v1541 = vmul.f32 %v1532, 0.5
    %v1542 = vmul.f32 %v1533, 0.5
    %v1543 = vmul.f32 %v1534, 0.5
    %v1544 = vmul.f32 %v1526, 0.044715
    %v1545 = vmul.f32 %v1527, 0.044715
    %v1546 = vmul.f32 %v1528, 0.044715
    %v1547 = vmul.f32 %v1529, 0.044715
    %v1548 = vmul.f32 %v1530, 0.044715
    %v1549 = vmul.f32 %v1531, 0.044715
    %v1550 = vmul.f32 %v1532, 0.044715
    %v1551 = vmul.f32 %v1533, 0.044715
    %v1552 = vmul.f32 %v1534, 0.044715
    %v1553 = vmul.f32 %v1544, %v1526
    %v1554 = vmul.f32 %v1545, %v1527
    %v1555 = vmul.f32 %v1546, %v1528
    %v1556 = vmul.f32 %v1547, %v1529
    %v1557 = vmul.f32 %v1548, %v1530
    %v1558 = vmul.f32 %v1549, %v1531
    %v1559 = vmul.f32 %v1550, %v1532
    %v1560 = vmul.f32 %v1551, %v1533
    %v1561 = vmul.f32 %v1552, %v1534
    %v1562 = vmul.f32 %v1553, %v1526
    %v1563 = vmul.f32 %v1554, %v1527
    %v1564 = vmul.f32 %v1555, %v1528
    %v1565 = vmul.f32 %v1556, %v1529
    %v1566 = vmul.f32 %v1557, %v1530
    %v1567 = vmul.f32 %v1558, %v1531
    %v1568 = vmul.f32 %v1559, %v1532
    %v1569 = vmul.f32 %v1560, %v1533
    %v1570 = vmul.f32 %v1561, %v1534
    %v1571 = vadd.f32 %v1526, %v1562
    %v1572 = vadd.f32 %v1527, %v1563
    %v1573 = vadd.f32 %v1528, %v1564
    %v1574 = vadd.f32 %v1529, %v1565
    %v1575 = vadd.f32 %v1530, %v1566
    %v1576 = vadd.f32 %v1531, %v1567
    %v1577 = vadd.f32 %v1532, %v1568
    %v1578 = vadd.f32 %v1533, %v1569
    %v1579 = vadd.f32 %v1534, %v1570
    %v1580 = vmul.f32 %v1571, 0.7978846
    %v1581 = vmul.f32 %v1572, 0.7978846
    %v1582 = vmul.f32 %v1573, 0.7978846
    %v1583 = vmul.f32 %v1574, 0.7978846
    %v1584 = vmul.f32 %v1575, 0.7978846
    %v1585 = vmul.f32 %v1576, 0.7978846
    %v1586 = vmul.f32 %v1577, 0.7978846
    %v1587 = vmul.f32 %v1578, 0.7978846
    %v1588 = vmul.f32 %v1579, 0.7978846
    %v1589 = vtanh.pop %v1580
    %v1590 = vtanh.pop %v1581
    %v1591 = vtanh.pop %v1582
    %v1592 = vtanh.pop %v1583
    %v1593 = vtanh.pop %v1584
    %v1594 = vtanh.pop %v1585
    %v1595 = vtanh.pop %v1586
    %v1596 = vtanh.pop %v1587
    %v1597 = vtanh.pop %v1588
    %v1598 = vadd.f32 %v1589, 1.0
    %v1599 = vadd.f32 %v1590, 1.0
    %v1600 = vadd.f32 %v1591, 1.0
    %v1601 = vadd.f32 %v1592, 1.0
    %v1602 = vadd.f32 %v1593, 1.0
    %v1603 = vadd.f32 %v1594, 1.0
    %v1604 = vadd.f32 %v1595, 1.0
    %v1605 = vadd.f32 %v1596, 1.0
    %v1606 = vadd.f32 %v1597, 1.0
    %v1607 = vmul.f32 %v1535, %v1598
    %v1608 = vmul.f32 %v1536, %v1599
    %v1609 = vmul.f32 %v1537, %v1600
    %v1610 = vmul.f32 %v1538, %v1601
    %v1611 = vmul.f32 %v1539, %v1602
    %v1612 = vmul.f32 %v1540, %v1603
    %v1613 = vmul.f32 %v1541, %v1604
    %v1614 = vmul.f32 %v1542, %v1605
    %v1615 = vmul.f32 %v1543, %v1606
    %v1616 = vld [vmem:[#allocation13] sm:$0xff]
    %v1617 = vld [vmem:[#allocation13 + $0x8] sm:$0xff]
    %v1618 = vld [vmem:[#allocation13 + $0x10] sm:$0xff]
    %v1619 = vld [vmem:[#allocation13 + $0x18] sm:$0xff]
    %v1620 = vld [vmem:[#allocation13 + $0x20] sm:$0xf]
    %v1622 = vsel %vm915, %v1616, 0
    %v1625 = vsel %vm915, %v1617, 0
    %v1628 = vsel %vm915, %v1618, 0
    %v1631 = vsel %vm915, %v1619, 0
    %v1634 = vsel %vm915, %v1620, 0
    %v1637 = vsel %vm943, %v1615, 0
    %1639 = vmatprep.subr.mxu0 0.0
    %1640 = vmatpush1.msra.mxu0 %v1607
    %1641 = vmatprep.subr.mxu0 0.0
    %1642 = vmatpush1.msra.mxu0 %v1608
    %1643 = vmatprep.subr.mxu0 0.0
    %1644 = vmatpush1.msra.mxu0 %v1609
    %1645 = vmatprep.subr.mxu0 0.0
    %1646 = vmatpush1.msra.mxu0 %v1610
    %1647 = vmatprep.subr.mxu0 0.0
    %1648 = vmatpush1.msra.mxu0 %v1611
    %1649 = vmatprep.subr.mxu0 0.0
    %1650 = vmatpush1.msra.mxu0 %v1612
    %1651 = vmatprep.subr.mxu0 0.0
    %1652 = vmatpush1.msra.mxu0 %v1613
    %1653 = vmatprep.subr.mxu0 0.0
    %1654 = vmatpush1.msra.mxu0 %v1614
    %1655 = vmatprep.subr.mxu0 0.0
    %1656 = vmatpush1.msra.mxu0 %v1637
    %1657 = vmatprep.subr.mxu0 0.0
    %1658 = vmatpush1.msra.mxu0 0.0
    %1659 = vmatprep.subr.mxu0 0.0
    %1660 = vmatpush1.msra.mxu0 0.0
    %1661 = vmatprep.subr.mxu0 0.0
    %1662 = vmatpush1.msra.mxu0 0.0
    %1663 = vmatprep.subr.mxu0 0.0
    %1664 = vmatpush1.msra.mxu0 0.0
    %1665 = vmatprep.subr.mxu0 0.0
    %1666 = vmatpush1.msra.mxu0 0.0
    %1667 = vmatprep.subr.mxu0 0.0
    %1668 = vmatpush1.msra.mxu0 0.0
    %1669 = vmatprep.subr.mxu0 0.0
    %1670 = vmatpush1.msra.mxu0 0.0
    %1671 = vmatprep.subr.mxu0 0.0
    %1672 = vmatpush1.msra.mxu0 0.0
    %1673 = vmatprep.subr.mxu0 0.0
    %1674 = vmatpush1.msra.mxu0 0.0
    %1675 = vmatprep.subr.mxu0 0.0
    %1676 = vmatpush1.msra.mxu0 0.0
    %1677 = vmatprep.subr.mxu0 0.0
    %1678 = vmatpush1.msra.mxu0 0.0
    %1679 = vmatprep.subr.mxu0 0.0
    %1680 = vmatpush1.msra.mxu0 0.0
    %1681 = vmatprep.subr.mxu0 0.0
    %1682 = vmatpush1.msra.mxu0 0.0
    %1683 = vmatprep.subr.mxu0 0.0
    %1684 = vmatpush1.msra.mxu0 0.0
    %1685 = vmatprep.subr.mxu0 0.0
    %1686 = vmatpush1.msra.mxu0 0.0
    %1687 = vmatprep.subr.mxu0 0.0
    %1688 = vmatpush1.msra.mxu0 0.0
    %1689 = vmatprep.subr.mxu0 0.0
    %1690 = vmatpush1.msra.mxu0 0.0
    %1691 = vmatprep.subr.mxu0 0.0
    %1692 = vmatpush1.msra.mxu0 0.0
    %1693 = vmatprep.subr.mxu0 0.0
    %1694 = vmatpush1.msra.mxu0 0.0
    %1695 = vmatprep.subr.mxu0 0.0
    %1696 = vmatpush1.msra.mxu0 0.0
    %1697 = vmatprep.subr.mxu0 0.0
    %1698 = vmatpush1.msra.mxu0 0.0
    %1699 = vmatprep.subr.mxu0 0.0
    %1700 = vmatpush1.msra.mxu0 0.0
    %1701 = vmatprep.subr.mxu0 0.0
    %1702 = vmatpush1.msra.mxu0 0.0
    %1703 = vmatprep.mubr.f32.mxu0 0.0
    %1704 = vmatmul.mubr.f32.gmra.mrb[0].mxu0 %v1622
    %v1705 = vpop.f32.mrb[0].mxu0
    %v1706 = vadd.f32 0.0, %v1705
    %v1707 = vpop.f32.mrb[0].mxu0
    %1708 = vmatprep.mubr.f32.mxu0 0.0
    %1709 = vmatmul.mubr.f32.gmra.mrb[0].mxu0 %v1625
    %v1710 = vpop.f32.mrb[0].mxu0
    %v1711 = vadd.f32 0.0, %v1710
    %v1712 = vpop.f32.mrb[0].mxu0
    %1713 = vmatprep.mubr.f32.mxu0 0.0
    %1714 = vmatmul.mubr.f32.gmra.mrb[0].mxu0 %v1628
    %v1715 = vpop.f32.mrb[0].mxu0
    %v1716 = vadd.f32 0.0, %v1715
    %v1717 = vpop.f32.mrb[0].mxu0
    %1718 = vmatprep.mubr.f32.mxu0 0.0
    %1719 = vmatmul.mubr.f32.gmra.mrb[0].mxu0 %v1631
    %v1720 = vpop.f32.mrb[0].mxu0
    %v1721 = vadd.f32 0.0, %v1720
    %v1722 = vpop.f32.mrb[0].mxu0
    %1723 = vmatprep.mubr.f32.mxu0 0.0
    %1724 = vmatmul.mubr.f32.gmra.mrb[0].mxu0 %v1634
    %v1725 = vpop.f32.mrb[0].mxu0
    %v1726 = vadd.f32 0.0, %v1725
    %v1727 = vpop.f32.mrb[0].mxu0
    %1728 = vdwg.mxu0
    %v1729 = vld [vmem:[%s13] sm:$0xff]
    %v1730 = vld [vmem:[%s13 + $0x8] sm:$0xff]
    %v1731 = vld [vmem:[%s13 + $0x10] sm:$0xff]
    %v1732 = vld [vmem:[%s13 + $0x18] sm:$0xff]
    %v1733 = vld [vmem:[%s13 + $0x20] sm:$0xff]
    %v1734 = vld [vmem:[%s13 + $0x28] sm:$0xff]
    %v1735 = vld [vmem:[%s13 + $0x30] sm:$0xff]
    %v1736 = vld [vmem:[%s13 + $0x38] sm:$0xff]
    %v1737 = vld [vmem:[%s13 + $0x40] sm:$0xff]
    %v1738 = vld [vmem:[%s13 + $0x48] sm:$0xff]
    %v1739 = vld [vmem:[%s13 + $0x50] sm:$0xff]
    %v1740 = vld [vmem:[%s13 + $0x58] sm:$0xff]
    %v1741 = vld [vmem:[%s13 + $0x60] sm:$0xff]
    %v1742 = vld [vmem:[%s13 + $0x68] sm:$0xff]
    %v1743 = vld [vmem:[%s13 + $0x70] sm:$0xff]
    %v1744 = vld [vmem:[%s13 + $0x78] sm:$0xff]
    %s1745 = scalar_lea.vmem %s13, 128
    %v1746 = vld [vmem:[%s1745] sm:$0xff]
    %v1747 = vld [vmem:[%s1745 + $0x8] sm:$0xff]
    %v1748 = vld [vmem:[%s1745 + $0x10] sm:$0xff]
    %v1749 = vld [vmem:[%s1745 + $0x18] sm:$0xff]
    %v1750 = vld [vmem:[%s1745 + $0x20] sm:$0xff]
    %v1751 = vld [vmem:[%s1745 + $0x28] sm:$0xff]
    %v1752 = vld [vmem:[%s1745 + $0x30] sm:$0xff]
    %v1753 = vld [vmem:[%s1745 + $0x38] sm:$0xff]
    %v1754 = vld [vmem:[%s1745 + $0x40] sm:$0xff]
    %v1755 = vld [vmem:[%s1745 + $0x48] sm:$0xff]
    %v1756 = vld [vmem:[%s1745 + $0x50] sm:$0xff]
    %v1757 = vld [vmem:[%s1745 + $0x58] sm:$0xff]
    %v1758 = vld [vmem:[%s1745 + $0x60] sm:$0xff]
    %v1759 = vld [vmem:[%s1745 + $0x68] sm:$0xff]
    %v1760 = vld [vmem:[%s1745 + $0x70] sm:$0xff]
    %v1761 = vld [vmem:[%s1745 + $0x78] sm:$0xff]
    %v1767 = vrot.slane %v1706, 1
    %v1768 = vrot.slane %v1711, 1
    %v1769 = vsel %vm365, %v1767, %v1768
    %v1770 = vrot.slane %v1716, 1
    %v1771 = vsel %vm365, %v1768, %v1770
    %v1772 = vrot.slane %v1721, 1
    %v1773 = vsel %vm365, %v1770, %v1772
    %v1774 = vrot.slane %v1726, 1
    %v1775 = vsel %vm365, %v1772, %v1774
    %1781 = vmatprep.subr.mxu0 0.0
    %1782 = vmatpush1.msra.mxu0 %v1746
    %1783 = vmatprep.subr.mxu0 0.0
    %1784 = vmatpush1.msra.mxu0 %v1747
    %1785 = vmatprep.subr.mxu0 0.0
    %1786 = vmatpush1.msra.mxu0 %v1748
    %1787 = vmatprep.subr.mxu0 0.0
    %1788 = vmatpush1.msra.mxu0 %v1749
    %1789 = vmatprep.subr.mxu0 0.0
    %1790 = vmatpush1.msra.mxu0 %v1750
    %1791 = vmatprep.subr.mxu0 0.0
    %1792 = vmatpush1.msra.mxu0 %v1751
    %1793 = vmatprep.subr.mxu0 0.0
    %1794 = vmatpush1.msra.mxu0 %v1752
    %1795 = vmatprep.subr.mxu0 0.0
    %1796 = vmatpush1.msra.mxu0 %v1753
    %1797 = vmatprep.subr.mxu0 0.0
    %1798 = vmatpush1.msra.mxu0 %v1754
    %1799 = vmatprep.subr.mxu0 0.0
    %1800 = vmatpush1.msra.mxu0 %v1755
    %1801 = vmatprep.subr.mxu0 0.0
    %1802 = vmatpush1.msra.mxu0 %v1756
    %1803 = vmatprep.subr.mxu0 0.0
    %1804 = vmatpush1.msra.mxu0 %v1757
    %1805 = vmatprep.subr.mxu0 0.0
    %1806 = vmatpush1.msra.mxu0 %v1758
    %1807 = vmatprep.subr.mxu0 0.0
    %1808 = vmatpush1.msra.mxu0 %v1759
    %1809 = vmatprep.subr.mxu0 0.0
    %1810 = vmatpush1.msra.mxu0 %v1760
    %1811 = vmatprep.subr.mxu0 0.0
    %1812 = vmatpush1.msra.mxu0 %v1761
    %1813 = vmatprep.subr.mxu0 0.0
    %1814 = vmatpush1.msra.mxu0 0.0
    %1815 = vmatprep.subr.mxu0 0.0
    %1816 = vmatpush1.msra.mxu0 0.0
    %1817 = vmatprep.subr.mxu0 0.0
    %1818 = vmatpush1.msra.mxu0 0.0
    %1819 = vmatprep.subr.mxu0 0.0
    %1820 = vmatpush1.msra.mxu0 0.0
    %1821 = vmatprep.subr.mxu0 0.0
    %1822 = vmatpush1.msra.mxu0 0.0
    %1823 = vmatprep.subr.mxu0 0.0
    %1824 = vmatpush1.msra.mxu0 0.0
    %1825 = vmatprep.subr.mxu0 0.0
    %1826 = vmatpush1.msra.mxu0 0.0
    %1827 = vmatprep.subr.mxu0 0.0
    %1828 = vmatpush1.msra.mxu0 0.0
    %1829 = vmatprep.subr.mxu0 0.0
    %1830 = vmatpush1.msra.mxu0 0.0
    %1831 = vmatprep.subr.mxu0 0.0
    %1832 = vmatpush1.msra.mxu0 0.0
    %1833 = vmatprep.subr.mxu0 0.0
    %1834 = vmatpush1.msra.mxu0 0.0
    %1835 = vmatprep.subr.mxu0 0.0
    %1836 = vmatpush1.msra.mxu0 0.0
    %1837 = vmatprep.subr.mxu0 0.0
    %1838 = vmatpush1.msra.mxu0 0.0
    %1839 = vmatprep.subr.mxu0 0.0
    %1840 = vmatpush1.msra.mxu0 0.0
    %1841 = vmatprep.subr.mxu0 0.0
    %1842 = vmatpush1.msra.mxu0 0.0
    %1843 = vmatprep.subr.mxu0 0.0
    %1844 = vmatpush1.msra.mxu0 0.0
    %1845 = vmatprep.mubr.f32.mxu0 0.0
    %1846 = vmatmul.mubr.f32.gmra.mrb[0].mxu0 %v1769
    %v1847 = vpop.f32.mrb[0].mxu0
    %v1848 = vadd.f32 0.0, %v1847
    %v1849 = vpop.f32.mrb[0].mxu0
    %1850 = vmatprep.mubr.f32.mxu0 0.0
    %1851 = vmatmul.mubr.f32.gmra.mrb[0].mxu0 %v1771
    %v1852 = vpop.f32.mrb[0].mxu0
    %v1853 = vadd.f32 0.0, %v1852
    %v1854 = vpop.f32.mrb[0].mxu0
    %1855 = vmatprep.mubr.f32.mxu0 0.0
    %1856 = vmatmul.mubr.f32.gmra.mrb[0].mxu0 %v1773
    %v1857 = vpop.f32.mrb[0].mxu0
    %v1858 = vadd.f32 0.0, %v1857
    %v1859 = vpop.f32.mrb[0].mxu0
    %1860 = vmatprep.mubr.f32.mxu0 0.0
    %1861 = vmatmul.mubr.f32.gmra.mrb[0].mxu0 %v1775
    %v1862 = vpop.f32.mrb[0].mxu0
    %v1863 = vadd.f32 0.0, %v1862
    %v1864 = vpop.f32.mrb[0].mxu0
    %1865 = vmatprep.mubr.f32.mxu0 0.0
    %1866 = vmatmul.mubr.f32.gmra.mrb[0].mxu0 %v1774
    %v1867 = vpop.f32.mrb[0].mxu0
    %v1868 = vadd.f32 0.0, %v1867
    %v1869 = vpop.f32.mrb[0].mxu0
    %1870 = vdwg.mxu0
    %1871 = vmatprep.subr.mxu0 0.0
    %1872 = vmatpush1.msra.mxu0 %v1729
    %1873 = vmatprep.subr.mxu0 0.0
    %1874 = vmatpush1.msra.mxu0 %v1730
    %1875 = vmatprep.subr.mxu0 0.0
    %1876 = vmatpush1.msra.mxu0 %v1731
    %1877 = vmatprep.subr.mxu0 0.0
    %1878 = vmatpush1.msra.mxu0 %v1732
    %1879 = vmatprep.subr.mxu0 0.0
    %1880 = vmatpush1.msra.mxu0 %v1733
    %1881 = vmatprep.subr.mxu0 0.0
    %1882 = vmatpush1.msra.mxu0 %v1734
    %1883 = vmatprep.subr.mxu0 0.0
    %1884 = vmatpush1.msra.mxu0 %v1735
    %1885 = vmatprep.subr.mxu0 0.0
    %1886 = vmatpush1.msra.mxu0 %v1736
    %1887 = vmatprep.subr.mxu0 0.0
    %1888 = vmatpush1.msra.mxu0 %v1737
    %1889 = vmatprep.subr.mxu0 0.0
    %1890 = vmatpush1.msra.mxu0 %v1738
    %1891 = vmatprep.subr.mxu0 0.0
    %1892 = vmatpush1.msra.mxu0 %v1739
    %1893 = vmatprep.subr.mxu0 0.0
    %1894 = vmatpush1.msra.mxu0 %v1740
    %1895 = vmatprep.subr.mxu0 0.0
    %1896 = vmatpush1.msra.mxu0 %v1741
    %1897 = vmatprep.subr.mxu0 0.0
    %1898 = vmatpush1.msra.mxu0 %v1742
    %1899 = vmatprep.subr.mxu0 0.0
    %1900 = vmatpush1.msra.mxu0 %v1743
    %1901 = vmatprep.subr.mxu0 0.0
    %1902 = vmatpush1.msra.mxu0 %v1744
    %1903 = vmatprep.subr.mxu0 0.0
    %1904 = vmatpush1.msra.mxu0 0.0
    %1905 = vmatprep.subr.mxu0 0.0
    %1906 = vmatpush1.msra.mxu0 0.0
    %1907 = vmatprep.subr.mxu0 0.0
    %1908 = vmatpush1.msra.mxu0 0.0
    %1909 = vmatprep.subr.mxu0 0.0
    %1910 = vmatpush1.msra.mxu0 0.0
    %1911 = vmatprep.subr.mxu0 0.0
    %1912 = vmatpush1.msra.mxu0 0.0
    %1913 = vmatprep.subr.mxu0 0.0
    %1914 = vmatpush1.msra.mxu0 0.0
    %1915 = vmatprep.subr.mxu0 0.0
    %1916 = vmatpush1.msra.mxu0 0.0
    %1917 = vmatprep.subr.mxu0 0.0
    %1918 = vmatpush1.msra.mxu0 0.0
    %1919 = vmatprep.subr.mxu0 0.0
    %1920 = vmatpush1.msra.mxu0 0.0
    %1921 = vmatprep.subr.mxu0 0.0
    %1922 = vmatpush1.msra.mxu0 0.0
    %1923 = vmatprep.subr.mxu0 0.0
    %1924 = vmatpush1.msra.mxu0 0.0
    %1925 = vmatprep.subr.mxu0 0.0
    %1926 = vmatpush1.msra.mxu0 0.0
    %1927 = vmatprep.subr.mxu0 0.0
    %1928 = vmatpush1.msra.mxu0 0.0
    %1929 = vmatprep.subr.mxu0 0.0
    %1930 = vmatpush1.msra.mxu0 0.0
    %1931 = vmatprep.subr.mxu0 0.0
    %1932 = vmatpush1.msra.mxu0 0.0
    %1933 = vmatprep.subr.mxu0 0.0
    %1934 = vmatpush1.msra.mxu0 0.0
    %1935 = vmatprep.mubr.f32.mxu0 0.0
    %1936 = vmatmul.mubr.f32.gmra.mrb[0].mxu0 %v1706
    %v1937 = vpop.f32.mrb[0].mxu0
    %v1938 = vadd.f32 %v1848, %v1937
    %v1939 = vpop.f32.mrb[0].mxu0
    %1940 = vmatprep.mubr.f32.mxu0 0.0
    %1941 = vmatmul.mubr.f32.gmra.mrb[0].mxu0 %v1711
    %v1942 = vpop.f32.mrb[0].mxu0
    %v1943 = vadd.f32 %v1853, %v1942
    %v1944 = vpop.f32.mrb[0].mxu0
    %1945 = vmatprep.mubr.f32.mxu0 0.0
    %1946 = vmatmul.mubr.f32.gmra.mrb[0].mxu0 %v1716
    %v1947 = vpop.f32.mrb[0].mxu0
    %v1948 = vadd.f32 %v1858, %v1947
    %v1949 = vpop.f32.mrb[0].mxu0
    %1950 = vmatprep.mubr.f32.mxu0 0.0
    %1951 = vmatmul.mubr.f32.gmra.mrb[0].mxu0 %v1721
    %v1952 = vpop.f32.mrb[0].mxu0
    %v1953 = vadd.f32 %v1863, %v1952
    %v1954 = vpop.f32.mrb[0].mxu0
    %1955 = vmatprep.mubr.f32.mxu0 0.0
    %1956 = vmatmul.mubr.f32.gmra.mrb[0].mxu0 %v1726
    %v1957 = vpop.f32.mrb[0].mxu0
    %v1958 = vadd.f32 %v1868, %v1957
    %v1959 = vpop.f32.mrb[0].mxu0
    %1960 = vdwg.mxu0
    %s1961 = scalar_lea.vmem %s13, 256
    %v1962 = vld [vmem:[%s1961] sm:$0xff]
    %v1963 = vld [vmem:[%s1961 + $0x8] sm:$0xff]
    %v1964 = vld [vmem:[%s1961 + $0x10] sm:$0xff]
    %v1965 = vld [vmem:[%s1961 + $0x18] sm:$0xff]
    %v1966 = vld [vmem:[%s1961 + $0x20] sm:$0xff]
    %v1967 = vld [vmem:[%s1961 + $0x28] sm:$0xff]
    %v1968 = vld [vmem:[%s1961 + $0x30] sm:$0xff]
    %v1969 = vld [vmem:[%s1961 + $0x38] sm:$0xff]
    %v1970 = vld [vmem:[%s1961 + $0x40] sm:$0xff]
    %v1971 = vld [vmem:[%s1961 + $0x48] sm:$0xff]
    %v1972 = vld [vmem:[%s1961 + $0x50] sm:$0xff]
    %v1973 = vld [vmem:[%s1961 + $0x58] sm:$0xff]
    %v1974 = vld [vmem:[%s1961 + $0x60] sm:$0xff]
    %v1975 = vld [vmem:[%s1961 + $0x68] sm:$0xff]
    %v1976 = vld [vmem:[%s1961 + $0x70] sm:$0xff]
    %v1977 = vld [vmem:[%s1961 + $0x78] sm:$0xff]
    %v1978 = vrot.slane %v1706, 2
    %v1979 = vrot.slane %v1711, 2
    %v1980 = vsel %vm642, %v1978, %v1979
    %v1981 = vrot.slane %v1716, 2
    %v1982 = vsel %vm642, %v1979, %v1981
    %v1983 = vrot.slane %v1721, 2
    %v1984 = vsel %vm642, %v1981, %v1983
    %v1985 = vrot.slane %v1726, 2
    %v1986 = vsel %vm642, %v1983, %v1985
    %1992 = vmatprep.subr.mxu0 0.0
    %1993 = vmatpush1.msra.mxu0 %v1962
    %1994 = vmatprep.subr.mxu0 0.0
    %1995 = vmatpush1.msra.mxu0 %v1963
    %1996 = vmatprep.subr.mxu0 0.0
    %1997 = vmatpush1.msra.mxu0 %v1964
    %1998 = vmatprep.subr.mxu0 0.0
    %1999 = vmatpush1.msra.mxu0 %v1965
    %2000 = vmatprep.subr.mxu0 0.0
    %2001 = vmatpush1.msra.mxu0 %v1966
    %2002 = vmatprep.subr.mxu0 0.0
    %2003 = vmatpush1.msra.mxu0 %v1967
    %2004 = vmatprep.subr.mxu0 0.0
    %2005 = vmatpush1.msra.mxu0 %v1968
    %2006 = vmatprep.subr.mxu0 0.0
    %2007 = vmatpush1.msra.mxu0 %v1969
    %2008 = vmatprep.subr.mxu0 0.0
    %2009 = vmatpush1.msra.mxu0 %v1970
    %2010 = vmatprep.subr.mxu0 0.0
    %2011 = vmatpush1.msra.mxu0 %v1971
    %2012 = vmatprep.subr.mxu0 0.0
    %2013 = vmatpush1.msra.mxu0 %v1972
    %2014 = vmatprep.subr.mxu0 0.0
    %2015 = vmatpush1.msra.mxu0 %v1973
    %2016 = vmatprep.subr.mxu0 0.0
    %2017 = vmatpush1.msra.mxu0 %v1974
    %2018 = vmatprep.subr.mxu0 0.0
    %2019 = vmatpush1.msra.mxu0 %v1975
    %2020 = vmatprep.subr.mxu0 0.0
    %2021 = vmatpush1.msra.mxu0 %v1976
    %2022 = vmatprep.subr.mxu0 0.0
    %2023 = vmatpush1.msra.mxu0 %v1977
    %2024 = vmatprep.subr.mxu0 0.0
    %2025 = vmatpush1.msra.mxu0 0.0
    %2026 = vmatprep.subr.mxu0 0.0
    %2027 = vmatpush1.msra.mxu0 0.0
    %2028 = vmatprep.subr.mxu0 0.0
    %2029 = vmatpush1.msra.mxu0 0.0
    %2030 = vmatprep.subr.mxu0 0.0
    %2031 = vmatpush1.msra.mxu0 0.0
    %2032 = vmatprep.subr.mxu0 0.0
    %2033 = vmatpush1.msra.mxu0 0.0
    %2034 = vmatprep.subr.mxu0 0.0
    %2035 = vmatpush1.msra.mxu0 0.0
    %2036 = vmatprep.subr.mxu0 0.0
    %2037 = vmatpush1.msra.mxu0 0.0
    %2038 = vmatprep.subr.mxu0 0.0
    %2039 = vmatpush1.msra.mxu0 0.0
    %2040 = vmatprep.subr.mxu0 0.0
    %2041 = vmatpush1.msra.mxu0 0.0
    %2042 = vmatprep.subr.mxu0 0.0
    %2043 = vmatpush1.msra.mxu0 0.0
    %2044 = vmatprep.subr.mxu0 0.0
    %2045 = vmatpush1.msra.mxu0 0.0
    %2046 = vmatprep.subr.mxu0 0.0
    %2047 = vmatpush1.msra.mxu0 0.0
    %2048 = vmatprep.subr.mxu0 0.0
    %2049 = vmatpush1.msra.mxu0 0.0
    %2050 = vmatprep.subr.mxu0 0.0
    %2051 = vmatpush1.msra.mxu0 0.0
    %2052 = vmatprep.subr.mxu0 0.0
    %2053 = vmatpush1.msra.mxu0 0.0
    %2054 = vmatprep.subr.mxu0 0.0
    %2055 = vmatpush1.msra.mxu0 0.0
    %2056 = vmatprep.mubr.f32.mxu0 0.0
    %2057 = vmatmul.mubr.f32.gmra.mrb[0].mxu0 %v1980
    %v2058 = vpop.f32.mrb[0].mxu0
    %v2059 = vadd.f32 0.0, %v2058
    %v2060 = vpop.f32.mrb[0].mxu0
    %2061 = vmatprep.mubr.f32.mxu0 0.0
    %2062 = vmatmul.mubr.f32.gmra.mrb[0].mxu0 %v1982
    %v2063 = vpop.f32.mrb[0].mxu0
    %v2064 = vadd.f32 0.0, %v2063
    %v2065 = vpop.f32.mrb[0].mxu0
    %2066 = vmatprep.mubr.f32.mxu0 0.0
    %2067 = vmatmul.mubr.f32.gmra.mrb[0].mxu0 %v1984
    %v2068 = vpop.f32.mrb[0].mxu0
    %v2069 = vadd.f32 0.0, %v2068
    %v2070 = vpop.f32.mrb[0].mxu0
    %2071 = vmatprep.mubr.f32.mxu0 0.0
    %2072 = vmatmul.mubr.f32.gmra.mrb[0].mxu0 %v1986
    %v2073 = vpop.f32.mrb[0].mxu0
    %v2074 = vadd.f32 0.0, %v2073
    %v2075 = vpop.f32.mrb[0].mxu0
    %2076 = vmatprep.mubr.f32.mxu0 0.0
    %2077 = vmatmul.mubr.f32.gmra.mrb[0].mxu0 %v1985
    %v2078 = vpop.f32.mrb[0].mxu0
    %v2079 = vadd.f32 0.0, %v2078
    %v2080 = vpop.f32.mrb[0].mxu0
    %2081 = vdwg.mxu0
    %v2082 = vadd.f32 %v1938, %v2059
    %v2083 = vadd.f32 %v1943, %v2064
    %v2084 = vadd.f32 %v1948, %v2069
    %v2085 = vadd.f32 %v1953, %v2074
    %v2086 = vadd.f32 %v1958, %v2079
    %v2087 = vld [vmem:[#allocation8] sm:$0x1]
    %v2088 = vlaneseq
    %v2089 = vshrl.u32 %v2088, 7
    %v2090 = vsub.s32 0, %v2089
    %v2091 = vrot.slane %v2087, %v2090
    %v2092 = vmul.f32 %v2082, %v2091
    %v2093 = vmul.f32 %v2083, %v2091
    %v2094 = vmul.f32 %v2084, %v2091
    %v2095 = vmul.f32 %v2085, %v2091
    %v2096 = vmul.f32 %v2086, %v2091
    %v2097 = vld [vmem:[#allocation8 + $0x1] sm:$0x1]
    %v2098 = vlaneseq
    %v2099 = vshrl.u32 %v2098, 7
    %v2100 = vsub.s32 0, %v2099
    %v2101 = vrot.slane %v2097, %v2100
    %v2102 = vadd.f32 %v2092, %v2101
    %v2103 = vadd.f32 %v2093, %v2101
    %v2104 = vadd.f32 %v2094, %v2101
    %v2105 = vadd.f32 %v2095, %v2101
    %v2106 = vadd.f32 %v2096, %v2101
    %v2107 = vmul.f32 %v2102, 0.5
    %v2108 = vmul.f32 %v2103, 0.5
    %v2109 = vmul.f32 %v2104, 0.5
    %v2110 = vmul.f32 %v2105, 0.5
    %v2111 = vmul.f32 %v2106, 0.5
    %v2112 = vmul.f32 %v2102, 0.044715
    %v2113 = vmul.f32 %v2103, 0.044715
    %v2114 = vmul.f32 %v2104, 0.044715
    %v2115 = vmul.f32 %v2105, 0.044715
    %v2116 = vmul.f32 %v2106, 0.044715
    %v2117 = vmul.f32 %v2112, %v2102
    %v2118 = vmul.f32 %v2113, %v2103
    %v2119 = vmul.f32 %v2114, %v2104
    %v2120 = vmul.f32 %v2115, %v2105
    %v2121 = vmul.f32 %v2116, %v2106
    %v2122 = vmul.f32 %v2117, %v2102
    %v2123 = vmul.f32 %v2118, %v2103
    %v2124 = vmul.f32 %v2119, %v2104
    %v2125 = vmul.f32 %v2120, %v2105
    %v2126 = vmul.f32 %v2121, %v2106
    %v2127 = vadd.f32 %v2102, %v2122
    %v2128 = vadd.f32 %v2103, %v2123
    %v2129 = vadd.f32 %v2104, %v2124
    %v2130 = vadd.f32 %v2105, %v2125
    %v2131 = vadd.f32 %v2106, %v2126
    %v2132 = vmul.f32 %v2127, 0.7978846
    %v2133 = vmul.f32 %v2128, 0.7978846
    %v2134 = vmul.f32 %v2129, 0.7978846
    %v2135 = vmul.f32 %v2130, 0.7978846
    %v2136 = vmul.f32 %v2131, 0.7978846
    %v2137 = vtanh.pop %v2132
    %v2138 = vtanh.pop %v2133
    %v2139 = vtanh.pop %v2134
    %v2140 = vtanh.pop %v2135
    %v2141 = vtanh.pop %v2136
    %v2142 = vadd.f32 %v2137, 1.0
    %v2143 = vadd.f32 %v2138, 1.0
    %v2144 = vadd.f32 %v2139, 1.0
    %v2145 = vadd.f32 %v2140, 1.0
    %v2146 = vadd.f32 %v2141, 1.0
    %v2147 = vmul.f32 %v2107, %v2142
    %v2148 = vmul.f32 %v2108, %v2143
    %v2149 = vmul.f32 %v2109, %v2144
    %v2150 = vmul.f32 %v2110, %v2145
    %v2151 = vmul.f32 %v2111, %v2146
    %v2152 = vld [vmem:[#allocation14] sm:$0xff]
    %v2153 = vld [vmem:[#allocation14 + $0x8] sm:$0xff]
    %v2154 = vld [vmem:[#allocation14 + $0x10] sm:$0xf]
    %vm2155 = vcmask 277504
    %v2157 = vsel %vm2155, %v2152, 0
    %v2160 = vsel %vm2155, %v2153, 0
    %v2163 = vsel %vm2155, %v2154, 0
    %v2166 = vsel %vm943, %v2151, 0
    %2168 = vmatprep.subr.mxu0 0.0
    %2169 = vmatpush1.msra.mxu0 %v2147
    %2170 = vmatprep.subr.mxu0 0.0
    %2171 = vmatpush1.msra.mxu0 %v2148
    %2172 = vmatprep.subr.mxu0 0.0
    %2173 = vmatpush1.msra.mxu0 %v2149
    %2174 = vmatprep.subr.mxu0 0.0
    %2175 = vmatpush1.msra.mxu0 %v2150
    %2176 = vmatprep.subr.mxu0 0.0
    %2177 = vmatpush1.msra.mxu0 %v2166
    %2178 = vmatprep.subr.mxu0 0.0
    %2179 = vmatpush1.msra.mxu0 0.0
    %2180 = vmatprep.subr.mxu0 0.0
    %2181 = vmatpush1.msra.mxu0 0.0
    %2182 = vmatprep.subr.mxu0 0.0
    %2183 = vmatpush1.msra.mxu0 0.0
    %2184 = vmatprep.subr.mxu0 0.0
    %2185 = vmatpush1.msra.mxu0 0.0
    %2186 = vmatprep.subr.mxu0 0.0
    %2187 = vmatpush1.msra.mxu0 0.0
    %2188 = vmatprep.subr.mxu0 0.0
    %2189 = vmatpush1.msra.mxu0 0.0
    %2190 = vmatprep.subr.mxu0 0.0
    %2191 = vmatpush1.msra.mxu0 0.0
    %2192 = vmatprep.subr.mxu0 0.0
    %2193 = vmatpush1.msra.mxu0 0.0
    %2194 = vmatprep.subr.mxu0 0.0
    %2195 = vmatpush1.msra.mxu0 0.0
    %2196 = vmatprep.subr.mxu0 0.0
    %2197 = vmatpush1.msra.mxu0 0.0
    %2198 = vmatprep.subr.mxu0 0.0
    %2199 = vmatpush1.msra.mxu0 0.0
    %2200 = vmatprep.subr.mxu0 0.0
    %2201 = vmatpush1.msra.mxu0 0.0
    %2202 = vmatprep.subr.mxu0 0.0
    %2203 = vmatpush1.msra.mxu0 0.0
    %2204 = vmatprep.subr.mxu0 0.0
    %2205 = vmatpush1.msra.mxu0 0.0
    %2206 = vmatprep.subr.mxu0 0.0
    %2207 = vmatpush1.msra.mxu0 0.0
    %2208 = vmatprep.subr.mxu0 0.0
    %2209 = vmatpush1.msra.mxu0 0.0
    %2210 = vmatprep.subr.mxu0 0.0
    %2211 = vmatpush1.msra.mxu0 0.0
    %2212 = vmatprep.subr.mxu0 0.0
    %2213 = vmatpush1.msra.mxu0 0.0
    %2214 = vmatprep.subr.mxu0 0.0
    %2215 = vmatpush1.msra.mxu0 0.0
    %2216 = vmatprep.subr.mxu0 0.0
    %2217 = vmatpush1.msra.mxu0 0.0
    %2218 = vmatprep.subr.mxu0 0.0
    %2219 = vmatpush1.msra.mxu0 0.0
    %2220 = vmatprep.subr.mxu0 0.0
    %2221 = vmatpush1.msra.mxu0 0.0
    %2222 = vmatprep.subr.mxu0 0.0
    %2223 = vmatpush1.msra.mxu0 0.0
    %2224 = vmatprep.subr.mxu0 0.0
    %2225 = vmatpush1.msra.mxu0 0.0
    %2226 = vmatprep.subr.mxu0 0.0
    %2227 = vmatpush1.msra.mxu0 0.0
    %2228 = vmatprep.subr.mxu0 0.0
    %2229 = vmatpush1.msra.mxu0 0.0
    %2230 = vmatprep.subr.mxu0 0.0
    %2231 = vmatpush1.msra.mxu0 0.0
    %2232 = vmatprep.mubr.f32.mxu0 0.0
    %2233 = vmatmul.mubr.f32.gmra.mrb[0].mxu0 %v2157
    %v2234 = vpop.f32.mrb[0].mxu0
    %v2235 = vadd.f32 0.0, %v2234
    %v2236 = vpop.f32.mrb[0].mxu0
    %2237 = vmatprep.mubr.f32.mxu0 0.0
    %2238 = vmatmul.mubr.f32.gmra.mrb[0].mxu0 %v2160
    %v2239 = vpop.f32.mrb[0].mxu0
    %v2240 = vadd.f32 0.0, %v2239
    %v2241 = vpop.f32.mrb[0].mxu0
    %2242 = vmatprep.mubr.f32.mxu0 0.0
    %2243 = vmatmul.mubr.f32.gmra.mrb[0].mxu0 %v2163
    %v2244 = vpop.f32.mrb[0].mxu0
    %v2245 = vadd.f32 0.0, %v2244
    %v2246 = vpop.f32.mrb[0].mxu0
    %2247 = vdwg.mxu0
    %v2248 = vld [vmem:[%s17] sm:$0xff]
    %v2249 = vld [vmem:[%s17 + $0x8] sm:$0xff]
    %v2250 = vld [vmem:[%s17 + $0x10] sm:$0xff]
    %v2251 = vld [vmem:[%s17 + $0x18] sm:$0xff]
    %v2252 = vld [vmem:[%s17 + $0x20] sm:$0xff]
    %v2253 = vld [vmem:[%s17 + $0x28] sm:$0xff]
    %v2254 = vld [vmem:[%s17 + $0x30] sm:$0xff]
    %v2255 = vld [vmem:[%s17 + $0x38] sm:$0xff]
    %v2256 = vld [vmem:[%s17 + $0x40] sm:$0xff]
    %v2257 = vld [vmem:[%s17 + $0x48] sm:$0xff]
    %v2258 = vld [vmem:[%s17 + $0x50] sm:$0xff]
    %v2259 = vld [vmem:[%s17 + $0x58] sm:$0xff]
    %v2260 = vld [vmem:[%s17 + $0x60] sm:$0xff]
    %v2261 = vld [vmem:[%s17 + $0x68] sm:$0xff]
    %v2262 = vld [vmem:[%s17 + $0x70] sm:$0xff]
    %v2263 = vld [vmem:[%s17 + $0x78] sm:$0xff]
    %s2264 = scalar_lea.vmem %s17, 128
    %v2265 = vld [vmem:[%s2264] sm:$0xff]
    %v2266 = vld [vmem:[%s2264 + $0x8] sm:$0xff]
    %v2267 = vld [vmem:[%s2264 + $0x10] sm:$0xff]
    %v2268 = vld [vmem:[%s2264 + $0x18] sm:$0xff]
    %v2269 = vld [vmem:[%s2264 + $0x20] sm:$0xff]
    %v2270 = vld [vmem:[%s2264 + $0x28] sm:$0xff]
    %v2271 = vld [vmem:[%s2264 + $0x30] sm:$0xff]
    %v2272 = vld [vmem:[%s2264 + $0x38] sm:$0xff]
    %v2273 = vld [vmem:[%s2264 + $0x40] sm:$0xff]
    %v2274 = vld [vmem:[%s2264 + $0x48] sm:$0xff]
    %v2275 = vld [vmem:[%s2264 + $0x50] sm:$0xff]
    %v2276 = vld [vmem:[%s2264 + $0x58] sm:$0xff]
    %v2277 = vld [vmem:[%s2264 + $0x60] sm:$0xff]
    %v2278 = vld [vmem:[%s2264 + $0x68] sm:$0xff]
    %v2279 = vld [vmem:[%s2264 + $0x70] sm:$0xff]
    %v2280 = vld [vmem:[%s2264 + $0x78] sm:$0xff]
    %v2284 = vrot.slane %v2235, 1
    %v2285 = vrot.slane %v2240, 1
    %v2286 = vsel %vm365, %v2284, %v2285
    %v2287 = vrot.slane %v2245, 1
    %v2288 = vsel %vm365, %v2285, %v2287
    %2292 = vmatprep.subr.mxu0 0.0
    %2293 = vmatpush1.msra.mxu0 %v2265
    %2294 = vmatprep.subr.mxu0 0.0
    %2295 = vmatpush1.msra.mxu0 %v2266
    %2296 = vmatprep.subr.mxu0 0.0
    %2297 = vmatpush1.msra.mxu0 %v2267
    %2298 = vmatprep.subr.mxu0 0.0
    %2299 = vmatpush1.msra.mxu0 %v2268
    %2300 = vmatprep.subr.mxu0 0.0
    %2301 = vmatpush1.msra.mxu0 %v2269
    %2302 = vmatprep.subr.mxu0 0.0
    %2303 = vmatpush1.msra.mxu0 %v2270
    %2304 = vmatprep.subr.mxu0 0.0
    %2305 = vmatpush1.msra.mxu0 %v2271
    %2306 = vmatprep.subr.mxu0 0.0
    %2307 = vmatpush1.msra.mxu0 %v2272
    %2308 = vmatprep.subr.mxu0 0.0
    %2309 = vmatpush1.msra.mxu0 %v2273
    %2310 = vmatprep.subr.mxu0 0.0
    %2311 = vmatpush1.msra.mxu0 %v2274
    %2312 = vmatprep.subr.mxu0 0.0
    %2313 = vmatpush1.msra.mxu0 %v2275
    %2314 = vmatprep.subr.mxu0 0.0
    %2315 = vmatpush1.msra.mxu0 %v2276
    %2316 = vmatprep.subr.mxu0 0.0
    %2317 = vmatpush1.msra.mxu0 %v2277
    %2318 = vmatprep.subr.mxu0 0.0
    %2319 = vmatpush1.msra.mxu0 %v2278
    %2320 = vmatprep.subr.mxu0 0.0
    %2321 = vmatpush1.msra.mxu0 %v2279
    %2322 = vmatprep.subr.mxu0 0.0
    %2323 = vmatpush1.msra.mxu0 %v2280
    %2324 = vmatprep.subr.mxu0 0.0
    %2325 = vmatpush1.msra.mxu0 0.0
    %2326 = vmatprep.subr.mxu0 0.0
    %2327 = vmatpush1.msra.mxu0 0.0
    %2328 = vmatprep.subr.mxu0 0.0
    %2329 = vmatpush1.msra.mxu0 0.0
    %2330 = vmatprep.subr.mxu0 0.0
    %2331 = vmatpush1.msra.mxu0 0.0
    %2332 = vmatprep.subr.mxu0 0.0
    %2333 = vmatpush1.msra.mxu0 0.0
    %2334 = vmatprep.subr.mxu0 0.0
    %2335 = vmatpush1.msra.mxu0 0.0
    %2336 = vmatprep.subr.mxu0 0.0
    %2337 = vmatpush1.msra.mxu0 0.0
    %2338 = vmatprep.subr.mxu0 0.0
    %2339 = vmatpush1.msra.mxu0 0.0
    %2340 = vmatprep.subr.mxu0 0.0
    %2341 = vmatpush1.msra.mxu0 0.0
    %2342 = vmatprep.subr.mxu0 0.0
    %2343 = vmatpush1.msra.mxu0 0.0
    %2344 = vmatprep.subr.mxu0 0.0
    %2345 = vmatpush1.msra.mxu0 0.0
    %2346 = vmatprep.subr.mxu0 0.0
    %2347 = vmatpush1.msra.mxu0 0.0
    %2348 = vmatprep.subr.mxu0 0.0
    %2349 = vmatpush1.msra.mxu0 0.0
    %2350 = vmatprep.subr.mxu0 0.0
    %2351 = vmatpush1.msra.mxu0 0.0
    %2352 = vmatprep.subr.mxu0 0.0
    %2353 = vmatpush1.msra.mxu0 0.0
    %2354 = vmatprep.subr.mxu0 0.0
    %2355 = vmatpush1.msra.mxu0 0.0
    %2356 = vmatprep.mubr.f32.mxu0 0.0
    %2357 = vmatmul.mubr.f32.gmra.mrb[0].mxu0 %v2286
    %v2358 = vpop.f32.mrb[0].mxu0
    %v2359 = vadd.f32 0.0, %v2358
    %v2360 = vpop.f32.mrb[0].mxu0
    %2361 = vmatprep.mubr.f32.mxu0 0.0
    %2362 = vmatmul.mubr.f32.gmra.mrb[0].mxu0 %v2288
    %v2363 = vpop.f32.mrb[0].mxu0
    %v2364 = vadd.f32 0.0, %v2363
    %v2365 = vpop.f32.mrb[0].mxu0
    %2366 = vmatprep.mubr.f32.mxu0 0.0
    %2367 = vmatmul.mubr.f32.gmra.mrb[0].mxu0 %v2287
    %v2368 = vpop.f32.mrb[0].mxu0
    %v2369 = vadd.f32 0.0, %v2368
    %v2370 = vpop.f32.mrb[0].mxu0
    %2371 = vdwg.mxu0
    %2372 = vmatprep.subr.mxu0 0.0
    %2373 = vmatpush1.msra.mxu0 %v2248
    %2374 = vmatprep.subr.mxu0 0.0
    %2375 = vmatpush1.msra.mxu0 %v2249
    %2376 = vmatprep.subr.mxu0 0.0
    %2377 = vmatpush1.msra.mxu0 %v2250
    %2378 = vmatprep.subr.mxu0 0.0
    %2379 = vmatpush1.msra.mxu0 %v2251
    %2380 = vmatprep.subr.mxu0 0.0
    %2381 = vmatpush1.msra.mxu0 %v2252
    %2382 = vmatprep.subr.mxu0 0.0
    %2383 = vmatpush1.msra.mxu0 %v2253
    %2384 = vmatprep.subr.mxu0 0.0
    %2385 = vmatpush1.msra.mxu0 %v2254
    %2386 = vmatprep.subr.mxu0 0.0
    %2387 = vmatpush1.msra.mxu0 %v2255
    %2388 = vmatprep.subr.mxu0 0.0
    %2389 = vmatpush1.msra.mxu0 %v2256
    %2390 = vmatprep.subr.mxu0 0.0
    %2391 = vmatpush1.msra.mxu0 %v2257
    %2392 = vmatprep.subr.mxu0 0.0
    %2393 = vmatpush1.msra.mxu0 %v2258
    %2394 = vmatprep.subr.mxu0 0.0
    %2395 = vmatpush1.msra.mxu0 %v2259
    %2396 = vmatprep.subr.mxu0 0.0
    %2397 = vmatpush1.msra.mxu0 %v2260
    %2398 = vmatprep.subr.mxu0 0.0
    %2399 = vmatpush1.msra.mxu0 %v2261
    %2400 = vmatprep.subr.mxu0 0.0
    %2401 = vmatpush1.msra.mxu0 %v2262
    %2402 = vmatprep.subr.mxu0 0.0
    %2403 = vmatpush1.msra.mxu0 %v2263
    %2404 = vmatprep.subr.mxu0 0.0
    %2405 = vmatpush1.msra.mxu0 0.0
    %2406 = vmatprep.subr.mxu0 0.0
    %2407 = vmatpush1.msra.mxu0 0.0
    %2408 = vmatprep.subr.mxu0 0.0
    %2409 = vmatpush1.msra.mxu0 0.0
    %2410 = vmatprep.subr.mxu0 0.0
    %2411 = vmatpush1.msra.mxu0 0.0
    %2412 = vmatprep.subr.mxu0 0.0
    %2413 = vmatpush1.msra.mxu0 0.0
    %2414 = vmatprep.subr.mxu0 0.0
    %2415 = vmatpush1.msra.mxu0 0.0
    %2416 = vmatprep.subr.mxu0 0.0
    %2417 = vmatpush1.msra.mxu0 0.0
    %2418 = vmatprep.subr.mxu0 0.0
    %2419 = vmatpush1.msra.mxu0 0.0
    %2420 = vmatprep.subr.mxu0 0.0
    %2421 = vmatpush1.msra.mxu0 0.0
    %2422 = vmatprep.subr.mxu0 0.0
    %2423 = vmatpush1.msra.mxu0 0.0
    %2424 = vmatprep.subr.mxu0 0.0
    %2425 = vmatpush1.msra.mxu0 0.0
    %2426 = vmatprep.subr.mxu0 0.0
    %2427 = vmatpush1.msra.mxu0 0.0
    %2428 = vmatprep.subr.mxu0 0.0
    %2429 = vmatpush1.msra.mxu0 0.0
    %2430 = vmatprep.subr.mxu0 0.0
    %2431 = vmatpush1.msra.mxu0 0.0
    %2432 = vmatprep.subr.mxu0 0.0
    %2433 = vmatpush1.msra.mxu0 0.0
    %2434 = vmatprep.subr.mxu0 0.0
    %2435 = vmatpush1.msra.mxu0 0.0
    %2436 = vmatprep.mubr.f32.mxu0 0.0
    %2437 = vmatmul.mubr.f32.gmra.mrb[0].mxu0 %v2235
    %v2438 = vpop.f32.mrb[0].mxu0
    %v2439 = vadd.f32 %v2359, %v2438
    %v2440 = vpop.f32.mrb[0].mxu0
    %2441 = vmatprep.mubr.f32.mxu0 0.0
    %2442 = vmatmul.mubr.f32.gmra.mrb[0].mxu0 %v2240
    %v2443 = vpop.f32.mrb[0].mxu0
    %v2444 = vadd.f32 %v2364, %v2443
    %v2445 = vpop.f32.mrb[0].mxu0
    %2446 = vmatprep.mubr.f32.mxu0 0.0
    %2447 = vmatmul.mubr.f32.gmra.mrb[0].mxu0 %v2245
    %v2448 = vpop.f32.mrb[0].mxu0
    %v2449 = vadd.f32 %v2369, %v2448
    %v2450 = vpop.f32.mrb[0].mxu0
    %2451 = vdwg.mxu0
    %s2452 = scalar_lea.vmem %s17, 256
    %v2453 = vld [vmem:[%s2452] sm:$0xff]
    %v2454 = vld [vmem:[%s2452 + $0x8] sm:$0xff]
    %v2455 = vld [vmem:[%s2452 + $0x10] sm:$0xff]
    %v2456 = vld [vmem:[%s2452 + $0x18] sm:$0xff]
    %v2457 = vld [vmem:[%s2452 + $0x20] sm:$0xff]
    %v2458 = vld [vmem:[%s2452 + $0x28] sm:$0xff]
    %v2459 = vld [vmem:[%s2452 + $0x30] sm:$0xff]
    %v2460 = vld [vmem:[%s2452 + $0x38] sm:$0xff]
    %v2461 = vld [vmem:[%s2452 + $0x40] sm:$0xff]
    %v2462 = vld [vmem:[%s2452 + $0x48] sm:$0xff]
    %v2463 = vld [vmem:[%s2452 + $0x50] sm:$0xff]
    %v2464 = vld [vmem:[%s2452 + $0x58] sm:$0xff]
    %v2465 = vld [vmem:[%s2452 + $0x60] sm:$0xff]
    %v2466 = vld [vmem:[%s2452 + $0x68] sm:$0xff]
    %v2467 = vld [vmem:[%s2452 + $0x70] sm:$0xff]
    %v2468 = vld [vmem:[%s2452 + $0x78] sm:$0xff]
    %v2469 = vrot.slane %v2235, 2
    %v2470 = vrot.slane %v2240, 2
    %v2471 = vsel %vm642, %v2469, %v2470
    %v2472 = vrot.slane %v2245, 2
    %v2473 = vsel %vm642, %v2470, %v2472
    %2477 = vmatprep.subr.mxu0 0.0
    %2478 = vmatpush1.msra.mxu0 %v2453
    %2479 = vmatprep.subr.mxu0 0.0
    %2480 = vmatpush1.msra.mxu0 %v2454
    %2481 = vmatprep.subr.mxu0 0.0
    %2482 = vmatpush1.msra.mxu0 %v2455
    %2483 = vmatprep.subr.mxu0 0.0
    %2484 = vmatpush1.msra.mxu0 %v2456
    %2485 = vmatprep.subr.mxu0 0.0
    %2486 = vmatpush1.msra.mxu0 %v2457
    %2487 = vmatprep.subr.mxu0 0.0
    %2488 = vmatpush1.msra.mxu0 %v2458
    %2489 = vmatprep.subr.mxu0 0.0
    %2490 = vmatpush1.msra.mxu0 %v2459
    %2491 = vmatprep.subr.mxu0 0.0
    %2492 = vmatpush1.msra.mxu0 %v2460
    %2493 = vmatprep.subr.mxu0 0.0
    %2494 = vmatpush1.msra.mxu0 %v2461
    %2495 = vmatprep.subr.mxu0 0.0
    %2496 = vmatpush1.msra.mxu0 %v2462
    %2497 = vmatprep.subr.mxu0 0.0
    %2498 = vmatpush1.msra.mxu0 %v2463
    %2499 = vmatprep.subr.mxu0 0.0
    %2500 = vmatpush1.msra.mxu0 %v2464
    %2501 = vmatprep.subr.mxu0 0.0
    %2502 = vmatpush1.msra.mxu0 %v2465
    %2503 = vmatprep.subr.mxu0 0.0
    %2504 = vmatpush1.msra.mxu0 %v2466
    %2505 = vmatprep.subr.mxu0 0.0
    %2506 = vmatpush1.msra.mxu0 %v2467
    %2507 = vmatprep.subr.mxu0 0.0
    %2508 = vmatpush1.msra.mxu0 %v2468
    %2509 = vmatprep.subr.mxu0 0.0
    %2510 = vmatpush1.msra.mxu0 0.0
    %2511 = vmatprep.subr.mxu0 0.0
    %2512 = vmatpush1.msra.mxu0 0.0
    %2513 = vmatprep.subr.mxu0 0.0
    %2514 = vmatpush1.msra.mxu0 0.0
    %2515 = vmatprep.subr.mxu0 0.0
    %2516 = vmatpush1.msra.mxu0 0.0
    %2517 = vmatprep.subr.mxu0 0.0
    %2518 = vmatpush1.msra.mxu0 0.0
    %2519 = vmatprep.subr.mxu0 0.0
    %2520 = vmatpush1.msra.mxu0 0.0
    %2521 = vmatprep.subr.mxu0 0.0
    %2522 = vmatpush1.msra.mxu0 0.0
    %2523 = vmatprep.subr.mxu0 0.0
    %2524 = vmatpush1.msra.mxu0 0.0
    %2525 = vmatprep.subr.mxu0 0.0
    %2526 = vmatpush1.msra.mxu0 0.0
    %2527 = vmatprep.subr.mxu0 0.0
    %2528 = vmatpush1.msra.mxu0 0.0
    %2529 = vmatprep.subr.mxu0 0.0
    %2530 = vmatpush1.msra.mxu0 0.0
    %2531 = vmatprep.subr.mxu0 0.0
    %2532 = vmatpush1.msra.mxu0 0.0
    %2533 = vmatprep.subr.mxu0 0.0
    %2534 = vmatpush1.msra.mxu0 0.0
    %2535 = vmatprep.subr.mxu0 0.0
    %2536 = vmatpush1.msra.mxu0 0.0
    %2537 = vmatprep.subr.mxu0 0.0
    %2538 = vmatpush1.msra.mxu0 0.0
    %2539 = vmatprep.subr.mxu0 0.0
    %2540 = vmatpush1.msra.mxu0 0.0
    %2541 = vmatprep.mubr.f32.mxu0 0.0
    %2542 = vmatmul.mubr.f32.gmra.mrb[0].mxu0 %v2471
    %v2543 = vpop.f32.mrb[0].mxu0
    %v2544 = vadd.f32 0.0, %v2543
    %v2545 = vpop.f32.mrb[0].mxu0
    %2546 = vmatprep.mubr.f32.mxu0 0.0
    %2547 = vmatmul.mubr.f32.gmra.mrb[0].mxu0 %v2473
    %v2548 = vpop.f32.mrb[0].mxu0
    %v2549 = vadd.f32 0.0, %v2548
    %v2550 = vpop.f32.mrb[0].mxu0
    %2551 = vmatprep.mubr.f32.mxu0 0.0
    %2552 = vmatmul.mubr.f32.gmra.mrb[0].mxu0 %v2472
    %v2553 = vpop.f32.mrb[0].mxu0
    %v2554 = vadd.f32 0.0, %v2553
    %v2555 = vpop.f32.mrb[0].mxu0
    %2556 = vdwg.mxu0
    %v2557 = vadd.f32 %v2439, %v2544
    %v2558 = vadd.f32 %v2444, %v2549
    %v2559 = vadd.f32 %v2449, %v2554
    %v2560 = vld [vmem:[#allocation10] sm:$0x1]
    %v2561 = vlaneseq
    %v2562 = vshrl.u32 %v2561, 7
    %v2563 = vsub.s32 0, %v2562
    %v2564 = vrot.slane %v2560, %v2563
    %v2565 = vmul.f32 %v2557, %v2564
    %v2566 = vmul.f32 %v2558, %v2564
    %v2567 = vmul.f32 %v2559, %v2564
    %v2568 = vld [vmem:[#allocation10 + $0x1] sm:$0x1]
    %v2569 = vlaneseq
    %v2570 = vshrl.u32 %v2569, 7
    %v2571 = vsub.s32 0, %v2570
    %v2572 = vrot.slane %v2568, %v2571
    %v2573 = vadd.f32 %v2565, %v2572
    %v2574 = vadd.f32 %v2566, %v2572
    %v2575 = vadd.f32 %v2567, %v2572
    %v2576 = vmul.f32 %v2573, 0.5
    %v2577 = vmul.f32 %v2574, 0.5
    %v2578 = vmul.f32 %v2575, 0.5
    %v2579 = vmul.f32 %v2573, 0.044715
    %v2580 = vmul.f32 %v2574, 0.044715
    %v2581 = vmul.f32 %v2575, 0.044715
    %v2582 = vmul.f32 %v2579, %v2573
    %v2583 = vmul.f32 %v2580, %v2574
    %v2584 = vmul.f32 %v2581, %v2575
    %v2585 = vmul.f32 %v2582, %v2573
    %v2586 = vmul.f32 %v2583, %v2574
    %v2587 = vmul.f32 %v2584, %v2575
    %v2588 = vadd.f32 %v2573, %v2585
    %v2589 = vadd.f32 %v2574, %v2586
    %v2590 = vadd.f32 %v2575, %v2587
    %v2591 = vmul.f32 %v2588, 0.7978846
    %v2592 = vmul.f32 %v2589, 0.7978846
    %v2593 = vmul.f32 %v2590, 0.7978846
    %v2594 = vtanh.pop %v2591
    %v2595 = vtanh.pop %v2592
    %v2596 = vtanh.pop %v2593
    %v2597 = vadd.f32 %v2594, 1.0
    %v2598 = vadd.f32 %v2595, 1.0
    %v2599 = vadd.f32 %v2596, 1.0
    %v2600 = vmul.f32 %v2576, %v2597
    %v2601 = vmul.f32 %v2577, %v2598
    %v2602 = vmul.f32 %v2578, %v2599
    %v2603 = vld [vmem:[#allocation16] sm:$0xff]
    %vm2604 = vcmask 146432
    %v2606 = vsel %vm2604, %v2603, 0
    %v2609 = vsel %vm943, %v2602, 0
    %2611 = vmatprep.subr.mxu0 0.0
    %2612 = vmatpush1.msra.mxu0 %v2600
    %2613 = vmatprep.subr.mxu0 0.0
    %2614 = vmatpush1.msra.mxu0 %v2601
    %2615 = vmatprep.subr.mxu0 0.0
    %2616 = vmatpush1.msra.mxu0 %v2609
    %2617 = vmatprep.subr.mxu0 0.0
    %2618 = vmatpush1.msra.mxu0 0.0
    %2619 = vmatprep.subr.mxu0 0.0
    %2620 = vmatpush1.msra.mxu0 0.0
    %2621 = vmatprep.subr.mxu0 0.0
    %2622 = vmatpush1.msra.mxu0 0.0
    %2623 = vmatprep.subr.mxu0 0.0
    %2624 = vmatpush1.msra.mxu0 0.0
    %2625 = vmatprep.subr.mxu0 0.0
    %2626 = vmatpush1.msra.mxu0 0.0
    %2627 = vmatprep.subr.mxu0 0.0
    %2628 = vmatpush1.msra.mxu0 0.0
    %2629 = vmatprep.subr.mxu0 0.0
    %2630 = vmatpush1.msra.mxu0 0.0
    %2631 = vmatprep.subr.mxu0 0.0
    %2632 = vmatpush1.msra.mxu0 0.0
    %2633 = vmatprep.subr.mxu0 0.0
    %2634 = vmatpush1.msra.mxu0 0.0
    %2635 = vmatprep.subr.mxu0 0.0
    %2636 = vmatpush1.msra.mxu0 0.0
    %2637 = vmatprep.subr.mxu0 0.0
    %2638 = vmatpush1.msra.mxu0 0.0
    %2639 = vmatprep.subr.mxu0 0.0
    %2640 = vmatpush1.msra.mxu0 0.0
    %2641 = vmatprep.subr.mxu0 0.0
    %2642 = vmatpush1.msra.mxu0 0.0
    %2643 = vmatprep.subr.mxu0 0.0
    %2644 = vmatpush1.msra.mxu0 0.0
    %2645 = vmatprep.subr.mxu0 0.0
    %2646 = vmatpush1.msra.mxu0 0.0
    %2647 = vmatprep.subr.mxu0 0.0
    %2648 = vmatpush1.msra.mxu0 0.0
    %2649 = vmatprep.subr.mxu0 0.0
    %2650 = vmatpush1.msra.mxu0 0.0
    %2651 = vmatprep.subr.mxu0 0.0
    %2652 = vmatpush1.msra.mxu0 0.0
    %2653 = vmatprep.subr.mxu0 0.0
    %2654 = vmatpush1.msra.mxu0 0.0
    %2655 = vmatprep.subr.mxu0 0.0
    %2656 = vmatpush1.msra.mxu0 0.0
    %2657 = vmatprep.subr.mxu0 0.0
    %2658 = vmatpush1.msra.mxu0 0.0
    %2659 = vmatprep.subr.mxu0 0.0
    %2660 = vmatpush1.msra.mxu0 0.0
    %2661 = vmatprep.subr.mxu0 0.0
    %2662 = vmatpush1.msra.mxu0 0.0
    %2663 = vmatprep.subr.mxu0 0.0
    %2664 = vmatpush1.msra.mxu0 0.0
    %2665 = vmatprep.subr.mxu0 0.0
    %2666 = vmatpush1.msra.mxu0 0.0
    %2667 = vmatprep.subr.mxu0 0.0
    %2668 = vmatpush1.msra.mxu0 0.0
    %2669 = vmatprep.subr.mxu0 0.0
    %2670 = vmatpush1.msra.mxu0 0.0
    %2671 = vmatprep.subr.mxu0 0.0
    %2672 = vmatpush1.msra.mxu0 0.0
    %2673 = vmatprep.subr.mxu0 0.0
    %2674 = vmatpush1.msra.mxu0 0.0
    %2675 = vmatprep.mubr.f32.mxu0 0.0
    %2676 = vmatmul.mubr.f32.gmra.mrb[0].mxu0 %v2606
    %v2677 = vpop.f32.mrb[0].mxu0
    %v2678 = vadd.f32 0.0, %v2677
    %v2679 = vpop.f32.mrb[0].mxu0
    %2680 = vdwg.mxu0
    %v2681 = vld [vmem:[%s29] sm:$0xff]
    %v2682 = vld [vmem:[%s29 + $0x8] sm:$0xff]
    %v2683 = vld [vmem:[%s29 + $0x10] sm:$0xff]
    %v2684 = vld [vmem:[%s29 + $0x18] sm:$0xff]
    %v2685 = vld [vmem:[%s29 + $0x20] sm:$0xff]
    %v2686 = vld [vmem:[%s29 + $0x28] sm:$0xff]
    %v2687 = vld [vmem:[%s29 + $0x30] sm:$0xff]
    %v2688 = vld [vmem:[%s29 + $0x38] sm:$0xff]
    %v2689 = vld [vmem:[%s29 + $0x40] sm:$0xff]
    %v2690 = vld [vmem:[%s29 + $0x48] sm:$0xff]
    %v2691 = vld [vmem:[%s29 + $0x50] sm:$0xff]
    %v2692 = vld [vmem:[%s29 + $0x58] sm:$0xff]
    %v2693 = vld [vmem:[%s29 + $0x60] sm:$0xff]
    %v2694 = vld [vmem:[%s29 + $0x68] sm:$0xff]
    %v2695 = vld [vmem:[%s29 + $0x70] sm:$0xff]
    %v2696 = vld [vmem:[%s29 + $0x78] sm:$0xff]
    %v2697 = vld [vmem:[%s29 + $0x80] sm:$0xff]
    %v2698 = vld [vmem:[%s29 + $0x88] sm:$0xff]
    %v2699 = vld [vmem:[%s29 + $0x90] sm:$0xff]
    %v2700 = vld [vmem:[%s29 + $0x98] sm:$0xff]
    %v2701 = vld [vmem:[%s29 + $0xa0] sm:$0xff]
    %v2702 = vld [vmem:[%s29 + $0xa8] sm:$0xff]
    %v2703 = vld [vmem:[%s29 + $0xb0] sm:$0xff]
    %v2704 = vld [vmem:[%s29 + $0xb8] sm:$0xff]
    %v2705 = vld [vmem:[%s29 + $0xc0] sm:$0xff]
    %v2706 = vld [vmem:[%s29 + $0xc8] sm:$0xff]
    %v2707 = vld [vmem:[%s29 + $0xd0] sm:$0xff]
    %v2708 = vld [vmem:[%s29 + $0xd8] sm:$0xff]
    %v2709 = vld [vmem:[%s29 + $0xe0] sm:$0xff]
    %v2710 = vld [vmem:[%s29 + $0xe8] sm:$0xff]
    %v2711 = vld [vmem:[%s29 + $0xf0] sm:$0xff]
    %v2712 = vld [vmem:[%s29 + $0xf8] sm:$0xff]
    %v2713 = vld [vmem:[#allocation17] sm:$0x3]
    %v2715 = vlaneseq
    %v2716 = vshrl.u32 %v2715, 7
    %v2717 = vsub.s32 0, %v2716
    %v2718 = vrot.slane %v2713, %v2717
    %v2719 = vlaneseq
    %v2720 = vshrl.u32 %v2719, 7
    %v2721 = vsub.s32 1, %v2720
    %v2722 = vrot.slane %v2713, %v2721
    %2725 = vmatprep.subr.mxu0 %v2682
    %2726 = vmatpush1.msra.mxu0 %v2681
    %2727 = vmatprep.subr.mxu0 %v2684
    %2728 = vmatpush1.msra.mxu0 %v2683
    %2729 = vmatprep.subr.mxu0 %v2686
    %2730 = vmatpush1.msra.mxu0 %v2685
    %2731 = vmatprep.subr.mxu0 %v2688
    %2732 = vmatpush1.msra.mxu0 %v2687
    %2733 = vmatprep.subr.mxu0 %v2690
    %2734 = vmatpush1.msra.mxu0 %v2689
    %2735 = vmatprep.subr.mxu0 %v2692
    %2736 = vmatpush1.msra.mxu0 %v2691
    %2737 = vmatprep.subr.mxu0 %v2694
    %2738 = vmatpush1.msra.mxu0 %v2693
    %2739 = vmatprep.subr.mxu0 %v2696
    %2740 = vmatpush1.msra.mxu0 %v2695
    %2741 = vmatprep.subr.mxu0 %v2698
    %2742 = vmatpush1.msra.mxu0 %v2697
    %2743 = vmatprep.subr.mxu0 %v2700
    %2744 = vmatpush1.msra.mxu0 %v2699
    %2745 = vmatprep.subr.mxu0 %v2702
    %2746 = vmatpush1.msra.mxu0 %v2701
    %2747 = vmatprep.subr.mxu0 %v2704
    %2748 = vmatpush1.msra.mxu0 %v2703
    %2749 = vmatprep.subr.mxu0 %v2706
    %2750 = vmatpush1.msra.mxu0 %v2705
    %2751 = vmatprep.subr.mxu0 %v2708
    %2752 = vmatpush1.msra.mxu0 %v2707
    %2753 = vmatprep.subr.mxu0 %v2710
    %2754 = vmatpush1.msra.mxu0 %v2709
    %2755 = vmatprep.subr.mxu0 %v2712
    %2756 = vmatpush1.msra.mxu0 %v2711
    %2757 = vmatprep.subr.mxu0 0.0
    %2758 = vmatpush1.msra.mxu0 0.0
    %2759 = vmatprep.subr.mxu0 0.0
    %2760 = vmatpush1.msra.mxu0 0.0
    %2761 = vmatprep.subr.mxu0 0.0
    %2762 = vmatpush1.msra.mxu0 0.0
    %2763 = vmatprep.subr.mxu0 0.0
    %2764 = vmatpush1.msra.mxu0 0.0
    %2765 = vmatprep.subr.mxu0 0.0
    %2766 = vmatpush1.msra.mxu0 0.0
    %2767 = vmatprep.subr.mxu0 0.0
    %2768 = vmatpush1.msra.mxu0 0.0
    %2769 = vmatprep.subr.mxu0 0.0
    %2770 = vmatpush1.msra.mxu0 0.0
    %2771 = vmatprep.subr.mxu0 0.0
    %2772 = vmatpush1.msra.mxu0 0.0
    %2773 = vmatprep.subr.mxu0 0.0
    %2774 = vmatpush1.msra.mxu0 0.0
    %2775 = vmatprep.subr.mxu0 0.0
    %2776 = vmatpush1.msra.mxu0 0.0
    %2777 = vmatprep.subr.mxu0 0.0
    %2778 = vmatpush1.msra.mxu0 0.0
    %2779 = vmatprep.subr.mxu0 0.0
    %2780 = vmatpush1.msra.mxu0 0.0
    %2781 = vmatprep.subr.mxu0 0.0
    %2782 = vmatpush1.msra.mxu0 0.0
    %2783 = vmatprep.subr.mxu0 0.0
    %2784 = vmatpush1.msra.mxu0 0.0
    %2785 = vmatprep.subr.mxu0 0.0
    %2786 = vmatpush1.msra.mxu0 0.0
    %2787 = vmatprep.subr.mxu0 0.0
    %2788 = vmatpush1.msra.mxu0 0.0
    %2789 = vmatprep.mubr.f32.mxu0 0.0
    %2790 = vmatmul.mubr.f32.gmra.mrb[0].mxu0 %v2678
    %v2791 = vpop.f32.mrb[0].mxu0
    %v2792 = vadd.f32 %v2718, %v2791
    %v2793 = vpop.f32.mrb[0].mxu0
    %v2794 = vadd.f32 %v2722, %v2793
    %2795 = vdwg.mxu0
    %v2796 = vld [vmem:[%s31] sm:$0xff]
    %v2797 = vld [vmem:[%s31 + $0x8] sm:$0xff]
    %v2798 = vld [vmem:[%s31 + $0x10] sm:$0xff]
    %v2799 = vld [vmem:[%s31 + $0x18] sm:$0xff]
    %v2800 = vld [vmem:[%s31 + $0x20] sm:$0xff]
    %v2801 = vld [vmem:[%s31 + $0x28] sm:$0xff]
    %v2802 = vld [vmem:[%s31 + $0x30] sm:$0xff]
    %v2803 = vld [vmem:[%s31 + $0x38] sm:$0xff]
    %v2804 = vld [vmem:[%s31 + $0x40] sm:$0xff]
    %v2805 = vld [vmem:[%s31 + $0x48] sm:$0xff]
    %v2806 = vld [vmem:[%s31 + $0x50] sm:$0xff]
    %v2807 = vld [vmem:[%s31 + $0x58] sm:$0xff]
    %v2808 = vld [vmem:[%s31 + $0x60] sm:$0xff]
    %v2809 = vld [vmem:[%s31 + $0x68] sm:$0xff]
    %v2810 = vld [vmem:[%s31 + $0x70] sm:$0xff]
    %v2811 = vld [vmem:[%s31 + $0x78] sm:$0xff]
    %v2812 = vld [vmem:[%s31 + $0x80] sm:$0xff]
    %v2813 = vld [vmem:[%s31 + $0x88] sm:$0xff]
    %v2814 = vld [vmem:[%s31 + $0x90] sm:$0xff]
    %v2815 = vld [vmem:[%s31 + $0x98] sm:$0xff]
    %v2816 = vld [vmem:[%s31 + $0xa0] sm:$0xff]
    %v2817 = vld [vmem:[%s31 + $0xa8] sm:$0xff]
    %v2818 = vld [vmem:[%s31 + $0xb0] sm:$0xff]
    %v2819 = vld [vmem:[%s31 + $0xb8] sm:$0xff]
    %v2820 = vld [vmem:[%s31 + $0xc0] sm:$0xff]
    %v2821 = vld [vmem:[%s31 + $0xc8] sm:$0xff]
    %v2822 = vld [vmem:[%s31 + $0xd0] sm:$0xff]
    %v2823 = vld [vmem:[%s31 + $0xd8] sm:$0xff]
    %v2824 = vld [vmem:[%s31 + $0xe0] sm:$0xff]
    %v2825 = vld [vmem:[%s31 + $0xe8] sm:$0xff]
    %v2826 = vld [vmem:[%s31 + $0xf0] sm:$0xff]
    %v2827 = vld [vmem:[%s31 + $0xf8] sm:$0xff]
    %2828 = vmatprep.subr.mxu0 %v2797
    %2829 = vmatpush1.msra.mxu0 %v2796
    %2830 = vmatprep.subr.mxu0 %v2799
    %2831 = vmatpush1.msra.mxu0 %v2798
    %2832 = vmatprep.subr.mxu0 %v2801
    %2833 = vmatpush1.msra.mxu0 %v2800
    %2834 = vmatprep.subr.mxu0 %v2803
    %2835 = vmatpush1.msra.mxu0 %v2802
    %2836 = vmatprep.subr.mxu0 %v2805
    %2837 = vmatpush1.msra.mxu0 %v2804
    %2838 = vmatprep.subr.mxu0 %v2807
    %2839 = vmatpush1.msra.mxu0 %v2806
    %2840 = vmatprep.subr.mxu0 %v2809
    %2841 = vmatpush1.msra.mxu0 %v2808
    %2842 = vmatprep.subr.mxu0 %v2811
    %2843 = vmatpush1.msra.mxu0 %v2810
    %2844 = vmatprep.subr.mxu0 %v2813
    %2845 = vmatpush1.msra.mxu0 %v2812
    %2846 = vmatprep.subr.mxu0 %v2815
    %2847 = vmatpush1.msra.mxu0 %v2814
    %2848 = vmatprep.subr.mxu0 %v2817
    %2849 = vmatpush1.msra.mxu0 %v2816
    %2850 = vmatprep.subr.mxu0 %v2819
    %2851 = vmatpush1.msra.mxu0 %v2818
    %2852 = vmatprep.subr.mxu0 %v2821
    %2853 = vmatpush1.msra.mxu0 %v2820
    %2854 = vmatprep.subr.mxu0 %v2823
    %2855 = vmatpush1.msra.mxu0 %v2822
    %2856 = vmatprep.subr.mxu0 %v2825
    %2857 = vmatpush1.msra.mxu0 %v2824
    %2858 = vmatprep.subr.mxu0 %v2827
    %2859 = vmatpush1.msra.mxu0 %v2826
    %2860 = vmatprep.subr.mxu0 0.0
    %2861 = vmatpush1.msra.mxu0 0.0
    %2862 = vmatprep.subr.mxu0 0.0
    %2863 = vmatpush1.msra.mxu0 0.0
    %2864 = vmatprep.subr.mxu0 0.0
    %2865 = vmatpush1.msra.mxu0 0.0
    %2866 = vmatprep.subr.mxu0 0.0
    %2867 = vmatpush1.msra.mxu0 0.0
    %2868 = vmatprep.subr.mxu0 0.0
    %2869 = vmatpush1.msra.mxu0 0.0
    %2870 = vmatprep.subr.mxu0 0.0
    %2871 = vmatpush1.msra.mxu0 0.0
    %2872 = vmatprep.subr.mxu0 0.0
    %2873 = vmatpush1.msra.mxu0 0.0
    %2874 = vmatprep.subr.mxu0 0.0
    %2875 = vmatpush1.msra.mxu0 0.0
    %2876 = vmatprep.subr.mxu0 0.0
    %2877 = vmatpush1.msra.mxu0 0.0
    %2878 = vmatprep.subr.mxu0 0.0
    %2879 = vmatpush1.msra.mxu0 0.0
    %2880 = vmatprep.subr.mxu0 0.0
    %2881 = vmatpush1.msra.mxu0 0.0
    %2882 = vmatprep.subr.mxu0 0.0
    %2883 = vmatpush1.msra.mxu0 0.0
    %2884 = vmatprep.subr.mxu0 0.0
    %2885 = vmatpush1.msra.mxu0 0.0
    %2886 = vmatprep.subr.mxu0 0.0
    %2887 = vmatpush1.msra.mxu0 0.0
    %2888 = vmatprep.subr.mxu0 0.0
    %2889 = vmatpush1.msra.mxu0 0.0
    %2890 = vmatprep.subr.mxu0 0.0
    %2891 = vmatpush1.msra.mxu0 0.0
    %2892 = vmatprep.mubr.f32.mxu0 0.0
    %2893 = vmatmul.mubr.f32.gmra.mrb[0].mxu0 %v2678
    %v2894 = vpop.f32.mrb[0].mxu0
    %v2895 = vadd.f32 0.0, %v2894
    %v2896 = vpop.f32.mrb[0].mxu0
    %v2897 = vadd.f32 0.0, %v2896
    %2898 = vdwg.mxu0
    %v2899 = vld [vmem:[%s35] sm:$0xff]
    %v2900 = vld [vmem:[%s35 + $0x8] sm:$0xff]
    %v2901 = vld [vmem:[%s35 + $0x10] sm:$0xff]
    %v2902 = vld [vmem:[%s35 + $0x18] sm:$0xff]
    %v2903 = vld [vmem:[%s35 + $0x20] sm:$0xff]
    %v2904 = vld [vmem:[%s35 + $0x28] sm:$0xff]
    %v2905 = vld [vmem:[%s35 + $0x30] sm:$0xff]
    %v2906 = vld [vmem:[%s35 + $0x38] sm:$0xff]
    %v2907 = vld [vmem:[%s35 + $0x40] sm:$0xff]
    %v2908 = vld [vmem:[%s35 + $0x48] sm:$0xff]
    %v2909 = vld [vmem:[%s35 + $0x50] sm:$0xff]
    %v2910 = vld [vmem:[%s35 + $0x58] sm:$0xff]
    %v2911 = vld [vmem:[%s35 + $0x60] sm:$0xff]
    %v2912 = vld [vmem:[%s35 + $0x68] sm:$0xff]
    %v2913 = vld [vmem:[%s35 + $0x70] sm:$0xff]
    %v2914 = vld [vmem:[%s35 + $0x78] sm:$0xff]
    %v2915 = vld [vmem:[#allocation19] sm:$0x1]
    %v2917 = vlaneseq
    %v2918 = vshrl.u32 %v2917, 7
    %v2919 = vsub.s32 0, %v2918
    %v2920 = vrot.slane %v2915, %v2919
    %v2924 = vrot.slane %v2895, 6
    %v2925 = vrot.slane %v2897, 6
    %v2928 = vadd.f32 %v2792, %v2924
    %v2929 = vadd.f32 %v2794, %v2925
    %vm2930 = vcmask 523264
    %v2932 = vsel %vm2930, 0.0, 0
    %2934 = vmatprep.subr.mxu0 %v2900
    %2935 = vmatpush1.msra.mxu0 %v2899
    %2936 = vmatprep.subr.mxu0 %v2902
    %2937 = vmatpush1.msra.mxu0 %v2901
    %2938 = vmatprep.subr.mxu0 %v2904
    %2939 = vmatpush1.msra.mxu0 %v2903
    %2940 = vmatprep.subr.mxu0 %v2906
    %2941 = vmatpush1.msra.mxu0 %v2905
    %2942 = vmatprep.subr.mxu0 %v2908
    %2943 = vmatpush1.msra.mxu0 %v2907
    %2944 = vmatprep.subr.mxu0 %v2910
    %2945 = vmatpush1.msra.mxu0 %v2909
    %2946 = vmatprep.subr.mxu0 %v2912
    %2947 = vmatpush1.msra.mxu0 %v2911
    %2948 = vmatprep.subr.mxu0 %v2914
    %2949 = vmatpush1.msra.mxu0 %v2913
    %2950 = vmatprep.subr.mxu0 0.0
    %2951 = vmatpush1.msra.mxu0 0.0
    %2952 = vmatprep.subr.mxu0 0.0
    %2953 = vmatpush1.msra.mxu0 0.0
    %2954 = vmatprep.subr.mxu0 0.0
    %2955 = vmatpush1.msra.mxu0 0.0
    %2956 = vmatprep.subr.mxu0 0.0
    %2957 = vmatpush1.msra.mxu0 0.0
    %2958 = vmatprep.subr.mxu0 0.0
    %2959 = vmatpush1.msra.mxu0 0.0
    %2960 = vmatprep.subr.mxu0 0.0
    %2961 = vmatpush1.msra.mxu0 0.0
    %2962 = vmatprep.subr.mxu0 0.0
    %2963 = vmatpush1.msra.mxu0 0.0
    %2964 = vmatprep.subr.mxu0 0.0
    %2965 = vmatpush1.msra.mxu0 0.0
    %2966 = vmatprep.subr.mxu0 0.0
    %2967 = vmatpush1.msra.mxu0 0.0
    %2968 = vmatprep.subr.mxu0 0.0
    %2969 = vmatpush1.msra.mxu0 0.0
    %2970 = vmatprep.subr.mxu0 0.0
    %2971 = vmatpush1.msra.mxu0 0.0
    %2972 = vmatprep.subr.mxu0 0.0
    %2973 = vmatpush1.msra.mxu0 0.0
    %2974 = vmatprep.subr.mxu0 0.0
    %2975 = vmatpush1.msra.mxu0 0.0
    %2976 = vmatprep.subr.mxu0 0.0
    %2977 = vmatpush1.msra.mxu0 0.0
    %2978 = vmatprep.subr.mxu0 0.0
    %2979 = vmatpush1.msra.mxu0 0.0
    %2980 = vmatprep.subr.mxu0 0.0
    %2981 = vmatpush1.msra.mxu0 0.0
    %2982 = vmatprep.subr.mxu0 0.0
    %2983 = vmatpush1.msra.mxu0 0.0
    %2984 = vmatprep.subr.mxu0 0.0
    %2985 = vmatpush1.msra.mxu0 0.0
    %2986 = vmatprep.subr.mxu0 0.0
    %2987 = vmatpush1.msra.mxu0 0.0
    %2988 = vmatprep.subr.mxu0 0.0
    %2989 = vmatpush1.msra.mxu0 0.0
    %2990 = vmatprep.subr.mxu0 0.0
    %2991 = vmatpush1.msra.mxu0 0.0
    %2992 = vmatprep.subr.mxu0 0.0
    %2993 = vmatpush1.msra.mxu0 0.0
    %2994 = vmatprep.subr.mxu0 0.0
    %2995 = vmatpush1.msra.mxu0 0.0
    %2996 = vmatprep.subr.mxu0 0.0
    %2997 = vmatpush1.msra.mxu0 0.0
    %2998 = vmatprep.mubr.f32.mxu0 0.0
    %2999 = vmatmul.mubr.f32.gmra.mrb[0].mxu0 %v2932
    %v3000 = vpop.f32.mrb[0].mxu0
    %v3001 = vadd.f32 0.0, %v3000
    %v3002 = vpop.f32.mrb[0].mxu0
    %v3003 = vadd.f32 0.0, %v3002
    %3004 = vdwg.mxu0
    %v3005 = vadd.f32 %v2928, %v3001
    %v3006 = vsub.f32 0.0, %v3005
    %v3007 = vmul.f32 %v3006, 1.442695
    %v3008 = vpow.pop %v3007
    %v3009 = vadd.f32 %v3008, 1.0
    %v3010 = vrcp.pop %v3009
    %v3011 = vmul.f32 1.0, %v3010
    %v3012 = vadd.f32 %v3003, %v2920
    %v3013 = vmul.f32 %v3011, %v3012
    %v3014 = vadd.f32 %v2929, %v3013
    %v3015 = vtanh.pop %v3014
    %v3016 = vsub.f32 0.0, %v3015
    %3018 = vrot.lane.b32.xlu0 %v3016, 64
    %v3019 = vpop.permute.xlu0 %3018
    %v3021 = vmul.f32 %v3011, %v3019
    %3023 = vrot.lane.b32.xlu0 %v3021, 64
    %v3024 = vpop.permute.xlu0 %3023
    %v3026 = vadd.f32 %v3015, %v3024
    %v3027 = vrot.slane %v2895, 2
    %v3028 = vrot.slane %v2897, 2
    %v3031 = vadd.f32 %v2792, %v3027
    %v3032 = vadd.f32 %v2794, %v3028
    %v3034 = vsel %vm2930, %v3026, 0
    %3036 = vmatprep.subr.mxu0 %v2900
    %3037 = vmatpush1.msra.mxu0 %v2899
    %3038 = vmatprep.subr.mxu0 %v2902
    %3039 = vmatpush1.msra.mxu0 %v2901
    %3040 = vmatprep.subr.mxu0 %v2904
    %3041 = vmatpush1.msra.mxu0 %v2903
    %3042 = vmatprep.subr.mxu0 %v2906
    %3043 = vmatpush1.msra.mxu0 %v2905
    %3044 = vmatprep.subr.mxu0 %v2908
    %3045 = vmatpush1.msra.mxu0 %v2907
    %3046 = vmatprep.subr.mxu0 %v2910
    %3047 = vmatpush1.msra.mxu0 %v2909
    %3048 = vmatprep.subr.mxu0 %v2912
    %3049 = vmatpush1.msra.mxu0 %v2911
    %3050 = vmatprep.subr.mxu0 %v2914
    %3051 = vmatpush1.msra.mxu0 %v2913
    %3052 = vmatprep.subr.mxu0 0.0
    %3053 = vmatpush1.msra.mxu0 0.0
    %3054 = vmatprep.subr.mxu0 0.0
    %3055 = vmatpush1.msra.mxu0 0.0
    %3056 = vmatprep.subr.mxu0 0.0
    %3057 = vmatpush1.msra.mxu0 0.0
    %3058 = vmatprep.subr.mxu0 0.0
    %3059 = vmatpush1.msra.mxu0 0.0
    %3060 = vmatprep.subr.mxu0 0.0
    %3061 = vmatpush1.msra.mxu0 0.0
    %3062 = vmatprep.subr.mxu0 0.0
    %3063 = vmatpush1.msra.mxu0 0.0
    %3064 = vmatprep.subr.mxu0 0.0
    %3065 = vmatpush1.msra.mxu0 0.0
    %3066 = vmatprep.subr.mxu0 0.0
    %3067 = vmatpush1.msra.mxu0 0.0
    %3068 = vmatprep.subr.mxu0 0.0
    %3069 = vmatpush1.msra.mxu0 0.0
    %3070 = vmatprep.subr.mxu0 0.0
    %3071 = vmatpush1.msra.mxu0 0.0
    %3072 = vmatprep.subr.mxu0 0.0
    %3073 = vmatpush1.msra.mxu0 0.0
    %3074 = vmatprep.subr.mxu0 0.0
    %3075 = vmatpush1.msra.mxu0 0.0
    %3076 = vmatprep.subr.mxu0 0.0
    %3077 = vmatpush1.msra.mxu0 0.0
    %3078 = vmatprep.subr.mxu0 0.0
    %3079 = vmatpush1.msra.mxu0 0.0
    %3080 = vmatprep.subr.mxu0 0.0
    %3081 = vmatpush1.msra.mxu0 0.0
    %3082 = vmatprep.subr.mxu0 0.0
    %3083 = vmatpush1.msra.mxu0 0.0
    %3084 = vmatprep.subr.mxu0 0.0
    %3085 = vmatpush1.msra.mxu0 0.0
    %3086 = vmatprep.subr.mxu0 0.0
    %3087 = vmatpush1.msra.mxu0 0.0
    %3088 = vmatprep.subr.mxu0 0.0
    %3089 = vmatpush1.msra.mxu0 0.0
    %3090 = vmatprep.subr.mxu0 0.0
    %3091 = vmatpush1.msra.mxu0 0.0
    %3092 = vmatprep.subr.mxu0 0.0
    %3093 = vmatpush1.msra.mxu0 0.0
    %3094 = vmatprep.subr.mxu0 0.0
    %3095 = vmatpush1.msra.mxu0 0.0
    %3096 = vmatprep.subr.mxu0 0.0
    %3097 = vmatpush1.msra.mxu0 0.0
    %3098 = vmatprep.subr.mxu0 0.0
    %3099 = vmatpush1.msra.mxu0 0.0
    %3100 = vmatprep.mubr.f32.mxu0 0.0
    %3101 = vmatmul.mubr.f32.gmra.mrb[0].mxu0 %v3034
    %v3102 = vpop.f32.mrb[0].mxu0
    %v3103 = vadd.f32 0.0, %v3102
    %v3104 = vpop.f32.mrb[0].mxu0
    %v3105 = vadd.f32 0.0, %v3104
    %3106 = vdwg.mxu0
    %v3108 = vrot.slane %v3103, 6
    %v3110 = vadd.f32 %v3031, %v3108
    %v3111 = vsub.f32 0.0, %v3110
    %v3112 = vmul.f32 %v3111, 1.442695
    %v3113 = vpow.pop %v3112
    %v3114 = vadd.f32 %v3113, 1.0
    %v3115 = vrcp.pop %v3114
    %v3116 = vmul.f32 1.0, %v3115
    %v3117 = vadd.f32 %v3105, %v2920
    %v3119 = vrot.slane %v3117, 6
    %v3121 = vmul.f32 %v3116, %v3119
    %v3122 = vadd.f32 %v3032, %v3121
    %v3123 = vtanh.pop %v3122
    %v3125 = vrot.slane %v3123, 2
    %v3127 = vsub.f32 %v3026, %v3125
    %v3129 = vrot.slane %v3127, 6
    %3130 = vrot.lane.b32.xlu0 %v3129, 64
    %v3131 = vpop.permute.xlu0 %3130
    %v3133 = vmul.f32 %v3116, %v3131
    %3135 = vrot.lane.b32.xlu0 %v3133, 64
    %v3136 = vpop.permute.xlu0 %3135
    %v3138 = vadd.f32 %v3123, %v3136
    %v3140 = vrot.slane %v3138, 2
    %v3141 = vsel %vm2930, %v3140, 0
    %3143 = vmatprep.subr.mxu0 %v2900
    %3144 = vmatpush1.msra.mxu0 %v2899
    %3145 = vmatprep.subr.mxu0 %v2902
    %3146 = vmatpush1.msra.mxu0 %v2901
    %3147 = vmatprep.subr.mxu0 %v2904
    %3148 = vmatpush1.msra.mxu0 %v2903
    %3149 = vmatprep.subr.mxu0 %v2906
    %3150 = vmatpush1.msra.mxu0 %v2905
    %3151 = vmatprep.subr.mxu0 %v2908
    %3152 = vmatpush1.msra.mxu0 %v2907
    %3153 = vmatprep.subr.mxu0 %v2910
    %3154 = vmatpush1.msra.mxu0 %v2909
    %3155 = vmatprep.subr.mxu0 %v2912
    %3156 = vmatpush1.msra.mxu0 %v2911
    %3157 = vmatprep.subr.mxu0 %v2914
    %3158 = vmatpush1.msra.mxu0 %v2913
    %3159 = vmatprep.subr.mxu0 0.0
    %3160 = vmatpush1.msra.mxu0 0.0
    %3161 = vmatprep.subr.mxu0 0.0
    %3162 = vmatpush1.msra.mxu0 0.0
    %3163 = vmatprep.subr.mxu0 0.0
    %3164 = vmatpush1.msra.mxu0 0.0
    %3165 = vmatprep.subr.mxu0 0.0
    %3166 = vmatpush1.msra.mxu0 0.0
    %3167 = vmatprep.subr.mxu0 0.0
    %3168 = vmatpush1.msra.mxu0 0.0
    %3169 = vmatprep.subr.mxu0 0.0
    %3170 = vmatpush1.msra.mxu0 0.0
    %3171 = vmatprep.subr.mxu0 0.0
    %3172 = vmatpush1.msra.mxu0 0.0
    %3173 = vmatprep.subr.mxu0 0.0
    %3174 = vmatpush1.msra.mxu0 0.0
    %3175 = vmatprep.subr.mxu0 0.0
    %3176 = vmatpush1.msra.mxu0 0.0
    %3177 = vmatprep.subr.mxu0 0.0
    %3178 = vmatpush1.msra.mxu0 0.0
    %3179 = vmatprep.subr.mxu0 0.0
    %3180 = vmatpush1.msra.mxu0 0.0
    %3181 = vmatprep.subr.mxu0 0.0
    %3182 = vmatpush1.msra.mxu0 0.0
    %3183 = vmatprep.subr.mxu0 0.0
    %3184 = vmatpush1.msra.mxu0 0.0
    %3185 = vmatprep.subr.mxu0 0.0
    %3186 = vmatpush1.msra.mxu0 0.0
    %3187 = vmatprep.subr.mxu0 0.0
    %3188 = vmatpush1.msra.mxu0 0.0
    %3189 = vmatprep.subr.mxu0 0.0
    %3190 = vmatpush1.msra.mxu0 0.0
    %3191 = vmatprep.subr.mxu0 0.0
    %3192 = vmatpush1.msra.mxu0 0.0
    %3193 = vmatprep.subr.mxu0 0.0
    %3194 = vmatpush1.msra.mxu0 0.0
    %3195 = vmatprep.subr.mxu0 0.0
    %3196 = vmatpush1.msra.mxu0 0.0
    %3197 = vmatprep.subr.mxu0 0.0
    %3198 = vmatpush1.msra.mxu0 0.0
    %3199 = vmatprep.subr.mxu0 0.0
    %3200 = vmatpush1.msra.mxu0 0.0
    %3201 = vmatprep.subr.mxu0 0.0
    %3202 = vmatpush1.msra.mxu0 0.0
    %3203 = vmatprep.subr.mxu0 0.0
    %3204 = vmatpush1.msra.mxu0 0.0
    %3205 = vmatprep.subr.mxu0 0.0
    %3206 = vmatpush1.msra.mxu0 0.0
    %3207 = vmatprep.mubr.f32.mxu0 0.0
    %3208 = vmatmul.mubr.f32.gmra.mrb[0].mxu0 %v3141
    %v3209 = vpop.f32.mrb[0].mxu0
    %v3210 = vadd.f32 0.0, %v3209
    %v3211 = vpop.f32.mrb[0].mxu0
    %v3212 = vadd.f32 0.0, %v3211
    %3213 = vdwg.mxu0
    %v3215 = vrot.slane %v3210, 4
    %v3217 = vadd.f32 %v2928, %v3215
    %v3218 = vsub.f32 0.0, %v3217
    %v3219 = vmul.f32 %v3218, 1.442695
    %v3220 = vpow.pop %v3219
    %v3221 = vadd.f32 %v3220, 1.0
    %v3222 = vrcp.pop %v3221
    %v3223 = vmul.f32 1.0, %v3222
    %v3224 = vadd.f32 %v3212, %v2920
    %v3226 = vrot.slane %v3224, 4
    %v3228 = vmul.f32 %v3223, %v3226
    %v3229 = vadd.f32 %v2929, %v3228
    %v3230 = vtanh.pop %v3229
    %v3232 = vrot.slane %v3230, 2
    %v3234 = vsub.f32 %v3138, %v3232
    %v3236 = vrot.slane %v3234, 6
    %3237 = vrot.lane.b32.xlu0 %v3236, 64
    %v3238 = vpop.permute.xlu0 %3237
    %v3240 = vmul.f32 %v3223, %v3238
    %3242 = vrot.lane.b32.xlu0 %v3240, 64
    %v3243 = vpop.permute.xlu0 %3242
    %v3245 = vadd.f32 %v3230, %v3243
    %v3247 = vrot.slane %v3245, 4
    %v3248 = vsel %vm2930, %v3247, 0
    %3250 = vmatprep.subr.mxu0 %v2900
    %3251 = vmatpush1.msra.mxu0 %v2899
    %3252 = vmatprep.subr.mxu0 %v2902
    %3253 = vmatpush1.msra.mxu0 %v2901
    %3254 = vmatprep.subr.mxu0 %v2904
    %3255 = vmatpush1.msra.mxu0 %v2903
    %3256 = vmatprep.subr.mxu0 %v2906
    %3257 = vmatpush1.msra.mxu0 %v2905
    %3258 = vmatprep.subr.mxu0 %v2908
    %3259 = vmatpush1.msra.mxu0 %v2907
    %3260 = vmatprep.subr.mxu0 %v2910
    %3261 = vmatpush1.msra.mxu0 %v2909
    %3262 = vmatprep.subr.mxu0 %v2912
    %3263 = vmatpush1.msra.mxu0 %v2911
    %3264 = vmatprep.subr.mxu0 %v2914
    %3265 = vmatpush1.msra.mxu0 %v2913
    %3266 = vmatprep.subr.mxu0 0.0
    %3267 = vmatpush1.msra.mxu0 0.0
    %3268 = vmatprep.subr.mxu0 0.0
    %3269 = vmatpush1.msra.mxu0 0.0
    %3270 = vmatprep.subr.mxu0 0.0
    %3271 = vmatpush1.msra.mxu0 0.0
    %3272 = vmatprep.subr.mxu0 0.0
    %3273 = vmatpush1.msra.mxu0 0.0
    %3274 = vmatprep.subr.mxu0 0.0
    %3275 = vmatpush1.msra.mxu0 0.0
    %3276 = vmatprep.subr.mxu0 0.0
    %3277 = vmatpush1.msra.mxu0 0.0
    %3278 = vmatprep.subr.mxu0 0.0
    %3279 = vmatpush1.msra.mxu0 0.0
    %3280 = vmatprep.subr.mxu0 0.0
    %3281 = vmatpush1.msra.mxu0 0.0
    %3282 = vmatprep.subr.mxu0 0.0
    %3283 = vmatpush1.msra.mxu0 0.0
    %3284 = vmatprep.subr.mxu0 0.0
    %3285 = vmatpush1.msra.mxu0 0.0
    %3286 = vmatprep.subr.mxu0 0.0
    %3287 = vmatpush1.msra.mxu0 0.0
    %3288 = vmatprep.subr.mxu0 0.0
    %3289 = vmatpush1.msra.mxu0 0.0
    %3290 = vmatprep.subr.mxu0 0.0
    %3291 = vmatpush1.msra.mxu0 0.0
    %3292 = vmatprep.subr.mxu0 0.0
    %3293 = vmatpush1.msra.mxu0 0.0
    %3294 = vmatprep.subr.mxu0 0.0
    %3295 = vmatpush1.msra.mxu0 0.0
    %3296 = vmatprep.subr.mxu0 0.0
    %3297 = vmatpush1.msra.mxu0 0.0
    %3298 = vmatprep.subr.mxu0 0.0
    %3299 = vmatpush1.msra.mxu0 0.0
    %3300 = vmatprep.subr.mxu0 0.0
    %3301 = vmatpush1.msra.mxu0 0.0
    %3302 = vmatprep.subr.mxu0 0.0
    %3303 = vmatpush1.msra.mxu0 0.0
    %3304 = vmatprep.subr.mxu0 0.0
    %3305 = vmatpush1.msra.mxu0 0.0
    %3306 = vmatprep.subr.mxu0 0.0
    %3307 = vmatpush1.msra.mxu0 0.0
    %3308 = vmatprep.subr.mxu0 0.0
    %3309 = vmatpush1.msra.mxu0 0.0
    %3310 = vmatprep.subr.mxu0 0.0
    %3311 = vmatpush1.msra.mxu0 0.0
    %3312 = vmatprep.subr.mxu0 0.0
    %3313 = vmatpush1.msra.mxu0 0.0
    %3314 = vmatprep.mubr.f32.mxu0 0.0
    %3315 = vmatmul.mubr.f32.gmra.mrb[0].mxu0 %v3248
    %v3316 = vpop.f32.mrb[0].mxu0
    %v3317 = vadd.f32 0.0, %v3316
    %v3318 = vpop.f32.mrb[0].mxu0
    %v3319 = vadd.f32 0.0, %v3318
    %3320 = vdwg.mxu0
    %v3322 = vrot.slane %v3317, 2
    %v3324 = vadd.f32 %v3031, %v3322
    %v3325 = vsub.f32 0.0, %v3324
    %v3326 = vmul.f32 %v3325, 1.442695
    %v3327 = vpow.pop %v3326
    %v3328 = vadd.f32 %v3327, 1.0
    %v3329 = vrcp.pop %v3328
    %v3330 = vmul.f32 1.0, %v3329
    %v3331 = vadd.f32 %v3319, %v2920
    %v3333 = vrot.slane %v3331, 2
    %v3335 = vmul.f32 %v3330, %v3333
    %v3336 = vadd.f32 %v3032, %v3335
    %v3337 = vtanh.pop %v3336
    %v3339 = vrot.slane %v3337, 2
    %v3341 = vsub.f32 %v3245, %v3339
    %v3343 = vrot.slane %v3341, 6
    %3344 = vrot.lane.b32.xlu0 %v3343, 64
    %v3345 = vpop.permute.xlu0 %3344
    %v3347 = vmul.f32 %v3330, %v3345
    %3349 = vrot.lane.b32.xlu0 %v3347, 64
    %v3350 = vpop.permute.xlu0 %3349
    %v3352 = vadd.f32 %v3337, %v3350
    %v3353 = vsel %vm943, %v3026, %v3138
    %vm3354 = vcmask 1043456
    %v3355 = vsel %vm3354, %v3353, %v3245
    %v3356 = vsel %vm642, %v3355, %v3352
    %v3357 = vld [vmem:[#allocation20] sm:$0xff]
    %v3358 = vld [vmem:[#allocation20 + $0x8] sm:$0xff]
    %v3359 = vld [vmem:[#allocation20 + $0x10] sm:$0xff]
    %v3360 = vld [vmem:[#allocation20 + $0x18] sm:$0xff]
    %v3361 = vld [vmem:[#allocation20 + $0x20] sm:$0xff]
    %v3362 = vld [vmem:[#allocation20 + $0x28] sm:$0xff]
    %v3363 = vld [vmem:[#allocation20 + $0x30] sm:$0xff]
    %v3364 = vld [vmem:[#allocation20 + $0x38] sm:$0xff]
    %v3365 = vld [vmem:[#allocation20 + $0x40] sm:$0xff]
    %v3366 = vld [vmem:[#allocation20 + $0x48] sm:$0xff]
    %v3367 = vld [vmem:[#allocation20 + $0x50] sm:$0xff]
    %v3368 = vld [vmem:[#allocation20 + $0x58] sm:$0xff]
    %v3369 = vld [vmem:[#allocation20 + $0x60] sm:$0xff]
    %v3370 = vld [vmem:[#allocation20 + $0x68] sm:$0xff]
    %v3371 = vld [vmem:[#allocation20 + $0x70] sm:$0xff]
    %v3372 = vld [vmem:[#allocation20 + $0x78] sm:$0xff]
    %v3373 = vld [vmem:[#allocation23] sm:$0x3]
    %v3375 = vlaneseq
    %v3376 = vshrl.u32 %v3375, 7
    %v3377 = vsub.s32 0, %v3376
    %v3378 = vrot.slane %v3373, %v3377
    %v3379 = vlaneseq
    %v3380 = vshrl.u32 %v3379, 7
    %v3381 = vsub.s32 1, %v3380
    %v3382 = vrot.slane %v3373, %v3381
    %v3386 = vsel %vm2930, %v3356, 0
    %3388 = vmatprep.subr.mxu0 %v3358
    %3389 = vmatpush1.msra.mxu0 %v3357
    %3390 = vmatprep.subr.mxu0 %v3360
    %3391 = vmatpush1.msra.mxu0 %v3359
    %3392 = vmatprep.subr.mxu0 %v3362
    %3393 = vmatpush1.msra.mxu0 %v3361
    %3394 = vmatprep.subr.mxu0 %v3364
    %3395 = vmatpush1.msra.mxu0 %v3363
    %3396 = vmatprep.subr.mxu0 %v3366
    %3397 = vmatpush1.msra.mxu0 %v3365
    %3398 = vmatprep.subr.mxu0 %v3368
    %3399 = vmatpush1.msra.mxu0 %v3367
    %3400 = vmatprep.subr.mxu0 %v3370
    %3401 = vmatpush1.msra.mxu0 %v3369
    %3402 = vmatprep.subr.mxu0 %v3372
    %3403 = vmatpush1.msra.mxu0 %v3371
    %3404 = vmatprep.subr.mxu0 0.0
    %3405 = vmatpush1.msra.mxu0 0.0
    %3406 = vmatprep.subr.mxu0 0.0
    %3407 = vmatpush1.msra.mxu0 0.0
    %3408 = vmatprep.subr.mxu0 0.0
    %3409 = vmatpush1.msra.mxu0 0.0
    %3410 = vmatprep.subr.mxu0 0.0
    %3411 = vmatpush1.msra.mxu0 0.0
    %3412 = vmatprep.subr.mxu0 0.0
    %3413 = vmatpush1.msra.mxu0 0.0
    %3414 = vmatprep.subr.mxu0 0.0
    %3415 = vmatpush1.msra.mxu0 0.0
    %3416 = vmatprep.subr.mxu0 0.0
    %3417 = vmatpush1.msra.mxu0 0.0
    %3418 = vmatprep.subr.mxu0 0.0
    %3419 = vmatpush1.msra.mxu0 0.0
    %3420 = vmatprep.subr.mxu0 0.0
    %3421 = vmatpush1.msra.mxu0 0.0
    %3422 = vmatprep.subr.mxu0 0.0
    %3423 = vmatpush1.msra.mxu0 0.0
    %3424 = vmatprep.subr.mxu0 0.0
    %3425 = vmatpush1.msra.mxu0 0.0
    %3426 = vmatprep.subr.mxu0 0.0
    %3427 = vmatpush1.msra.mxu0 0.0
    %3428 = vmatprep.subr.mxu0 0.0
    %3429 = vmatpush1.msra.mxu0 0.0
    %3430 = vmatprep.subr.mxu0 0.0
    %3431 = vmatpush1.msra.mxu0 0.0
    %3432 = vmatprep.subr.mxu0 0.0
    %3433 = vmatpush1.msra.mxu0 0.0
    %3434 = vmatprep.subr.mxu0 0.0
    %3435 = vmatpush1.msra.mxu0 0.0
    %3436 = vmatprep.subr.mxu0 0.0
    %3437 = vmatpush1.msra.mxu0 0.0
    %3438 = vmatprep.subr.mxu0 0.0
    %3439 = vmatpush1.msra.mxu0 0.0
    %3440 = vmatprep.subr.mxu0 0.0
    %3441 = vmatpush1.msra.mxu0 0.0
    %3442 = vmatprep.subr.mxu0 0.0
    %3443 = vmatpush1.msra.mxu0 0.0
    %3444 = vmatprep.subr.mxu0 0.0
    %3445 = vmatpush1.msra.mxu0 0.0
    %3446 = vmatprep.subr.mxu0 0.0
    %3447 = vmatpush1.msra.mxu0 0.0
    %3448 = vmatprep.subr.mxu0 0.0
    %3449 = vmatpush1.msra.mxu0 0.0
    %3450 = vmatprep.subr.mxu0 0.0
    %3451 = vmatpush1.msra.mxu0 0.0
    %3452 = vmatprep.mubr.f32.mxu0 0.0
    %3453 = vmatmul.mubr.f32.gmra.mrb[0].mxu0 %v3386
    %v3454 = vpop.f32.mrb[0].mxu0
    %v3455 = vadd.f32 %v3378, %v3454
    %v3456 = vpop.f32.mrb[0].mxu0
    %v3457 = vadd.f32 %v3382, %v3456
    %3458 = vdwg.mxu0
    %v3459 = vld [vmem:[#allocation22] sm:$0xff]
    %v3460 = vld [vmem:[#allocation22 + $0x8] sm:$0xff]
    %v3461 = vld [vmem:[#allocation22 + $0x10] sm:$0xff]
    %v3462 = vld [vmem:[#allocation22 + $0x18] sm:$0xff]
    %v3463 = vld [vmem:[#allocation22 + $0x20] sm:$0xff]
    %v3464 = vld [vmem:[#allocation22 + $0x28] sm:$0xff]
    %v3465 = vld [vmem:[#allocation22 + $0x30] sm:$0xff]
    %v3466 = vld [vmem:[#allocation22 + $0x38] sm:$0xff]
    %v3467 = vld [vmem:[#allocation22 + $0x40] sm:$0xff]
    %v3468 = vld [vmem:[#allocation22 + $0x48] sm:$0xff]
    %v3469 = vld [vmem:[#allocation22 + $0x50] sm:$0xff]
    %v3470 = vld [vmem:[#allocation22 + $0x58] sm:$0xff]
    %v3471 = vld [vmem:[#allocation22 + $0x60] sm:$0xff]
    %v3472 = vld [vmem:[#allocation22 + $0x68] sm:$0xff]
    %v3473 = vld [vmem:[#allocation22 + $0x70] sm:$0xff]
    %v3474 = vld [vmem:[#allocation22 + $0x78] sm:$0xff]
    %3475 = vmatprep.subr.mxu0 %v3460
    %3476 = vmatpush1.msra.mxu0 %v3459
    %3477 = vmatprep.subr.mxu0 %v3462
    %3478 = vmatpush1.msra.mxu0 %v3461
    %3479 = vmatprep.subr.mxu0 %v3464
    %3480 = vmatpush1.msra.mxu0 %v3463
    %3481 = vmatprep.subr.mxu0 %v3466
    %3482 = vmatpush1.msra.mxu0 %v3465
    %3483 = vmatprep.subr.mxu0 %v3468
    %3484 = vmatpush1.msra.mxu0 %v3467
    %3485 = vmatprep.subr.mxu0 %v3470
    %3486 = vmatpush1.msra.mxu0 %v3469
    %3487 = vmatprep.subr.mxu0 %v3472
    %3488 = vmatpush1.msra.mxu0 %v3471
    %3489 = vmatprep.subr.mxu0 %v3474
    %3490 = vmatpush1.msra.mxu0 %v3473
    %3491 = vmatprep.subr.mxu0 0.0
    %3492 = vmatpush1.msra.mxu0 0.0
    %3493 = vmatprep.subr.mxu0 0.0
    %3494 = vmatpush1.msra.mxu0 0.0
    %3495 = vmatprep.subr.mxu0 0.0
    %3496 = vmatpush1.msra.mxu0 0.0
    %3497 = vmatprep.subr.mxu0 0.0
    %3498 = vmatpush1.msra.mxu0 0.0
    %3499 = vmatprep.subr.mxu0 0.0
    %3500 = vmatpush1.msra.mxu0 0.0
    %3501 = vmatprep.subr.mxu0 0.0
    %3502 = vmatpush1.msra.mxu0 0.0
    %3503 = vmatprep.subr.mxu0 0.0
    %3504 = vmatpush1.msra.mxu0 0.0
    %3505 = vmatprep.subr.mxu0 0.0
    %3506 = vmatpush1.msra.mxu0 0.0
    %3507 = vmatprep.subr.mxu0 0.0
    %3508 = vmatpush1.msra.mxu0 0.0
    %3509 = vmatprep.subr.mxu0 0.0
    %3510 = vmatpush1.msra.mxu0 0.0
    %3511 = vmatprep.subr.mxu0 0.0
    %3512 = vmatpush1.msra.mxu0 0.0
    %3513 = vmatprep.subr.mxu0 0.0
    %3514 = vmatpush1.msra.mxu0 0.0
    %3515 = vmatprep.subr.mxu0 0.0
    %3516 = vmatpush1.msra.mxu0 0.0
    %3517 = vmatprep.subr.mxu0 0.0
    %3518 = vmatpush1.msra.mxu0 0.0
    %3519 = vmatprep.subr.mxu0 0.0
    %3520 = vmatpush1.msra.mxu0 0.0
    %3521 = vmatprep.subr.mxu0 0.0
    %3522 = vmatpush1.msra.mxu0 0.0
    %3523 = vmatprep.subr.mxu0 0.0
    %3524 = vmatpush1.msra.mxu0 0.0
    %3525 = vmatprep.subr.mxu0 0.0
    %3526 = vmatpush1.msra.mxu0 0.0
    %3527 = vmatprep.subr.mxu0 0.0
    %3528 = vmatpush1.msra.mxu0 0.0
    %3529 = vmatprep.subr.mxu0 0.0
    %3530 = vmatpush1.msra.mxu0 0.0
    %3531 = vmatprep.subr.mxu0 0.0
    %3532 = vmatpush1.msra.mxu0 0.0
    %3533 = vmatprep.subr.mxu0 0.0
    %3534 = vmatpush1.msra.mxu0 0.0
    %3535 = vmatprep.subr.mxu0 0.0
    %3536 = vmatpush1.msra.mxu0 0.0
    %3537 = vmatprep.subr.mxu0 0.0
    %3538 = vmatpush1.msra.mxu0 0.0
    %3539 = vmatprep.mubr.f32.mxu0 0.0
    %3540 = vmatmul.mubr.f32.gmra.mrb[0].mxu0 %v3386
    %v3541 = vpop.f32.mrb[0].mxu0
    %v3542 = vadd.f32 0.0, %v3541
    %v3543 = vpop.f32.mrb[0].mxu0
    %v3544 = vadd.f32 0.0, %v3543
    %3545 = vdwg.mxu0
    %v3546 = vld [vmem:[#allocation25] sm:$0xff]
    %v3547 = vld [vmem:[#allocation25 + $0x8] sm:$0xff]
    %v3548 = vld [vmem:[#allocation25 + $0x10] sm:$0xff]
    %v3549 = vld [vmem:[#allocation25 + $0x18] sm:$0xff]
    %v3550 = vld [vmem:[#allocation25 + $0x20] sm:$0xff]
    %v3551 = vld [vmem:[#allocation25 + $0x28] sm:$0xff]
    %v3552 = vld [vmem:[#allocation25 + $0x30] sm:$0xff]
    %v3553 = vld [vmem:[#allocation25 + $0x38] sm:$0xff]
    %v3554 = vld [vmem:[#allocation25 + $0x40] sm:$0xff]
    %v3555 = vld [vmem:[#allocation25 + $0x48] sm:$0xff]
    %v3556 = vld [vmem:[#allocation25 + $0x50] sm:$0xff]
    %v3557 = vld [vmem:[#allocation25 + $0x58] sm:$0xff]
    %v3558 = vld [vmem:[#allocation25 + $0x60] sm:$0xff]
    %v3559 = vld [vmem:[#allocation25 + $0x68] sm:$0xff]
    %v3560 = vld [vmem:[#allocation25 + $0x70] sm:$0xff]
    %v3561 = vld [vmem:[#allocation25 + $0x78] sm:$0xff]
    %v3562 = vld [vmem:[#allocation26] sm:$0x1]
    %v3564 = vlaneseq
    %v3565 = vshrl.u32 %v3564, 7
    %v3566 = vsub.s32 0, %v3565
    %v3567 = vrot.slane %v3562, %v3566
    %v3571 = vrot.slane %v3542, 6
    %v3572 = vrot.slane %v3544, 6
    %v3575 = vadd.f32 %v3455, %v3571
    %v3576 = vadd.f32 %v3457, %v3572
    %3577 = vmatprep.subr.mxu0 %v3547
    %3578 = vmatpush1.msra.mxu0 %v3546
    %3579 = vmatprep.subr.mxu0 %v3549
    %3580 = vmatpush1.msra.mxu0 %v3548
    %3581 = vmatprep.subr.mxu0 %v3551
    %3582 = vmatpush1.msra.mxu0 %v3550
    %3583 = vmatprep.subr.mxu0 %v3553
    %3584 = vmatpush1.msra.mxu0 %v3552
    %3585 = vmatprep.subr.mxu0 %v3555
    %3586 = vmatpush1.msra.mxu0 %v3554
    %3587 = vmatprep.subr.mxu0 %v3557
    %3588 = vmatpush1.msra.mxu0 %v3556
    %3589 = vmatprep.subr.mxu0 %v3559
    %3590 = vmatpush1.msra.mxu0 %v3558
    %3591 = vmatprep.subr.mxu0 %v3561
    %3592 = vmatpush1.msra.mxu0 %v3560
    %3593 = vmatprep.subr.mxu0 0.0
    %3594 = vmatpush1.msra.mxu0 0.0
    %3595 = vmatprep.subr.mxu0 0.0
    %3596 = vmatpush1.msra.mxu0 0.0
    %3597 = vmatprep.subr.mxu0 0.0
    %3598 = vmatpush1.msra.mxu0 0.0
    %3599 = vmatprep.subr.mxu0 0.0
    %3600 = vmatpush1.msra.mxu0 0.0
    %3601 = vmatprep.subr.mxu0 0.0
    %3602 = vmatpush1.msra.mxu0 0.0
    %3603 = vmatprep.subr.mxu0 0.0
    %3604 = vmatpush1.msra.mxu0 0.0
    %3605 = vmatprep.subr.mxu0 0.0
    %3606 = vmatpush1.msra.mxu0 0.0
    %3607 = vmatprep.subr.mxu0 0.0
    %3608 = vmatpush1.msra.mxu0 0.0
    %3609 = vmatprep.subr.mxu0 0.0
    %3610 = vmatpush1.msra.mxu0 0.0
    %3611 = vmatprep.subr.mxu0 0.0
    %3612 = vmatpush1.msra.mxu0 0.0
    %3613 = vmatprep.subr.mxu0 0.0
    %3614 = vmatpush1.msra.mxu0 0.0
    %3615 = vmatprep.subr.mxu0 0.0
    %3616 = vmatpush1.msra.mxu0 0.0
    %3617 = vmatprep.subr.mxu0 0.0
    %3618 = vmatpush1.msra.mxu0 0.0
    %3619 = vmatprep.subr.mxu0 0.0
    %3620 = vmatpush1.msra.mxu0 0.0
    %3621 = vmatprep.subr.mxu0 0.0
    %3622 = vmatpush1.msra.mxu0 0.0
    %3623 = vmatprep.subr.mxu0 0.0
    %3624 = vmatpush1.msra.mxu0 0.0
    %3625 = vmatprep.subr.mxu0 0.0
    %3626 = vmatpush1.msra.mxu0 0.0
    %3627 = vmatprep.subr.mxu0 0.0
    %3628 = vmatpush1.msra.mxu0 0.0
    %3629 = vmatprep.subr.mxu0 0.0
    %3630 = vmatpush1.msra.mxu0 0.0
    %3631 = vmatprep.subr.mxu0 0.0
    %3632 = vmatpush1.msra.mxu0 0.0
    %3633 = vmatprep.subr.mxu0 0.0
    %3634 = vmatpush1.msra.mxu0 0.0
    %3635 = vmatprep.subr.mxu0 0.0
    %3636 = vmatpush1.msra.mxu0 0.0
    %3637 = vmatprep.subr.mxu0 0.0
    %3638 = vmatpush1.msra.mxu0 0.0
    %3639 = vmatprep.subr.mxu0 0.0
    %3640 = vmatpush1.msra.mxu0 0.0
    %3641 = vmatprep.mubr.f32.mxu0 0.0
    %3642 = vmatmul.mubr.f32.gmra.mrb[0].mxu0 %v2932
    %v3643 = vpop.f32.mrb[0].mxu0
    %v3644 = vadd.f32 0.0, %v3643
    %v3645 = vpop.f32.mrb[0].mxu0
    %v3646 = vadd.f32 0.0, %v3645
    %3647 = vdwg.mxu0
    %v3648 = vadd.f32 %v3575, %v3644
    %v3649 = vsub.f32 0.0, %v3648
    %v3650 = vmul.f32 %v3649, 1.442695
    %v3651 = vpow.pop %v3650
    %v3652 = vadd.f32 %v3651, 1.0
    %v3653 = vrcp.pop %v3652
    %v3654 = vmul.f32 1.0, %v3653
    %v3655 = vadd.f32 %v3646, %v3567
    %v3656 = vmul.f32 %v3654, %v3655
    %v3657 = vadd.f32 %v3576, %v3656
    %v3658 = vtanh.pop %v3657
    %v3659 = vsub.f32 0.0, %v3658
    %3661 = vrot.lane.b32.xlu0 %v3659, 64
    %v3662 = vpop.permute.xlu0 %3661
    %v3664 = vmul.f32 %v3654, %v3662
    %3666 = vrot.lane.b32.xlu0 %v3664, 64
    %v3667 = vpop.permute.xlu0 %3666
    %v3669 = vadd.f32 %v3658, %v3667
    %v3670 = vrot.slane %v3542, 2
    %v3671 = vrot.slane %v3544, 2
    %v3674 = vadd.f32 %v3455, %v3670
    %v3675 = vadd.f32 %v3457, %v3671
    %v3677 = vsel %vm2930, %v3669, 0
    %3679 = vmatprep.subr.mxu0 %v3547
    %3680 = vmatpush1.msra.mxu0 %v3546
    %3681 = vmatprep.subr.mxu0 %v3549
    %3682 = vmatpush1.msra.mxu0 %v3548
    %3683 = vmatprep.subr.mxu0 %v3551
    %3684 = vmatpush1.msra.mxu0 %v3550
    %3685 = vmatprep.subr.mxu0 %v3553
    %3686 = vmatpush1.msra.mxu0 %v3552
    %3687 = vmatprep.subr.mxu0 %v3555
    %3688 = vmatpush1.msra.mxu0 %v3554
    %3689 = vmatprep.subr.mxu0 %v3557
    %3690 = vmatpush1.msra.mxu0 %v3556
    %3691 = vmatprep.subr.mxu0 %v3559
    %3692 = vmatpush1.msra.mxu0 %v3558
    %3693 = vmatprep.subr.mxu0 %v3561
    %3694 = vmatpush1.msra.mxu0 %v3560
    %3695 = vmatprep.subr.mxu0 0.0
    %3696 = vmatpush1.msra.mxu0 0.0
    %3697 = vmatprep.subr.mxu0 0.0
    %3698 = vmatpush1.msra.mxu0 0.0
    %3699 = vmatprep.subr.mxu0 0.0
    %3700 = vmatpush1.msra.mxu0 0.0
    %3701 = vmatprep.subr.mxu0 0.0
    %3702 = vmatpush1.msra.mxu0 0.0
    %3703 = vmatprep.subr.mxu0 0.0
    %3704 = vmatpush1.msra.mxu0 0.0
    %3705 = vmatprep.subr.mxu0 0.0
    %3706 = vmatpush1.msra.mxu0 0.0
    %3707 = vmatprep.subr.mxu0 0.0
    %3708 = vmatpush1.msra.mxu0 0.0
    %3709 = vmatprep.subr.mxu0 0.0
    %3710 = vmatpush1.msra.mxu0 0.0
    %3711 = vmatprep.subr.mxu0 0.0
    %3712 = vmatpush1.msra.mxu0 0.0
    %3713 = vmatprep.subr.mxu0 0.0
    %3714 = vmatpush1.msra.mxu0 0.0
    %3715 = vmatprep.subr.mxu0 0.0
    %3716 = vmatpush1.msra.mxu0 0.0
    %3717 = vmatprep.subr.mxu0 0.0
    %3718 = vmatpush1.msra.mxu0 0.0
    %3719 = vmatprep.subr.mxu0 0.0
    %3720 = vmatpush1.msra.mxu0 0.0
    %3721 = vmatprep.subr.mxu0 0.0
    %3722 = vmatpush1.msra.mxu0 0.0
    %3723 = vmatprep.subr.mxu0 0.0
    %3724 = vmatpush1.msra.mxu0 0.0
    %3725 = vmatprep.subr.mxu0 0.0
    %3726 = vmatpush1.msra.mxu0 0.0
    %3727 = vmatprep.subr.mxu0 0.0
    %3728 = vmatpush1.msra.mxu0 0.0
    %3729 = vmatprep.subr.mxu0 0.0
    %3730 = vmatpush1.msra.mxu0 0.0
    %3731 = vmatprep.subr.mxu0 0.0
    %3732 = vmatpush1.msra.mxu0 0.0
    %3733 = vmatprep.subr.mxu0 0.0
    %3734 = vmatpush1.msra.mxu0 0.0
    %3735 = vmatprep.subr.mxu0 0.0
    %3736 = vmatpush1.msra.mxu0 0.0
    %3737 = vmatprep.subr.mxu0 0.0
    %3738 = vmatpush1.msra.mxu0 0.0
    %3739 = vmatprep.subr.mxu0 0.0
    %3740 = vmatpush1.msra.mxu0 0.0
    %3741 = vmatprep.subr.mxu0 0.0
    %3742 = vmatpush1.msra.mxu0 0.0
    %3743 = vmatprep.mubr.f32.mxu0 0.0
    %3744 = vmatmul.mubr.f32.gmra.mrb[0].mxu0 %v3677
    %v3745 = vpop.f32.mrb[0].mxu0
    %v3746 = vadd.f32 0.0, %v3745
    %v3747 = vpop.f32.mrb[0].mxu0
    %v3748 = vadd.f32 0.0, %v3747
    %3749 = vdwg.mxu0
    %v3751 = vrot.slane %v3746, 6
    %v3753 = vadd.f32 %v3674, %v3751
    %v3754 = vsub.f32 0.0, %v3753
    %v3755 = vmul.f32 %v3754, 1.442695
    %v3756 = vpow.pop %v3755
    %v3757 = vadd.f32 %v3756, 1.0
    %v3758 = vrcp.pop %v3757
    %v3759 = vmul.f32 1.0, %v3758
    %v3760 = vadd.f32 %v3748, %v3567
    %v3762 = vrot.slane %v3760, 6
    %v3764 = vmul.f32 %v3759, %v3762
    %v3765 = vadd.f32 %v3675, %v3764
    %v3766 = vtanh.pop %v3765
    %v3768 = vrot.slane %v3766, 2
    %v3770 = vsub.f32 %v3669, %v3768
    %v3772 = vrot.slane %v3770, 6
    %3773 = vrot.lane.b32.xlu0 %v3772, 64
    %v3774 = vpop.permute.xlu0 %3773
    %v3776 = vmul.f32 %v3759, %v3774
    %3778 = vrot.lane.b32.xlu0 %v3776, 64
    %v3779 = vpop.permute.xlu0 %3778
    %v3781 = vadd.f32 %v3766, %v3779
    %v3783 = vrot.slane %v3781, 2
    %v3784 = vsel %vm2930, %v3783, 0
    %3786 = vmatprep.subr.mxu0 %v3547
    %3787 = vmatpush1.msra.mxu0 %v3546
    %3788 = vmatprep.subr.mxu0 %v3549
    %3789 = vmatpush1.msra.mxu0 %v3548
    %3790 = vmatprep.subr.mxu0 %v3551
    %3791 = vmatpush1.msra.mxu0 %v3550
    %3792 = vmatprep.subr.mxu0 %v3553
    %3793 = vmatpush1.msra.mxu0 %v3552
    %3794 = vmatprep.subr.mxu0 %v3555
    %3795 = vmatpush1.msra.mxu0 %v3554
    %3796 = vmatprep.subr.mxu0 %v3557
    %3797 = vmatpush1.msra.mxu0 %v3556
    %3798 = vmatprep.subr.mxu0 %v3559
    %3799 = vmatpush1.msra.mxu0 %v3558
    %3800 = vmatprep.subr.mxu0 %v3561
    %3801 = vmatpush1.msra.mxu0 %v3560
    %3802 = vmatprep.subr.mxu0 0.0
    %3803 = vmatpush1.msra.mxu0 0.0
    %3804 = vmatprep.subr.mxu0 0.0
    %3805 = vmatpush1.msra.mxu0 0.0
    %3806 = vmatprep.subr.mxu0 0.0
    %3807 = vmatpush1.msra.mxu0 0.0
    %3808 = vmatprep.subr.mxu0 0.0
    %3809 = vmatpush1.msra.mxu0 0.0
    %3810 = vmatprep.subr.mxu0 0.0
    %3811 = vmatpush1.msra.mxu0 0.0
    %3812 = vmatprep.subr.mxu0 0.0
    %3813 = vmatpush1.msra.mxu0 0.0
    %3814 = vmatprep.subr.mxu0 0.0
    %3815 = vmatpush1.msra.mxu0 0.0
    %3816 = vmatprep.subr.mxu0 0.0
    %3817 = vmatpush1.msra.mxu0 0.0
    %3818 = vmatprep.subr.mxu0 0.0
    %3819 = vmatpush1.msra.mxu0 0.0
    %3820 = vmatprep.subr.mxu0 0.0
    %3821 = vmatpush1.msra.mxu0 0.0
    %3822 = vmatprep.subr.mxu0 0.0
    %3823 = vmatpush1.msra.mxu0 0.0
    %3824 = vmatprep.subr.mxu0 0.0
    %3825 = vmatpush1.msra.mxu0 0.0
    %3826 = vmatprep.subr.mxu0 0.0
    %3827 = vmatpush1.msra.mxu0 0.0
    %3828 = vmatprep.subr.mxu0 0.0
    %3829 = vmatpush1.msra.mxu0 0.0
    %3830 = vmatprep.subr.mxu0 0.0
    %3831 = vmatpush1.msra.mxu0 0.0
    %3832 = vmatprep.subr.mxu0 0.0
    %3833 = vmatpush1.msra.mxu0 0.0
    %3834 = vmatprep.subr.mxu0 0.0
    %3835 = vmatpush1.msra.mxu0 0.0
    %3836 = vmatprep.subr.mxu0 0.0
    %3837 = vmatpush1.msra.mxu0 0.0
    %3838 = vmatprep.subr.mxu0 0.0
    %3839 = vmatpush1.msra.mxu0 0.0
    %3840 = vmatprep.subr.mxu0 0.0
    %3841 = vmatpush1.msra.mxu0 0.0
    %3842 = vmatprep.subr.mxu0 0.0
    %3843 = vmatpush1.msra.mxu0 0.0
    %3844 = vmatprep.subr.mxu0 0.0
    %3845 = vmatpush1.msra.mxu0 0.0
    %3846 = vmatprep.subr.mxu0 0.0
    %3847 = vmatpush1.msra.mxu0 0.0
    %3848 = vmatprep.subr.mxu0 0.0
    %3849 = vmatpush1.msra.mxu0 0.0
    %3850 = vmatprep.mubr.f32.mxu0 0.0
    %3851 = vmatmul.mubr.f32.gmra.mrb[0].mxu0 %v3784
    %v3852 = vpop.f32.mrb[0].mxu0
    %v3853 = vadd.f32 0.0, %v3852
    %v3854 = vpop.f32.mrb[0].mxu0
    %v3855 = vadd.f32 0.0, %v3854
    %3856 = vdwg.mxu0
    %v3858 = vrot.slane %v3853, 4
    %v3860 = vadd.f32 %v3575, %v3858
    %v3861 = vsub.f32 0.0, %v3860
    %v3862 = vmul.f32 %v3861, 1.442695
    %v3863 = vpow.pop %v3862
    %v3864 = vadd.f32 %v3863, 1.0
    %v3865 = vrcp.pop %v3864
    %v3866 = vmul.f32 1.0, %v3865
    %v3867 = vadd.f32 %v3855, %v3567
    %v3869 = vrot.slane %v3867, 4
    %v3871 = vmul.f32 %v3866, %v3869
    %v3872 = vadd.f32 %v3576, %v3871
    %v3873 = vtanh.pop %v3872
    %v3875 = vrot.slane %v3873, 2
    %v3877 = vsub.f32 %v3781, %v3875
    %v3879 = vrot.slane %v3877, 6
    %3880 = vrot.lane.b32.xlu0 %v3879, 64
    %v3881 = vpop.permute.xlu0 %3880
    %v3883 = vmul.f32 %v3866, %v3881
    %3885 = vrot.lane.b32.xlu0 %v3883, 64
    %v3886 = vpop.permute.xlu0 %3885
    %v3888 = vadd.f32 %v3873, %v3886
    %v3890 = vrot.slane %v3888, 4
    %v3891 = vsel %vm2930, %v3890, 0
    %3893 = vmatprep.subr.mxu0 %v3547
    %3894 = vmatpush1.msra.mxu0 %v3546
    %3895 = vmatprep.subr.mxu0 %v3549
    %3896 = vmatpush1.msra.mxu0 %v3548
    %3897 = vmatprep.subr.mxu0 %v3551
    %3898 = vmatpush1.msra.mxu0 %v3550
    %3899 = vmatprep.subr.mxu0 %v3553
    %3900 = vmatpush1.msra.mxu0 %v3552
    %3901 = vmatprep.subr.mxu0 %v3555
    %3902 = vmatpush1.msra.mxu0 %v3554
    %3903 = vmatprep.subr.mxu0 %v3557
    %3904 = vmatpush1.msra.mxu0 %v3556
    %3905 = vmatprep.subr.mxu0 %v3559
    %3906 = vmatpush1.msra.mxu0 %v3558
    %3907 = vmatprep.subr.mxu0 %v3561
    %3908 = vmatpush1.msra.mxu0 %v3560
    %3909 = vmatprep.subr.mxu0 0.0
    %3910 = vmatpush1.msra.mxu0 0.0
    %3911 = vmatprep.subr.mxu0 0.0
    %3912 = vmatpush1.msra.mxu0 0.0
    %3913 = vmatprep.subr.mxu0 0.0
    %3914 = vmatpush1.msra.mxu0 0.0
    %3915 = vmatprep.subr.mxu0 0.0
    %3916 = vmatpush1.msra.mxu0 0.0
    %3917 = vmatprep.subr.mxu0 0.0
    %3918 = vmatpush1.msra.mxu0 0.0
    %3919 = vmatprep.subr.mxu0 0.0
    %3920 = vmatpush1.msra.mxu0 0.0
    %3921 = vmatprep.subr.mxu0 0.0
    %3922 = vmatpush1.msra.mxu0 0.0
    %3923 = vmatprep.subr.mxu0 0.0
    %3924 = vmatpush1.msra.mxu0 0.0
    %3925 = vmatprep.subr.mxu0 0.0
    %3926 = vmatpush1.msra.mxu0 0.0
    %3927 = vmatprep.subr.mxu0 0.0
    %3928 = vmatpush1.msra.mxu0 0.0
    %3929 = vmatprep.subr.mxu0 0.0
    %3930 = vmatpush1.msra.mxu0 0.0
    %3931 = vmatprep.subr.mxu0 0.0
    %3932 = vmatpush1.msra.mxu0 0.0
    %3933 = vmatprep.subr.mxu0 0.0
    %3934 = vmatpush1.msra.mxu0 0.0
    %3935 = vmatprep.subr.mxu0 0.0
    %3936 = vmatpush1.msra.mxu0 0.0
    %3937 = vmatprep.subr.mxu0 0.0
    %3938 = vmatpush1.msra.mxu0 0.0
    %3939 = vmatprep.subr.mxu0 0.0
    %3940 = vmatpush1.msra.mxu0 0.0
    %3941 = vmatprep.subr.mxu0 0.0
    %3942 = vmatpush1.msra.mxu0 0.0
    %3943 = vmatprep.subr.mxu0 0.0
    %3944 = vmatpush1.msra.mxu0 0.0
    %3945 = vmatprep.subr.mxu0 0.0
    %3946 = vmatpush1.msra.mxu0 0.0
    %3947 = vmatprep.subr.mxu0 0.0
    %3948 = vmatpush1.msra.mxu0 0.0
    %3949 = vmatprep.subr.mxu0 0.0
    %3950 = vmatpush1.msra.mxu0 0.0
    %3951 = vmatprep.subr.mxu0 0.0
    %3952 = vmatpush1.msra.mxu0 0.0
    %3953 = vmatprep.subr.mxu0 0.0
    %3954 = vmatpush1.msra.mxu0 0.0
    %3955 = vmatprep.subr.mxu0 0.0
    %3956 = vmatpush1.msra.mxu0 0.0
    %3957 = vmatprep.mubr.f32.mxu0 0.0
    %3958 = vmatmul.mubr.f32.gmra.mrb[0].mxu0 %v3891
    %v3959 = vpop.f32.mrb[0].mxu0
    %v3960 = vadd.f32 0.0, %v3959
    %v3961 = vpop.f32.mrb[0].mxu0
    %v3962 = vadd.f32 0.0, %v3961
    %3963 = vdwg.mxu0
    %v3965 = vrot.slane %v3960, 2
    %v3967 = vadd.f32 %v3674, %v3965
    %v3968 = vsub.f32 0.0, %v3967
    %v3969 = vmul.f32 %v3968, 1.442695
    %v3970 = vpow.pop %v3969
    %v3971 = vadd.f32 %v3970, 1.0
    %v3972 = vrcp.pop %v3971
    %v3973 = vmul.f32 1.0, %v3972
    %v3974 = vadd.f32 %v3962, %v3567
    %v3976 = vrot.slane %v3974, 2
    %v3978 = vmul.f32 %v3973, %v3976
    %v3979 = vadd.f32 %v3675, %v3978
    %v3980 = vtanh.pop %v3979
    %v3982 = vrot.slane %v3980, 2
    %v3984 = vsub.f32 %v3888, %v3982
    %v3986 = vrot.slane %v3984, 6
    %3987 = vrot.lane.b32.xlu0 %v3986, 64
    %v3988 = vpop.permute.xlu0 %3987
    %v3990 = vmul.f32 %v3973, %v3988
    %3992 = vrot.lane.b32.xlu0 %v3990, 64
    %v3993 = vpop.permute.xlu0 %3992
    %v3995 = vadd.f32 %v3980, %v3993
    %v3996 = vld [vmem:[%s49] sm:$0xff]
    %v3997 = vld [vmem:[%s49 + $0x8] sm:$0xff]
    %v3998 = vld [vmem:[%s49 + $0x10] sm:$0xff]
    %v3999 = vld [vmem:[%s49 + $0x18] sm:$0xff]
    %v4000 = vld [vmem:[%s49 + $0x20] sm:$0xff]
    %v4001 = vld [vmem:[%s49 + $0x28] sm:$0xff]
    %v4002 = vld [vmem:[%s49 + $0x30] sm:$0xff]
    %v4003 = vld [vmem:[%s49 + $0x38] sm:$0xff]
    %4004 = vrot.lane.b32.xlu0 %v3669, 96
    %v4005 = vpop.permute.xlu0 %4004
    %vm4006 = vcmask 261120
    %v4007 = vsel %vm4006, %v4005, 0
    %4009 = vmatprep.subr.mxu0 0.0
    %4010 = vmatpush1.msra.mxu0 %v4000
    %4011 = vmatprep.subr.mxu0 0.0
    %4012 = vmatpush1.msra.mxu0 %v4001
    %4013 = vmatprep.subr.mxu0 0.0
    %4014 = vmatpush1.msra.mxu0 %v4002
    %4015 = vmatprep.subr.mxu0 0.0
    %4016 = vmatpush1.msra.mxu0 %v4003
    %4017 = vmatprep.subr.mxu0 0.0
    %4018 = vmatpush1.msra.mxu0 0.0
    %4019 = vmatprep.subr.mxu0 0.0
    %4020 = vmatpush1.msra.mxu0 0.0
    %4021 = vmatprep.subr.mxu0 0.0
    %4022 = vmatpush1.msra.mxu0 0.0
    %4023 = vmatprep.subr.mxu0 0.0
    %4024 = vmatpush1.msra.mxu0 0.0
    %4025 = vmatprep.subr.mxu0 0.0
    %4026 = vmatpush1.msra.mxu0 0.0
    %4027 = vmatprep.subr.mxu0 0.0
    %4028 = vmatpush1.msra.mxu0 0.0
    %4029 = vmatprep.subr.mxu0 0.0
    %4030 = vmatpush1.msra.mxu0 0.0
    %4031 = vmatprep.subr.mxu0 0.0
    %4032 = vmatpush1.msra.mxu0 0.0
    %4033 = vmatprep.subr.mxu0 0.0
    %4034 = vmatpush1.msra.mxu0 0.0
    %4035 = vmatprep.subr.mxu0 0.0
    %4036 = vmatpush1.msra.mxu0 0.0
    %4037 = vmatprep.subr.mxu0 0.0
    %4038 = vmatpush1.msra.mxu0 0.0
    %4039 = vmatprep.subr.mxu0 0.0
    %4040 = vmatpush1.msra.mxu0 0.0
    %4041 = vmatprep.subr.mxu0 0.0
    %4042 = vmatpush1.msra.mxu0 0.0
    %4043 = vmatprep.subr.mxu0 0.0
    %4044 = vmatpush1.msra.mxu0 0.0
    %4045 = vmatprep.subr.mxu0 0.0
    %4046 = vmatpush1.msra.mxu0 0.0
    %4047 = vmatprep.subr.mxu0 0.0
    %4048 = vmatpush1.msra.mxu0 0.0
    %4049 = vmatprep.subr.mxu0 0.0
    %4050 = vmatpush1.msra.mxu0 0.0
    %4051 = vmatprep.subr.mxu0 0.0
    %4052 = vmatpush1.msra.mxu0 0.0
    %4053 = vmatprep.subr.mxu0 0.0
    %4054 = vmatpush1.msra.mxu0 0.0
    %4055 = vmatprep.subr.mxu0 0.0
    %4056 = vmatpush1.msra.mxu0 0.0
    %4057 = vmatprep.subr.mxu0 0.0
    %4058 = vmatpush1.msra.mxu0 0.0
    %4059 = vmatprep.subr.mxu0 0.0
    %4060 = vmatpush1.msra.mxu0 0.0
    %4061 = vmatprep.subr.mxu0 0.0
    %4062 = vmatpush1.msra.mxu0 0.0
    %4063 = vmatprep.subr.mxu0 0.0
    %4064 = vmatpush1.msra.mxu0 0.0
    %4065 = vmatprep.subr.mxu0 0.0
    %4066 = vmatpush1.msra.mxu0 0.0
    %4067 = vmatprep.subr.mxu0 0.0
    %4068 = vmatpush1.msra.mxu0 0.0
    %4069 = vmatprep.subr.mxu0 0.0
    %4070 = vmatpush1.msra.mxu0 0.0
    %4071 = vmatprep.subr.mxu0 0.0
    %4072 = vmatpush1.msra.mxu0 0.0
    %4073 = vmatprep.mubr.f32.mxu0 0.0
    %4074 = vmatmul.mubr.f32.gmra.mrb[0].mxu0 %v4007
    %v4075 = vpop.f32.mrb[0].mxu0
    %v4076 = vadd.f32 0.0, %v4075
    %v4077 = vpop.f32.mrb[0].mxu0
    %4078 = vdwg.mxu0
    %v4080 = vrot.slane %v3995, 6
    %v4081 = vsel %vm4006, %v4080, 0
    %4083 = vmatprep.subr.mxu0 0.0
    %4084 = vmatpush1.msra.mxu0 %v3996
    %4085 = vmatprep.subr.mxu0 0.0
    %4086 = vmatpush1.msra.mxu0 %v3997
    %4087 = vmatprep.subr.mxu0 0.0
    %4088 = vmatpush1.msra.mxu0 %v3998
    %4089 = vmatprep.subr.mxu0 0.0
    %4090 = vmatpush1.msra.mxu0 %v3999
    %4091 = vmatprep.subr.mxu0 0.0
    %4092 = vmatpush1.msra.mxu0 0.0
    %4093 = vmatprep.subr.mxu0 0.0
    %4094 = vmatpush1.msra.mxu0 0.0
    %4095 = vmatprep.subr.mxu0 0.0
    %4096 = vmatpush1.msra.mxu0 0.0
    %4097 = vmatprep.subr.mxu0 0.0
    %4098 = vmatpush1.msra.mxu0 0.0
    %4099 = vmatprep.subr.mxu0 0.0
    %4100 = vmatpush1.msra.mxu0 0.0
    %4101 = vmatprep.subr.mxu0 0.0
    %4102 = vmatpush1.msra.mxu0 0.0
    %4103 = vmatprep.subr.mxu0 0.0
    %4104 = vmatpush1.msra.mxu0 0.0
    %4105 = vmatprep.subr.mxu0 0.0
    %4106 = vmatpush1.msra.mxu0 0.0
    %4107 = vmatprep.subr.mxu0 0.0
    %4108 = vmatpush1.msra.mxu0 0.0
    %4109 = vmatprep.subr.mxu0 0.0
    %4110 = vmatpush1.msra.mxu0 0.0
    %4111 = vmatprep.subr.mxu0 0.0
    %4112 = vmatpush1.msra.mxu0 0.0
    %4113 = vmatprep.subr.mxu0 0.0
    %4114 = vmatpush1.msra.mxu0 0.0
    %4115 = vmatprep.subr.mxu0 0.0
    %4116 = vmatpush1.msra.mxu0 0.0
    %4117 = vmatprep.subr.mxu0 0.0
    %4118 = vmatpush1.msra.mxu0 0.0
    %4119 = vmatprep.subr.mxu0 0.0
    %4120 = vmatpush1.msra.mxu0 0.0
    %4121 = vmatprep.subr.mxu0 0.0
    %4122 = vmatpush1.msra.mxu0 0.0
    %4123 = vmatprep.subr.mxu0 0.0
    %4124 = vmatpush1.msra.mxu0 0.0
    %4125 = vmatprep.subr.mxu0 0.0
    %4126 = vmatpush1.msra.mxu0 0.0
    %4127 = vmatprep.subr.mxu0 0.0
    %4128 = vmatpush1.msra.mxu0 0.0
    %4129 = vmatprep.subr.mxu0 0.0
    %4130 = vmatpush1.msra.mxu0 0.0
    %4131 = vmatprep.subr.mxu0 0.0
    %4132 = vmatpush1.msra.mxu0 0.0
    %4133 = vmatprep.subr.mxu0 0.0
    %4134 = vmatpush1.msra.mxu0 0.0
    %4135 = vmatprep.subr.mxu0 0.0
    %4136 = vmatpush1.msra.mxu0 0.0
    %4137 = vmatprep.subr.mxu0 0.0
    %4138 = vmatpush1.msra.mxu0 0.0
    %4139 = vmatprep.subr.mxu0 0.0
    %4140 = vmatpush1.msra.mxu0 0.0
    %4141 = vmatprep.subr.mxu0 0.0
    %4142 = vmatpush1.msra.mxu0 0.0
    %4143 = vmatprep.subr.mxu0 0.0
    %4144 = vmatpush1.msra.mxu0 0.0
    %4145 = vmatprep.subr.mxu0 0.0
    %4146 = vmatpush1.msra.mxu0 0.0
    %4147 = vmatprep.mubr.f32.mxu0 0.0
    %4148 = vmatmul.mubr.f32.gmra.mrb[0].mxu0 %v4081
    %v4149 = vpop.f32.mrb[0].mxu0
    %v4150 = vadd.f32 %v4076, %v4149
    %v4151 = vpop.f32.mrb[0].mxu0
    %4152 = vdwg.mxu0
    %v4153 = vld [vmem:[%s3] sm:$0x3]
    %v4154 = vld [vmem:[#allocation28] sm:$0xff]
    %v4155 = vld [vmem:[#allocation28 + $0x8] sm:$0xff]
    %v4156 = vld [vmem:[#allocation28 + $0x10] sm:$0xff]
    %vm4157 = vcmask 195584
    %v4159 = vsel %vm4157, %v4153, 0
    %4161 = vmatprep.subr.mxu0 0.0
    %4162 = vmatpush1.msra.mxu0 %v4154
    %4163 = vmatprep.subr.mxu0 0.0
    %4164 = vmatpush1.msra.mxu0 %v4155
    %4165 = vmatprep.subr.mxu0 0.0
    %4166 = vmatpush1.msra.mxu0 %v4156
    %4167 = vmatprep.subr.mxu0 0.0
    %4168 = vmatpush1.msra.mxu0 0.0
    %4169 = vmatprep.subr.mxu0 0.0
    %4170 = vmatpush1.msra.mxu0 0.0
    %4171 = vmatprep.subr.mxu0 0.0
    %4172 = vmatpush1.msra.mxu0 0.0
    %4173 = vmatprep.subr.mxu0 0.0
    %4174 = vmatpush1.msra.mxu0 0.0
    %4175 = vmatprep.subr.mxu0 0.0
    %4176 = vmatpush1.msra.mxu0 0.0
    %4177 = vmatprep.subr.mxu0 0.0
    %4178 = vmatpush1.msra.mxu0 0.0
    %4179 = vmatprep.subr.mxu0 0.0
    %4180 = vmatpush1.msra.mxu0 0.0
    %4181 = vmatprep.subr.mxu0 0.0
    %4182 = vmatpush1.msra.mxu0 0.0
    %4183 = vmatprep.subr.mxu0 0.0
    %4184 = vmatpush1.msra.mxu0 0.0
    %4185 = vmatprep.subr.mxu0 0.0
    %4186 = vmatpush1.msra.mxu0 0.0
    %4187 = vmatprep.subr.mxu0 0.0
    %4188 = vmatpush1.msra.mxu0 0.0
    %4189 = vmatprep.subr.mxu0 0.0
    %4190 = vmatpush1.msra.mxu0 0.0
    %4191 = vmatprep.subr.mxu0 0.0
    %4192 = vmatpush1.msra.mxu0 0.0
    %4193 = vmatprep.subr.mxu0 0.0
    %4194 = vmatpush1.msra.mxu0 0.0
    %4195 = vmatprep.subr.mxu0 0.0
    %4196 = vmatpush1.msra.mxu0 0.0
    %4197 = vmatprep.subr.mxu0 0.0
    %4198 = vmatpush1.msra.mxu0 0.0
    %4199 = vmatprep.subr.mxu0 0.0
    %4200 = vmatpush1.msra.mxu0 0.0
    %4201 = vmatprep.subr.mxu0 0.0
    %4202 = vmatpush1.msra.mxu0 0.0
    %4203 = vmatprep.subr.mxu0 0.0
    %4204 = vmatpush1.msra.mxu0 0.0
    %4205 = vmatprep.subr.mxu0 0.0
    %4206 = vmatpush1.msra.mxu0 0.0
    %4207 = vmatprep.subr.mxu0 0.0
    %4208 = vmatpush1.msra.mxu0 0.0
    %4209 = vmatprep.subr.mxu0 0.0
    %4210 = vmatpush1.msra.mxu0 0.0
    %4211 = vmatprep.subr.mxu0 0.0
    %4212 = vmatpush1.msra.mxu0 0.0
    %4213 = vmatprep.subr.mxu0 0.0
    %4214 = vmatpush1.msra.mxu0 0.0
    %4215 = vmatprep.subr.mxu0 0.0
    %4216 = vmatpush1.msra.mxu0 0.0
    %4217 = vmatprep.subr.mxu0 0.0
    %4218 = vmatpush1.msra.mxu0 0.0
    %4219 = vmatprep.subr.mxu0 0.0
    %4220 = vmatpush1.msra.mxu0 0.0
    %4221 = vmatprep.subr.mxu0 0.0
    %4222 = vmatpush1.msra.mxu0 0.0
    %4223 = vmatprep.subr.mxu0 0.0
    %4224 = vmatpush1.msra.mxu0 0.0
    %4225 = vmatprep.mubr.f32.mxu0 0.0
    %4226 = vmatmul.mubr.f32.gmra.mrb[0].mxu0 %v4159
    %v4227 = vpop.f32.mrb[0].mxu0
    %v4228 = vadd.f32 0.0, %v4227
    %v4229 = vpop.f32.mrb[0].mxu0
    %4230 = vdwg.mxu0
    %v4231 = vmax.f32 %v4228, 0.0
    %v4232 = vld [vmem:[%s53] sm:$0xff]
    %v4233 = vld [vmem:[%s53 + $0x8] sm:$0xff]
    %v4234 = vld [vmem:[%s53 + $0x10] sm:$0xff]
    %v4235 = vld [vmem:[%s53 + $0x18] sm:$0xff]
    %v4236 = vld [vmem:[%s53 + $0x20] sm:$0xff]
    %v4237 = vld [vmem:[%s53 + $0x28] sm:$0xff]
    %v4238 = vld [vmem:[%s53 + $0x30] sm:$0xff]
    %v4239 = vld [vmem:[%s53 + $0x38] sm:$0xff]
    %v4240 = vld [vmem:[%s53 + $0x40] sm:$0xff]
    %v4241 = vld [vmem:[%s53 + $0x48] sm:$0xff]
    %v4242 = vld [vmem:[%s53 + $0x50] sm:$0xff]
    %v4243 = vld [vmem:[%s53 + $0x58] sm:$0xff]
    %vm4244 = vcmask 785408
    %v4246 = vsel %vm4244, %v4231, 0
    %4248 = vmatprep.subr.mxu0 0.0
    %4249 = vmatpush1.msra.mxu0 %v4232
    %4250 = vmatprep.subr.mxu0 0.0
    %4251 = vmatpush1.msra.mxu0 %v4233
    %4252 = vmatprep.subr.mxu0 0.0
    %4253 = vmatpush1.msra.mxu0 %v4234
    %4254 = vmatprep.subr.mxu0 0.0
    %4255 = vmatpush1.msra.mxu0 %v4235
    %4256 = vmatprep.subr.mxu0 0.0
    %4257 = vmatpush1.msra.mxu0 %v4236
    %4258 = vmatprep.subr.mxu0 0.0
    %4259 = vmatpush1.msra.mxu0 %v4237
    %4260 = vmatprep.subr.mxu0 0.0
    %4261 = vmatpush1.msra.mxu0 %v4238
    %4262 = vmatprep.subr.mxu0 0.0
    %4263 = vmatpush1.msra.mxu0 %v4239
    %4264 = vmatprep.subr.mxu0 0.0
    %4265 = vmatpush1.msra.mxu0 %v4240
    %4266 = vmatprep.subr.mxu0 0.0
    %4267 = vmatpush1.msra.mxu0 %v4241
    %4268 = vmatprep.subr.mxu0 0.0
    %4269 = vmatpush1.msra.mxu0 %v4242
    %4270 = vmatprep.subr.mxu0 0.0
    %4271 = vmatpush1.msra.mxu0 %v4243
    %4272 = vmatprep.subr.mxu0 0.0
    %4273 = vmatpush1.msra.mxu0 0.0
    %4274 = vmatprep.subr.mxu0 0.0
    %4275 = vmatpush1.msra.mxu0 0.0
    %4276 = vmatprep.subr.mxu0 0.0
    %4277 = vmatpush1.msra.mxu0 0.0
    %4278 = vmatprep.subr.mxu0 0.0
    %4279 = vmatpush1.msra.mxu0 0.0
    %4280 = vmatprep.subr.mxu0 0.0
    %4281 = vmatpush1.msra.mxu0 0.0
    %4282 = vmatprep.subr.mxu0 0.0
    %4283 = vmatpush1.msra.mxu0 0.0
    %4284 = vmatprep.subr.mxu0 0.0
    %4285 = vmatpush1.msra.mxu0 0.0
    %4286 = vmatprep.subr.mxu0 0.0
    %4287 = vmatpush1.msra.mxu0 0.0
    %4288 = vmatprep.subr.mxu0 0.0
    %4289 = vmatpush1.msra.mxu0 0.0
    %4290 = vmatprep.subr.mxu0 0.0
    %4291 = vmatpush1.msra.mxu0 0.0
    %4292 = vmatprep.subr.mxu0 0.0
    %4293 = vmatpush1.msra.mxu0 0.0
    %4294 = vmatprep.subr.mxu0 0.0
    %4295 = vmatpush1.msra.mxu0 0.0
    %4296 = vmatprep.subr.mxu0 0.0
    %4297 = vmatpush1.msra.mxu0 0.0
    %4298 = vmatprep.subr.mxu0 0.0
    %4299 = vmatpush1.msra.mxu0 0.0
    %4300 = vmatprep.subr.mxu0 0.0
    %4301 = vmatpush1.msra.mxu0 0.0
    %4302 = vmatprep.subr.mxu0 0.0
    %4303 = vmatpush1.msra.mxu0 0.0
    %4304 = vmatprep.subr.mxu0 0.0
    %4305 = vmatpush1.msra.mxu0 0.0
    %4306 = vmatprep.subr.mxu0 0.0
    %4307 = vmatpush1.msra.mxu0 0.0
    %4308 = vmatprep.subr.mxu0 0.0
    %4309 = vmatpush1.msra.mxu0 0.0
    %4310 = vmatprep.subr.mxu0 0.0
    %4311 = vmatpush1.msra.mxu0 0.0
    %4312 = vmatprep.mubr.f32.mxu0 0.0
    %4313 = vmatmul.mubr.f32.gmra.mrb[0].mxu0 %v4246
    %v4314 = vpop.f32.mrb[0].mxu0
    %v4315 = vadd.f32 0.0, %v4314
    %v4316 = vpop.f32.mrb[0].mxu0
    %4317 = vdwg.mxu0
    %v4318 = vmax.f32 %v4315, 0.0
    %v4319 = vld [vmem:[%s55] sm:$0xff]
    %v4320 = vld [vmem:[%s55 + $0x8] sm:$0xff]
    %v4321 = vld [vmem:[%s55 + $0x10] sm:$0xff]
    %v4322 = vld [vmem:[%s55 + $0x18] sm:$0xff]
    %v4323 = vld [vmem:[%s55 + $0x20] sm:$0xff]
    %v4324 = vld [vmem:[%s55 + $0x28] sm:$0xff]
    %v4325 = vld [vmem:[%s55 + $0x30] sm:$0xff]
    %v4326 = vld [vmem:[%s55 + $0x38] sm:$0xff]
    %v4328 = vsel %vm2930, %v4318, 0
    %4330 = vmatprep.subr.mxu0 0.0
    %4331 = vmatpush1.msra.mxu0 %v4319
    %4332 = vmatprep.subr.mxu0 0.0
    %4333 = vmatpush1.msra.mxu0 %v4320
    %4334 = vmatprep.subr.mxu0 0.0
    %4335 = vmatpush1.msra.mxu0 %v4321
    %4336 = vmatprep.subr.mxu0 0.0
    %4337 = vmatpush1.msra.mxu0 %v4322
    %4338 = vmatprep.subr.mxu0 0.0
    %4339 = vmatpush1.msra.mxu0 %v4323
    %4340 = vmatprep.subr.mxu0 0.0
    %4341 = vmatpush1.msra.mxu0 %v4324
    %4342 = vmatprep.subr.mxu0 0.0
    %4343 = vmatpush1.msra.mxu0 %v4325
    %4344 = vmatprep.subr.mxu0 0.0
    %4345 = vmatpush1.msra.mxu0 %v4326
    %4346 = vmatprep.subr.mxu0 0.0
    %4347 = vmatpush1.msra.mxu0 0.0
    %4348 = vmatprep.subr.mxu0 0.0
    %4349 = vmatpush1.msra.mxu0 0.0
    %4350 = vmatprep.subr.mxu0 0.0
    %4351 = vmatpush1.msra.mxu0 0.0
    %4352 = vmatprep.subr.mxu0 0.0
    %4353 = vmatpush1.msra.mxu0 0.0
    %4354 = vmatprep.subr.mxu0 0.0
    %4355 = vmatpush1.msra.mxu0 0.0
    %4356 = vmatprep.subr.mxu0 0.0
    %4357 = vmatpush1.msra.mxu0 0.0
    %4358 = vmatprep.subr.mxu0 0.0
    %4359 = vmatpush1.msra.mxu0 0.0
    %4360 = vmatprep.subr.mxu0 0.0
    %4361 = vmatpush1.msra.mxu0 0.0
    %4362 = vmatprep.subr.mxu0 0.0
    %4363 = vmatpush1.msra.mxu0 0.0
    %4364 = vmatprep.subr.mxu0 0.0
    %4365 = vmatpush1.msra.mxu0 0.0
    %4366 = vmatprep.subr.mxu0 0.0
    %4367 = vmatpush1.msra.mxu0 0.0
    %4368 = vmatprep.subr.mxu0 0.0
    %4369 = vmatpush1.msra.mxu0 0.0
    %4370 = vmatprep.subr.mxu0 0.0
    %4371 = vmatpush1.msra.mxu0 0.0
    %4372 = vmatprep.subr.mxu0 0.0
    %4373 = vmatpush1.msra.mxu0 0.0
    %4374 = vmatprep.subr.mxu0 0.0
    %4375 = vmatpush1.msra.mxu0 0.0
    %4376 = vmatprep.subr.mxu0 0.0
    %4377 = vmatpush1.msra.mxu0 0.0
    %4378 = vmatprep.subr.mxu0 0.0
    %4379 = vmatpush1.msra.mxu0 0.0
    %4380 = vmatprep.subr.mxu0 0.0
    %4381 = vmatpush1.msra.mxu0 0.0
    %4382 = vmatprep.subr.mxu0 0.0
    %4383 = vmatpush1.msra.mxu0 0.0
    %4384 = vmatprep.subr.mxu0 0.0
    %4385 = vmatpush1.msra.mxu0 0.0
    %4386 = vmatprep.subr.mxu0 0.0
    %4387 = vmatpush1.msra.mxu0 0.0
    %4388 = vmatprep.subr.mxu0 0.0
    %4389 = vmatpush1.msra.mxu0 0.0
    %4390 = vmatprep.subr.mxu0 0.0
    %4391 = vmatpush1.msra.mxu0 0.0
    %4392 = vmatprep.subr.mxu0 0.0
    %4393 = vmatpush1.msra.mxu0 0.0
    %4394 = vmatprep.mubr.f32.mxu0 0.0
    %4395 = vmatmul.mubr.f32.gmra.mrb[0].mxu0 %v4328
    %v4396 = vpop.f32.mrb[0].mxu0
    %v4397 = vadd.f32 0.0, %v4396
    %v4398 = vpop.f32.mrb[0].mxu0
    %4399 = vdwg.mxu0
    %v4400 = vld [vmem:[%s57] sm:$0xff]
    %v4401 = vld [vmem:[%s57 + $0x8] sm:$0xf]
    %v4402 = vld [vmem:[%s59] sm:$0xff]
    %v4403 = vld [vmem:[%s59 + $0x8] sm:$0xff]
    %v4404 = vld [vmem:[%s59 + $0x10] sm:$0xff]
    %v4405 = vld [vmem:[%s59 + $0x18] sm:$0xff]
    %v4406 = vld [vmem:[%s59 + $0x20] sm:$0xff]
    %v4407 = vld [vmem:[%s59 + $0x28] sm:$0xff]
    %v4408 = vld [vmem:[%s59 + $0x30] sm:$0xff]
    %v4409 = vld [vmem:[%s59 + $0x38] sm:$0xff]
    %v4410 = vld [vmem:[%s59 + $0x40] sm:$0xff]
    %v4411 = vld [vmem:[%s59 + $0x48] sm:$0xff]
    %v4412 = vld [vmem:[%s59 + $0x50] sm:$0xff]
    %v4413 = vld [vmem:[%s59 + $0x58] sm:$0xff]
    %v4414 = vld [vmem:[%s59 + $0x60] sm:$0xff]
    %v4415 = vld [vmem:[%s59 + $0x68] sm:$0xff]
    %v4416 = vld [vmem:[%s59 + $0x70] sm:$0xff]
    %v4417 = vld [vmem:[%s59 + $0x78] sm:$0xff]
    %4418 = vmatprep.subr.mxu0 0.0
    %4419 = vmatpush1.msra.mxu0 %v4402
    %4420 = vmatprep.subr.mxu0 0.0
    %4421 = vmatpush1.msra.mxu0 %v4403
    %4422 = vmatprep.subr.mxu0 0.0
    %4423 = vmatpush1.msra.mxu0 %v4404
    %4424 = vmatprep.subr.mxu0 0.0
    %4425 = vmatpush1.msra.mxu0 %v4405
    %4426 = vmatprep.subr.mxu0 0.0
    %4427 = vmatpush1.msra.mxu0 %v4406
    %4428 = vmatprep.subr.mxu0 0.0
    %4429 = vmatpush1.msra.mxu0 %v4407
    %4430 = vmatprep.subr.mxu0 0.0
    %4431 = vmatpush1.msra.mxu0 %v4408
    %4432 = vmatprep.subr.mxu0 0.0
    %4433 = vmatpush1.msra.mxu0 %v4409
    %4434 = vmatprep.subr.mxu0 0.0
    %4435 = vmatpush1.msra.mxu0 %v4410
    %4436 = vmatprep.subr.mxu0 0.0
    %4437 = vmatpush1.msra.mxu0 %v4411
    %4438 = vmatprep.subr.mxu0 0.0
    %4439 = vmatpush1.msra.mxu0 %v4412
    %4440 = vmatprep.subr.mxu0 0.0
    %4441 = vmatpush1.msra.mxu0 %v4413
    %4442 = vmatprep.subr.mxu0 0.0
    %4443 = vmatpush1.msra.mxu0 %v4414
    %4444 = vmatprep.subr.mxu0 0.0
    %4445 = vmatpush1.msra.mxu0 %v4415
    %4446 = vmatprep.subr.mxu0 0.0
    %4447 = vmatpush1.msra.mxu0 %v4416
    %4448 = vmatprep.subr.mxu0 0.0
    %4449 = vmatpush1.msra.mxu0 %v4417
    %4450 = vmatprep.subr.mxu0 0.0
    %4451 = vmatpush1.msra.mxu0 0.0
    %4452 = vmatprep.subr.mxu0 0.0
    %4453 = vmatpush1.msra.mxu0 0.0
    %4454 = vmatprep.subr.mxu0 0.0
    %4455 = vmatpush1.msra.mxu0 0.0
    %4456 = vmatprep.subr.mxu0 0.0
    %4457 = vmatpush1.msra.mxu0 0.0
    %4458 = vmatprep.subr.mxu0 0.0
    %4459 = vmatpush1.msra.mxu0 0.0
    %4460 = vmatprep.subr.mxu0 0.0
    %4461 = vmatpush1.msra.mxu0 0.0
    %4462 = vmatprep.subr.mxu0 0.0
    %4463 = vmatpush1.msra.mxu0 0.0
    %4464 = vmatprep.subr.mxu0 0.0
    %4465 = vmatpush1.msra.mxu0 0.0
    %4466 = vmatprep.subr.mxu0 0.0
    %4467 = vmatpush1.msra.mxu0 0.0
    %4468 = vmatprep.subr.mxu0 0.0
    %4469 = vmatpush1.msra.mxu0 0.0
    %4470 = vmatprep.subr.mxu0 0.0
    %4471 = vmatpush1.msra.mxu0 0.0
    %4472 = vmatprep.subr.mxu0 0.0
    %4473 = vmatpush1.msra.mxu0 0.0
    %4474 = vmatprep.subr.mxu0 0.0
    %4475 = vmatpush1.msra.mxu0 0.0
    %4476 = vmatprep.subr.mxu0 0.0
    %4477 = vmatpush1.msra.mxu0 0.0
    %4478 = vmatprep.subr.mxu0 0.0
    %4479 = vmatpush1.msra.mxu0 0.0
    %4480 = vmatprep.subr.mxu0 0.0
    %4481 = vmatpush1.msra.mxu0 0.0
    %4482 = vmatprep.mubr.f32.mxu0 0.0
    %4483 = vmatmul.mubr.f32.gmra.mrb[0].mxu0 %v4397
    %v4484 = vpop.f32.mrb[0].mxu0
    %v4485 = vadd.f32 0.0, %v4484
    %v4486 = vpop.f32.mrb[0].mxu0
    %4487 = vdwg.mxu0
    %vm4488 = vcmask 97280
    %v4490 = vsel %vm4488, %v4150, 0
    %v4493 = vsel %vm3354, %v4401, 0
    %4495 = vmatprep.subr.mxu0 0.0
    %4496 = vmatpush1.msra.mxu0 %v4400
    %4497 = vmatprep.subr.mxu0 0.0
    %4498 = vmatpush1.msra.mxu0 %v4493
    %4499 = vmatprep.subr.mxu0 0.0
    %4500 = vmatpush1.msra.mxu0 0.0
    %4501 = vmatprep.subr.mxu0 0.0
    %4502 = vmatpush1.msra.mxu0 0.0
    %4503 = vmatprep.subr.mxu0 0.0
    %4504 = vmatpush1.msra.mxu0 0.0
    %4505 = vmatprep.subr.mxu0 0.0
    %4506 = vmatpush1.msra.mxu0 0.0
    %4507 = vmatprep.subr.mxu0 0.0
    %4508 = vmatpush1.msra.mxu0 0.0
    %4509 = vmatprep.subr.mxu0 0.0
    %4510 = vmatpush1.msra.mxu0 0.0
    %4511 = vmatprep.subr.mxu0 0.0
    %4512 = vmatpush1.msra.mxu0 0.0
    %4513 = vmatprep.subr.mxu0 0.0
    %4514 = vmatpush1.msra.mxu0 0.0
    %4515 = vmatprep.subr.mxu0 0.0
    %4516 = vmatpush1.msra.mxu0 0.0
    %4517 = vmatprep.subr.mxu0 0.0
    %4518 = vmatpush1.msra.mxu0 0.0
    %4519 = vmatprep.subr.mxu0 0.0
    %4520 = vmatpush1.msra.mxu0 0.0
    %4521 = vmatprep.subr.mxu0 0.0
    %4522 = vmatpush1.msra.mxu0 0.0
    %4523 = vmatprep.subr.mxu0 0.0
    %4524 = vmatpush1.msra.mxu0 0.0
    %4525 = vmatprep.subr.mxu0 0.0
    %4526 = vmatpush1.msra.mxu0 0.0
    %4527 = vmatprep.subr.mxu0 0.0
    %4528 = vmatpush1.msra.mxu0 0.0
    %4529 = vmatprep.subr.mxu0 0.0
    %4530 = vmatpush1.msra.mxu0 0.0
    %4531 = vmatprep.subr.mxu0 0.0
    %4532 = vmatpush1.msra.mxu0 0.0
    %4533 = vmatprep.subr.mxu0 0.0
    %4534 = vmatpush1.msra.mxu0 0.0
    %4535 = vmatprep.subr.mxu0 0.0
    %4536 = vmatpush1.msra.mxu0 0.0
    %4537 = vmatprep.subr.mxu0 0.0
    %4538 = vmatpush1.msra.mxu0 0.0
    %4539 = vmatprep.subr.mxu0 0.0
    %4540 = vmatpush1.msra.mxu0 0.0
    %4541 = vmatprep.subr.mxu0 0.0
    %4542 = vmatpush1.msra.mxu0 0.0
    %4543 = vmatprep.subr.mxu0 0.0
    %4544 = vmatpush1.msra.mxu0 0.0
    %4545 = vmatprep.subr.mxu0 0.0
    %4546 = vmatpush1.msra.mxu0 0.0
    %4547 = vmatprep.subr.mxu0 0.0
    %4548 = vmatpush1.msra.mxu0 0.0
    %4549 = vmatprep.subr.mxu0 0.0
    %4550 = vmatpush1.msra.mxu0 0.0
    %4551 = vmatprep.subr.mxu0 0.0
    %4552 = vmatpush1.msra.mxu0 0.0
    %4553 = vmatprep.subr.mxu0 0.0
    %4554 = vmatpush1.msra.mxu0 0.0
    %4555 = vmatprep.subr.mxu0 0.0
    %4556 = vmatpush1.msra.mxu0 0.0
    %4557 = vmatprep.subr.mxu0 0.0
    %4558 = vmatpush1.msra.mxu0 0.0
    %4559 = vmatprep.mubr.f32.mxu0 0.0
    %4560 = vmatmul.mubr.f32.gmra.mrb[0].mxu0 %v4490
    %v4561 = vpop.f32.mrb[0].mxu0
    %v4562 = vadd.f32 %v4485, %v4561
    %v4563 = vpop.f32.mrb[0].mxu0
    %4564 = vdwg.mxu0
    %v4565 = vld [vmem:[#allocation2] sm:$0x1]
    %v4567 = vlaneseq
    %v4568 = vshrl.u32 %v4567, 7
    %v4569 = vsub.s32 0, %v4568
    %v4570 = vrot.slane %v4565, %v4569
    %v4572 = vadd.f32 %v4562, %v4570
    %v4573 = vmax.f32 %v4572, 0.0
    %v4574 = vand.u32 2147483647, %v4572
    %v4575 = vsub.f32 0.0, %v4574
    %v4576 = vmul.f32 %v4575, 1.442695
    %v4577 = vpow.pop %v4576
    %v4578 = vadd.f32 %v4577, 1.0
    %v4579 = vlog2.pop %v4578
    %v4580 = vmul.f32 %v4579, 0.6931472
    %v4581 = vadd.f32 %v4573, %v4580
    %vm4582 = vcmask 1024
    %4583 = vst.msk [vmem:[%s63] sm:$0x3] %vm4582, %v4581
    // Predicated region
    $region194: #{fwd.1} parent=1 // pred_check
      _
    $region195: #{fwd.1} parent=1 // pred_check_branch
      %4585 = sbr.rel (0) target = $region197
    $region196: #{fwd.1} parent=1 // pred_region
      _
    $region197: #{fwd.1} parent=1 // pred_fallthru
      _
    // Predicated region
    $region198: #{fwd.1} parent=1 // pred_check
      _
    $region199: #{fwd.1} parent=1 // pred_check_branch
      %4587 = sbr.rel (0) target = $region201
    $region200: #{fwd.1} parent=1 // pred_region
      _
    $region201: #{fwd.1} parent=1 // pred_fallthru
      _
    %4588 = vsyncpa [#allocation4], 1
    %4589 = vsyncpa [#allocation6], 1
    %4590 = vsyncpa [#allocation9], 1
    %4591 = vsyncpa [#allocation12], 1
    %4592 = vsyncpa [#allocation15], 1
    %4593 = vsyncpa [#allocation18], 1
    %4594 = vsyncpa [#allocation21], 1
    %4595 = vsyncpa [#allocation24], 1
    %4596 = vsyncpa [#allocation27], 1

</llo_original>
